<compile_context>
chip_gen: v5e
topology: v5e:2x2
jax: 0.10.0
libtpu: 0.0.40
codegen_flags: <defaults>
</compile_context>

<pallas_src>
import math

import numpy as np
import jax
import jax.numpy as jnp
from jax.experimental import pallas as pl
from jax.experimental.pallas import tpu as pltpu


# ----------------------------------------------------------------------------
# Fused "tail" Pallas kernel: offset_ecoder + map_process_fc + state_process +
# cmd_process + final fc, all resident in VMEM (weights total ~3.6 MiB, M = B).
# ----------------------------------------------------------------------------
def _tail_kernel(emap_ref, moff_ref, pose_ref, cmd_ref,
                 oe1_w, oe1_b, oe2_w, oe2_b,
                 mp1_w, mp1_b, mp1_g, mp1_bt,
                 mp2_w, mp2_b, mp2_g, mp2_bt,
                 sp1_w, sp1_b, sp1_g, sp1_bt,
                 sp2_w, sp2_b,
                 cp1_w, cp1_b, cp1_g, cp1_bt,
                 cp2_w, cp2_b,
                 fc1_w, fc1_b, fc2_w, fc2_b,
                 out_ref):
    def dot(a, b):
        return jnp.dot(a, b, preferred_element_type=jnp.float32)

    def leaky(y):                      # LeakyReLU(0.1)
        return jnp.where(y > 0, y, 0.1 * y)

    def sigmoid(y):                    # exp on EUP + approx reciprocal (EUP slot)
        return pl.reciprocal(1.0 + jnp.exp(-y), approx=True)

    def layernorm(y, g, bt):           # eps=1e-5, biased variance (PyTorch default)
        mu = jnp.mean(y, axis=-1, keepdims=True)
        d = y - mu
        var = jnp.mean(d * d, axis=-1, keepdims=True)
        return d * jax.lax.rsqrt(var + 1e-5) * g[...] + bt[...]

    emap = emap_ref[...]               # (B, 4608)
    moff = moff_ref[...]               # (B, 4)
    pose = pose_ref[...]               # (B, 6)
    cmd = cmd_ref[...]                 # (B, 2)

    # --- offset_ecoder ---
    off = sigmoid(dot(moff, oe1_w[...]) + oe1_b[...])          # (B, 64)
    off = sigmoid(dot(off, oe2_w[...]) + oe2_b[...])           # (B, 4608)

    # --- map_process_fc --- (concat([emap, off]) @ mp1_w done as split-weight sum)
    D = emap_ref.shape[1]                                      # 4608
    y = (dot(emap, mp1_w[pl.ds(0, D), :]) +
         dot(off, mp1_w[pl.ds(D, D), :]) + mp1_b[...])
    m = jnp.tanh(layernorm(y, mp1_g, mp1_bt))                  # (B, 64)
    m = jnp.tanh(layernorm(dot(m, mp2_w[...]) + mp2_b[...], mp2_g, mp2_bt))  # (B, 24)
    # Dropout(0.25)/Dropout(0.1): identity in eval mode.

    # --- state_process ---
    s = leaky(layernorm(dot(pose, sp1_w[...]) + sp1_b[...], sp1_g, sp1_bt))  # (B, 8)
    s = leaky(dot(s, sp2_w[...]) + sp2_b[...])                               # (B, 24)

    # --- cmd_process ---
    c = leaky(layernorm(dot(cmd, cp1_w[...]) + cp1_b[...], cp1_g, cp1_bt))   # (B, 8)
    c = leaky(dot(c, cp2_w[...]) + cp2_b[...])                               # (B, 24)

    # --- final fc --- (concat([s, c, m]) @ fc1_w as split-weight sum)
    h = (dot(s, fc1_w[pl.ds(0, 24), :]) +
         dot(c, fc1_w[pl.ds(24, 24), :]) +
         dot(m, fc1_w[pl.ds(48, 24), :]) + fc1_b[...])
    h = leaky(h)                                               # (B, 12)
    out_ref[...] = dot(h, fc2_w[...]) + fc2_b[...]             # (B, 6)


def pallas_tail(p, emap, map_offset, pose_dot, cmd_vel):
    B = emap.shape[0]
    args = (emap, map_offset, pose_dot, cmd_vel,
            p["oe1_w"], p["oe1_b"], p["oe2_w"], p["oe2_b"],
            p["mp1_w"], p["mp1_b"], p["mp1_g"], p["mp1_beta"],
            p["mp2_w"], p["mp2_b"], p["mp2_g"], p["mp2_beta"],
            p["sp1_w"], p["sp1_b"], p["sp1_g"], p["sp1_beta"],
            p["sp2_w"], p["sp2_b"],
            p["cp1_w"], p["cp1_b"], p["cp1_g"], p["cp1_beta"],
            p["cp2_w"], p["cp2_b"],
            p["fc1_w"], p["fc1_b"], p["fc2_w"], p["fc2_b"])
    # Single grid step, every operand resident in VMEM (fits all generations incl. v7x).
    return pl.pallas_call(
        _tail_kernel,
        out_shape=jax.ShapeDtypeStruct((B, 6), jnp.float32),
        compiler_params=pltpu.CompilerParams(vmem_limit_bytes=32 * 1024 * 1024),
    )(*args)


# ----------------------------------------------------------------------------
# Conv stack (XLA-native per perf review: channels 1..32 too small for im2col GEMM)
# ----------------------------------------------------------------------------
# TODO(synk): conv stack is lowered with lax.conv_general_dilated (review-sanctioned);
#             a fused Pallas conv would need strided in-kernel window reads.
def conv2d_leaky(x, w, b, stride, pad):
    """Conv2d(NCHW, OIHW) + bias + LeakyReLU(0.1)."""
    y = jax.lax.conv_general_dilated(
        x, w,
        window_strides=(stride, stride),
        padding=((pad, pad), (pad, pad)),
        dimension_numbers=("NCHW", "OIHW", "NCHW"),
        precision=jax.lax.Precision.HIGHEST,
    )
    y = y + b.reshape(1, -1, 1, 1)
    return jnp.where(y > 0, y, 0.1 * y)


def maxpool2(x):
    B, C, H, W = x.shape
    H2, W2 = H // 2, W // 2
    x = x[:, :, :H2 * 2, :W2 * 2].reshape(B, C, H2, 2, W2, 2)
    return x.max(axis=(3, 5))


def adaptive_avg_pool(x, out_h, out_w):
    """AdaptiveAvgPool2d via two pooling matrices (vectorized, matches PyTorch bins)."""
    B, C, H, W = x.shape

    def pool_mat(n_in, n_out):
        m = np.zeros((n_out, n_in), dtype=np.float32)
        for i in range(n_out):
            s = (i * n_in) // n_out
            e = -(-((i + 1) * n_in) // n_out)
            m[i, s:e] = 1.0 / (e - s)
        return jnp.asarray(m)

    Ah = pool_mat(H, out_h)           # (out_h, H)
    Aw = pool_mat(W, out_w)           # (out_w, W)
    return jnp.einsum("ph,bchw,qw->bcpq", Ah, x, Aw)


# ----------------------------------------------------------------------------
# Parameter init (deterministic, synthetic; matches PyTorch init distributions)
# ----------------------------------------------------------------------------
def init_params(key):
    keys = iter(jax.random.split(key, 64))
    nk = lambda: next(keys)
    p = {}

    conv_shapes = [(4, 1, 3, 3), (8, 4, 5, 5), (12, 8, 5, 5), (24, 12, 5, 5), (32, 24, 5, 5)]
    gain = math.sqrt(2.0 / (1.0 + 0.01 ** 2))
    for idx, (co, ci, kh, kw) in enumerate(conv_shapes, start=1):
        fan_in = ci * kh * kw
        p[f"c{idx}_w"] = (gain / math.sqrt(fan_in)) * jax.random.normal(
            nk(), (co, ci, kh, kw), jnp.float32)
        bnd = 1.0 / math.sqrt(fan_in)
        p[f"c{idx}_b"] = jax.random.uniform(nk(), (1, co), jnp.float32, -bnd, bnd)

    def lin(name, fin, fout, init):
        if init == "kaiming":
            w = (gain / math.sqrt(fin)) * jax.random.normal(nk(), (fin, fout), jnp.float32)
        elif init == "xavier_normal":
            std = math.sqrt(2.0 / (fin + fout))
            w = std * jax.random.normal(nk(), (fin, fout), jnp.float32)
        else:  # xavier_uniform
            bnd_w = math.sqrt(6.0 / (fin + fout))
            w = jax.random.uniform(nk(), (fin, fout), jnp.float32, -bnd_w, bnd_w)
        bb = 1.0 / math.sqrt(fin)
        p[f"{name}_w"] = w
        p[f"{name}_b"] = jax.random.uniform(nk(), (1, fout), jnp.float32, -bb, bb)

    lin("oe1", 4, 64, "xavier_normal")
    lin("oe2", 64, 32 * 12 * 12, "xavier_normal")
    lin("mp1", 32 * 12 * 12 * 2, 64, "xavier_uniform")
    lin("mp2", 64, 24, "xavier_uniform")
    lin("sp1", 6, 8, "kaiming")
    lin("sp2", 8, 24, "kaiming")
    lin("cp1", 2, 8, "kaiming")
    lin("cp2", 8, 24, "kaiming")
    lin("fc1", 72, 12, "kaiming")
    lin("fc2", 12, 6, "kaiming")

    for name, n in [("mp1", 64), ("mp2", 24), ("sp1", 8), ("cp1", 8)]:
        p[f"{name}_g"] = jnp.ones((1, n), jnp.float32)
        p[f"{name}_beta"] = jnp.zeros((1, n), jnp.float32)
    return p


# ----------------------------------------------------------------------------
# Forward pass (mirrors wmvct_alt.forward, Dropout = eval-mode identity)
# ----------------------------------------------------------------------------
def forward(params, pose_dot, cmd_vel, map_offset, elev_map):
    p = params
    # --- map_encode ---
    h = conv2d_leaky(elev_map, p["c1_w"], p["c1_b"], stride=2, pad=1)
    h = maxpool2(h)
    h = conv2d_leaky(h, p["c2_w"], p["c2_b"], stride=1, pad=1)
    h = maxpool2(h)
    h = conv2d_leaky(h, p["c3_w"], p["c3_b"], stride=2, pad=1)
    h = maxpool2(h)
    h = conv2d_leaky(h, p["c4_w"], p["c4_b"], stride=1, pad=1)
    h = maxpool2(h)
    h = conv2d_leaky(h, p["c5_w"], p["c5_b"], stride=2, pad=1)
    h = adaptive_avg_pool(h, 12, 12)
    emap = h.reshape(h.shape[0], -1)                 # (B, 4608), CHW-ordered flatten

    # --- everything else fused into one Pallas kernel ---
    return pallas_tail(p, emap, map_offset, pose_dot, cmd_vel)


# ----------------------------------------------------------------------------
if __name__ == "__main__":
    params = init_params(jax.random.PRNGKey(42))

    key = jax.random.PRNGKey(0)
    k1, k2, k3, k4 = jax.random.split(key, 4)
    B = 2
    # 272 is the smallest spatial size for which the conv/pool stack stays valid.
    H = W = 272
    pose_dot = jax.random.normal(k1, (B, 6), jnp.float32)
    cmd_vel = jax.random.normal(k2, (B, 2), jnp.float32)
    map_offset = jax.random.normal(k3, (B, 4), jnp.float32)
    elev_map = jax.random.normal(k4, (B, 1, H, W), jnp.float32)

    out = jax.jit(lambda a, b_, c_, d_: forward(params, a, b_, c_, d_))(
        pose_dot, cmd_vel, map_offset, elev_map
    )
    jax.block_until_ready(out)
    assert out.shape == (B, 6) and out.dtype == jnp.float32
    print("KERNEL_OK")
</pallas_src>

<mosaic_0001>
module attributes {stable_mosaic.version = 11 : i64} {
  func.func @_tail_kernel(%arg0: memref<2x4608xf32, #tpu.memory_space<vmem>>, %arg1: memref<2x4xf32, #tpu.memory_space<vmem>>, %arg2: memref<2x6xf32, #tpu.memory_space<vmem>>, %arg3: memref<2x2xf32, #tpu.memory_space<vmem>>, %arg4: memref<4x64xf32, #tpu.memory_space<vmem>>, %arg5: memref<1x64xf32, #tpu.memory_space<vmem>>, %arg6: memref<64x4608xf32, #tpu.memory_space<vmem>>, %arg7: memref<1x4608xf32, #tpu.memory_space<vmem>>, %arg8: memref<9216x64xf32, #tpu.memory_space<vmem>>, %arg9: memref<1x64xf32, #tpu.memory_space<vmem>>, %arg10: memref<1x64xf32, #tpu.memory_space<vmem>>, %arg11: memref<1x64xf32, #tpu.memory_space<vmem>>, %arg12: memref<64x24xf32, #tpu.memory_space<vmem>>, %arg13: memref<1x24xf32, #tpu.memory_space<vmem>>, %arg14: memref<1x24xf32, #tpu.memory_space<vmem>>, %arg15: memref<1x24xf32, #tpu.memory_space<vmem>>, %arg16: memref<6x8xf32, #tpu.memory_space<vmem>>, %arg17: memref<1x8xf32, #tpu.memory_space<vmem>>, %arg18: memref<1x8xf32, #tpu.memory_space<vmem>>, %arg19: memref<1x8xf32, #tpu.memory_space<vmem>>, %arg20: memref<8x24xf32, #tpu.memory_space<vmem>>, %arg21: memref<1x24xf32, #tpu.memory_space<vmem>>, %arg22: memref<2x8xf32, #tpu.memory_space<vmem>>, %arg23: memref<1x8xf32, #tpu.memory_space<vmem>>, %arg24: memref<1x8xf32, #tpu.memory_space<vmem>>, %arg25: memref<1x8xf32, #tpu.memory_space<vmem>>, %arg26: memref<8x24xf32, #tpu.memory_space<vmem>>, %arg27: memref<1x24xf32, #tpu.memory_space<vmem>>, %arg28: memref<72x12xf32, #tpu.memory_space<vmem>>, %arg29: memref<1x12xf32, #tpu.memory_space<vmem>>, %arg30: memref<12x6xf32, #tpu.memory_space<vmem>>, %arg31: memref<1x6xf32, #tpu.memory_space<vmem>>, %arg32: memref<2x6xf32, #tpu.memory_space<vmem>>) attributes {dimension_semantics = [], scalar_prefetch = 0 : i64, scratch_operands = 0 : i64, tpu.core_type = #tpu.core_type<tc>} {
    %c0 = arith.constant 0 : index
    %c0_0 = arith.constant 0 : index
    %0 = vector.load %arg0[%c0, %c0_0] : memref<2x4608xf32, #tpu.memory_space<vmem>>, vector<2x4608xf32>
    %c0_1 = arith.constant 0 : index
    %c0_2 = arith.constant 0 : index
    %1 = vector.load %arg1[%c0_1, %c0_2] : memref<2x4xf32, #tpu.memory_space<vmem>>, vector<2x4xf32>
    %c0_3 = arith.constant 0 : index
    %c0_4 = arith.constant 0 : index
    %2 = vector.load %arg2[%c0_3, %c0_4] : memref<2x6xf32, #tpu.memory_space<vmem>>, vector<2x6xf32>
    %c0_5 = arith.constant 0 : index
    %c0_6 = arith.constant 0 : index
    %3 = vector.load %arg3[%c0_5, %c0_6] : memref<2x2xf32, #tpu.memory_space<vmem>>, vector<2x2xf32>
    %c0_7 = arith.constant 0 : index
    %c0_8 = arith.constant 0 : index
    %4 = vector.load %arg4[%c0_7, %c0_8] : memref<4x64xf32, #tpu.memory_space<vmem>>, vector<4x64xf32>
    %cst = arith.constant dense<0.000000e+00> : vector<2x64xf32>
    %5 = tpu.matmul %1, %4, %cst {dimension_numbers = #tpu.dot_dimension_numbers<[1], [0], [0], [1], [0, 0, 1, 1], [], []>} : vector<2x4xf32>, vector<4x64xf32>, vector<2x64xf32> -> vector<2x64xf32>
    %c0_9 = arith.constant 0 : index
    %c0_10 = arith.constant 0 : index
    %6 = vector.load %arg5[%c0_9, %c0_10] : memref<1x64xf32, #tpu.memory_space<vmem>>, vector<1x64xf32>
    %7 = vector.broadcast %6 : vector<1x64xf32> to vector<2x64xf32>
    %8 = arith.addf %5, %7 : vector<2x64xf32>
    %cst_11 = arith.constant 0.000000e+00 : f32
    %9 = vector.broadcast %cst_11 : f32 to vector<2x64xf32>
    %10 = arith.subf %9, %8 : vector<2x64xf32>
    %11 = math.exp %10 : vector<2x64xf32>
    %cst_12 = arith.constant 1.000000e+00 : f32
    %12 = vector.broadcast %cst_12 : f32 to vector<2x64xf32>
    %13 = arith.addf %12, %11 : vector<2x64xf32>
    %14 = tpu.reciprocal %13 {approx = true} : vector<2x64xf32> -> vector<2x64xf32>
    %c0_13 = arith.constant 0 : index
    %c0_14 = arith.constant 0 : index
    %15 = vector.load %arg6[%c0_13, %c0_14] : memref<64x4608xf32, #tpu.memory_space<vmem>>, vector<64x4608xf32>
    %cst_15 = arith.constant dense<0.000000e+00> : vector<2x4608xf32>
    %16 = tpu.matmul %14, %15, %cst_15 {dimension_numbers = #tpu.dot_dimension_numbers<[1], [0], [0], [1], [0, 0, 1, 1], [], []>} : vector<2x64xf32>, vector<64x4608xf32>, vector<2x4608xf32> -> vector<2x4608xf32>
    %c0_16 = arith.constant 0 : index
    %c0_17 = arith.constant 0 : index
    %17 = vector.load %arg7[%c0_16, %c0_17] : memref<1x4608xf32, #tpu.memory_space<vmem>>, vector<1x4608xf32>
    %18 = vector.broadcast %17 : vector<1x4608xf32> to vector<2x4608xf32>
    %19 = arith.addf %16, %18 : vector<2x4608xf32>
    %cst_18 = arith.constant 0.000000e+00 : f32
    %20 = vector.broadcast %cst_18 : f32 to vector<2x4608xf32>
    %21 = arith.subf %20, %19 : vector<2x4608xf32>
    %22 = math.exp %21 : vector<2x4608xf32>
    %cst_19 = arith.constant 1.000000e+00 : f32
    %23 = vector.broadcast %cst_19 : f32 to vector<2x4608xf32>
    %24 = arith.addf %23, %22 : vector<2x4608xf32>
    %25 = tpu.reciprocal %24 {approx = true} : vector<2x4608xf32> -> vector<2x4608xf32>
    %c0_20 = arith.constant 0 : index
    %c0_21 = arith.constant 0 : index
    %26 = vector.load %arg8[%c0_20, %c0_21] : memref<9216x64xf32, #tpu.memory_space<vmem>>, vector<4608x64xf32>
    %cst_22 = arith.constant dense<0.000000e+00> : vector<2x64xf32>
    %27 = tpu.matmul %0, %26, %cst_22 {dimension_numbers = #tpu.dot_dimension_numbers<[1], [0], [0], [1], [0, 0, 1, 1], [], []>} : vector<2x4608xf32>, vector<4608x64xf32>, vector<2x64xf32> -> vector<2x64xf32>
    %c4608 = arith.constant 4608 : index
    %c0_23 = arith.constant 0 : index
    %28 = vector.load %arg8[%c4608, %c0_23] : memref<9216x64xf32, #tpu.memory_space<vmem>>, vector<4608x64xf32>
    %cst_24 = arith.constant dense<0.000000e+00> : vector<2x64xf32>
    %29 = tpu.matmul %25, %28, %cst_24 {dimension_numbers = #tpu.dot_dimension_numbers<[1], [0], [0], [1], [0, 0, 1, 1], [], []>} : vector<2x4608xf32>, vector<4608x64xf32>, vector<2x64xf32> -> vector<2x64xf32>
    %30 = arith.addf %27, %29 : vector<2x64xf32>
    %c0_25 = arith.constant 0 : index
    %c0_26 = arith.constant 0 : index
    %31 = vector.load %arg9[%c0_25, %c0_26] : memref<1x64xf32, #tpu.memory_space<vmem>>, vector<1x64xf32>
    %32 = vector.broadcast %31 : vector<1x64xf32> to vector<2x64xf32>
    %33 = arith.addf %30, %32 : vector<2x64xf32>
    %cst_27 = arith.constant dense<0.000000e+00> : vector<2xf32>
    %34 = vector.multi_reduction <add>, %33, %cst_27 [1] : vector<2x64xf32> to vector<2xf32>
    %35 = vector.shape_cast %34 : vector<2xf32> to vector<2x1xf32>
    %cst_28 = arith.constant 6.400000e+01 : f32
    %36 = vector.broadcast %cst_28 : f32 to vector<2x1xf32>
    %37 = arith.divf %35, %36 : vector<2x1xf32>
    %38 = vector.broadcast %37 : vector<2x1xf32> to vector<2x64xf32>
    %39 = arith.subf %33, %38 : vector<2x64xf32>
    %40 = arith.mulf %39, %39 : vector<2x64xf32>
    %cst_29 = arith.constant dense<0.000000e+00> : vector<2xf32>
    %41 = vector.multi_reduction <add>, %40, %cst_29 [1] : vector<2x64xf32> to vector<2xf32>
    %42 = vector.shape_cast %41 : vector<2xf32> to vector<2x1xf32>
    %cst_30 = arith.constant 6.400000e+01 : f32
    %43 = vector.broadcast %cst_30 : f32 to vector<2x1xf32>
    %44 = arith.divf %42, %43 : vector<2x1xf32>
    %cst_31 = arith.constant 9.99999974E-6 : f32
    %45 = vector.broadcast %cst_31 : f32 to vector<2x1xf32>
    %46 = arith.addf %44, %45 : vector<2x1xf32>
    %47 = math.rsqrt %46 : vector<2x1xf32>
    %48 = vector.broadcast %47 : vector<2x1xf32> to vector<2x64xf32>
    %49 = arith.mulf %39, %48 : vector<2x64xf32>
    %c0_32 = arith.constant 0 : index
    %c0_33 = arith.constant 0 : index
    %50 = vector.load %arg10[%c0_32, %c0_33] : memref<1x64xf32, #tpu.memory_space<vmem>>, vector<1x64xf32>
    %51 = vector.broadcast %50 : vector<1x64xf32> to vector<2x64xf32>
    %52 = arith.mulf %49, %51 : vector<2x64xf32>
    %c0_34 = arith.constant 0 : index
    %c0_35 = arith.constant 0 : index
    %53 = vector.load %arg11[%c0_34, %c0_35] : memref<1x64xf32, #tpu.memory_space<vmem>>, vector<1x64xf32>
    %54 = vector.broadcast %53 : vector<1x64xf32> to vector<2x64xf32>
    %55 = arith.addf %52, %54 : vector<2x64xf32>
    %56 = math.tanh %55 : vector<2x64xf32>
    %c0_36 = arith.constant 0 : index
    %c0_37 = arith.constant 0 : index
    %57 = vector.load %arg12[%c0_36, %c0_37] : memref<64x24xf32, #tpu.memory_space<vmem>>, vector<64x24xf32>
    %cst_38 = arith.constant dense<0.000000e+00> : vector<2x24xf32>
    %58 = tpu.matmul %56, %57, %cst_38 {dimension_numbers = #tpu.dot_dimension_numbers<[1], [0], [0], [1], [0, 0, 1, 1], [], []>} : vector<2x64xf32>, vector<64x24xf32>, vector<2x24xf32> -> vector<2x24xf32>
    %c0_39 = arith.constant 0 : index
    %c0_40 = arith.constant 0 : index
    %59 = vector.load %arg13[%c0_39, %c0_40] : memref<1x24xf32, #tpu.memory_space<vmem>>, vector<1x24xf32>
    %60 = vector.broadcast %59 : vector<1x24xf32> to vector<2x24xf32>
    %61 = arith.addf %58, %60 : vector<2x24xf32>
    %cst_41 = arith.constant dense<0.000000e+00> : vector<2xf32>
    %62 = vector.multi_reduction <add>, %61, %cst_41 [1] : vector<2x24xf32> to vector<2xf32>
    %63 = vector.shape_cast %62 : vector<2xf32> to vector<2x1xf32>
    %cst_42 = arith.constant 2.400000e+01 : f32
    %64 = vector.broadcast %cst_42 : f32 to vector<2x1xf32>
    %65 = arith.divf %63, %64 : vector<2x1xf32>
    %66 = vector.broadcast %65 : vector<2x1xf32> to vector<2x24xf32>
    %67 = arith.subf %61, %66 : vector<2x24xf32>
    %68 = arith.mulf %67, %67 : vector<2x24xf32>
    %cst_43 = arith.constant dense<0.000000e+00> : vector<2xf32>
    %69 = vector.multi_reduction <add>, %68, %cst_43 [1] : vector<2x24xf32> to vector<2xf32>
    %70 = vector.shape_cast %69 : vector<2xf32> to vector<2x1xf32>
    %cst_44 = arith.constant 2.400000e+01 : f32
    %71 = vector.broadcast %cst_44 : f32 to vector<2x1xf32>
    %72 = arith.divf %70, %71 : vector<2x1xf32>
    %cst_45 = arith.constant 9.99999974E-6 : f32
    %73 = vector.broadcast %cst_45 : f32 to vector<2x1xf32>
    %74 = arith.addf %72, %73 : vector<2x1xf32>
    %75 = math.rsqrt %74 : vector<2x1xf32>
    %76 = vector.broadcast %75 : vector<2x1xf32> to vector<2x24xf32>
    %77 = arith.mulf %67, %76 : vector<2x24xf32>
    %c0_46 = arith.constant 0 : index
    %c0_47 = arith.constant 0 : index
    %78 = vector.load %arg14[%c0_46, %c0_47] : memref<1x24xf32, #tpu.memory_space<vmem>>, vector<1x24xf32>
    %79 = vector.broadcast %78 : vector<1x24xf32> to vector<2x24xf32>
    %80 = arith.mulf %77, %79 : vector<2x24xf32>
    %c0_48 = arith.constant 0 : index
    %c0_49 = arith.constant 0 : index
    %81 = vector.load %arg15[%c0_48, %c0_49] : memref<1x24xf32, #tpu.memory_space<vmem>>, vector<1x24xf32>
    %82 = vector.broadcast %81 : vector<1x24xf32> to vector<2x24xf32>
    %83 = arith.addf %80, %82 : vector<2x24xf32>
    %84 = math.tanh %83 : vector<2x24xf32>
    %c0_50 = arith.constant 0 : index
    %c0_51 = arith.constant 0 : index
    %85 = vector.load %arg16[%c0_50, %c0_51] : memref<6x8xf32, #tpu.memory_space<vmem>>, vector<6x8xf32>
    %cst_52 = arith.constant dense<0.000000e+00> : vector<2x8xf32>
    %86 = tpu.matmul %2, %85, %cst_52 {dimension_numbers = #tpu.dot_dimension_numbers<[1], [0], [0], [1], [0, 0, 1, 1], [], []>} : vector<2x6xf32>, vector<6x8xf32>, vector<2x8xf32> -> vector<2x8xf32>
    %c0_53 = arith.constant 0 : index
    %c0_54 = arith.constant 0 : index
    %87 = vector.load %arg17[%c0_53, %c0_54] : memref<1x8xf32, #tpu.memory_space<vmem>>, vector<1x8xf32>
    %88 = vector.broadcast %87 : vector<1x8xf32> to vector<2x8xf32>
    %89 = arith.addf %86, %88 : vector<2x8xf32>
    %cst_55 = arith.constant dense<0.000000e+00> : vector<2xf32>
    %90 = vector.multi_reduction <add>, %89, %cst_55 [1] : vector<2x8xf32> to vector<2xf32>
    %91 = vector.shape_cast %90 : vector<2xf32> to vector<2x1xf32>
    %cst_56 = arith.constant 8.000000e+00 : f32
    %92 = vector.broadcast %cst_56 : f32 to vector<2x1xf32>
    %93 = arith.divf %91, %92 : vector<2x1xf32>
    %94 = vector.broadcast %93 : vector<2x1xf32> to vector<2x8xf32>
    %95 = arith.subf %89, %94 : vector<2x8xf32>
    %96 = arith.mulf %95, %95 : vector<2x8xf32>
    %cst_57 = arith.constant dense<0.000000e+00> : vector<2xf32>
    %97 = vector.multi_reduction <add>, %96, %cst_57 [1] : vector<2x8xf32> to vector<2xf32>
    %98 = vector.shape_cast %97 : vector<2xf32> to vector<2x1xf32>
    %cst_58 = arith.constant 8.000000e+00 : f32
    %99 = vector.broadcast %cst_58 : f32 to vector<2x1xf32>
    %100 = arith.divf %98, %99 : vector<2x1xf32>
    %cst_59 = arith.constant 9.99999974E-6 : f32
    %101 = vector.broadcast %cst_59 : f32 to vector<2x1xf32>
    %102 = arith.addf %100, %101 : vector<2x1xf32>
    %103 = math.rsqrt %102 : vector<2x1xf32>
    %104 = vector.broadcast %103 : vector<2x1xf32> to vector<2x8xf32>
    %105 = arith.mulf %95, %104 : vector<2x8xf32>
    %c0_60 = arith.constant 0 : index
    %c0_61 = arith.constant 0 : index
    %106 = vector.load %arg18[%c0_60, %c0_61] : memref<1x8xf32, #tpu.memory_space<vmem>>, vector<1x8xf32>
    %107 = vector.broadcast %106 : vector<1x8xf32> to vector<2x8xf32>
    %108 = arith.mulf %105, %107 : vector<2x8xf32>
    %c0_62 = arith.constant 0 : index
    %c0_63 = arith.constant 0 : index
    %109 = vector.load %arg19[%c0_62, %c0_63] : memref<1x8xf32, #tpu.memory_space<vmem>>, vector<1x8xf32>
    %110 = vector.broadcast %109 : vector<1x8xf32> to vector<2x8xf32>
    %111 = arith.addf %108, %110 : vector<2x8xf32>
    %cst_64 = arith.constant 0.000000e+00 : f32
    %112 = vector.broadcast %cst_64 : f32 to vector<2x8xf32>
    %113 = arith.cmpf ogt, %111, %112 : vector<2x8xf32>
    %cst_65 = arith.constant 1.000000e-01 : f32
    %114 = vector.broadcast %cst_65 : f32 to vector<2x8xf32>
    %115 = arith.mulf %114, %111 : vector<2x8xf32>
    %116 = arith.select %113, %111, %115 : vector<2x8xi1>, vector<2x8xf32>
    %c0_66 = arith.constant 0 : index
    %c0_67 = arith.constant 0 : index
    %117 = vector.load %arg20[%c0_66, %c0_67] : memref<8x24xf32, #tpu.memory_space<vmem>>, vector<8x24xf32>
    %cst_68 = arith.constant dense<0.000000e+00> : vector<2x24xf32>
    %118 = tpu.matmul %116, %117, %cst_68 {dimension_numbers = #tpu.dot_dimension_numbers<[1], [0], [0], [1], [0, 0, 1, 1], [], []>} : vector<2x8xf32>, vector<8x24xf32>, vector<2x24xf32> -> vector<2x24xf32>
    %c0_69 = arith.constant 0 : index
    %c0_70 = arith.constant 0 : index
    %119 = vector.load %arg21[%c0_69, %c0_70] : memref<1x24xf32, #tpu.memory_space<vmem>>, vector<1x24xf32>
    %120 = vector.broadcast %119 : vector<1x24xf32> to vector<2x24xf32>
    %121 = arith.addf %118, %120 : vector<2x24xf32>
    %cst_71 = arith.constant 0.000000e+00 : f32
    %122 = vector.broadcast %cst_71 : f32 to vector<2x24xf32>
    %123 = arith.cmpf ogt, %121, %122 : vector<2x24xf32>
    %cst_72 = arith.constant 1.000000e-01 : f32
    %124 = vector.broadcast %cst_72 : f32 to vector<2x24xf32>
    %125 = arith.mulf %124, %121 : vector<2x24xf32>
    %126 = arith.select %123, %121, %125 : vector<2x24xi1>, vector<2x24xf32>
    %c0_73 = arith.constant 0 : index
    %c0_74 = arith.constant 0 : index
    %127 = vector.load %arg22[%c0_73, %c0_74] : memref<2x8xf32, #tpu.memory_space<vmem>>, vector<2x8xf32>
    %cst_75 = arith.constant dense<0.000000e+00> : vector<2x8xf32>
    %128 = tpu.matmul %3, %127, %cst_75 {dimension_numbers = #tpu.dot_dimension_numbers<[1], [0], [0], [1], [0, 0, 1, 1], [], []>} : vector<2x2xf32>, vector<2x8xf32>, vector<2x8xf32> -> vector<2x8xf32>
    %c0_76 = arith.constant 0 : index
    %c0_77 = arith.constant 0 : index
    %129 = vector.load %arg23[%c0_76, %c0_77] : memref<1x8xf32, #tpu.memory_space<vmem>>, vector<1x8xf32>
    %130 = vector.broadcast %129 : vector<1x8xf32> to vector<2x8xf32>
    %131 = arith.addf %128, %130 : vector<2x8xf32>
    %cst_78 = arith.constant dense<0.000000e+00> : vector<2xf32>
    %132 = vector.multi_reduction <add>, %131, %cst_78 [1] : vector<2x8xf32> to vector<2xf32>
    %133 = vector.shape_cast %132 : vector<2xf32> to vector<2x1xf32>
    %cst_79 = arith.constant 8.000000e+00 : f32
    %134 = vector.broadcast %cst_79 : f32 to vector<2x1xf32>
    %135 = arith.divf %133, %134 : vector<2x1xf32>
    %136 = vector.broadcast %135 : vector<2x1xf32> to vector<2x8xf32>
    %137 = arith.subf %131, %136 : vector<2x8xf32>
    %138 = arith.mulf %137, %137 : vector<2x8xf32>
    %cst_80 = arith.constant dense<0.000000e+00> : vector<2xf32>
    %139 = vector.multi_reduction <add>, %138, %cst_80 [1] : vector<2x8xf32> to vector<2xf32>
    %140 = vector.shape_cast %139 : vector<2xf32> to vector<2x1xf32>
    %cst_81 = arith.constant 8.000000e+00 : f32
    %141 = vector.broadcast %cst_81 : f32 to vector<2x1xf32>
    %142 = arith.divf %140, %141 : vector<2x1xf32>
    %cst_82 = arith.constant 9.99999974E-6 : f32
    %143 = vector.broadcast %cst_82 : f32 to vector<2x1xf32>
    %144 = arith.addf %142, %143 : vector<2x1xf32>
    %145 = math.rsqrt %144 : vector<2x1xf32>
    %146 = vector.broadcast %145 : vector<2x1xf32> to vector<2x8xf32>
    %147 = arith.mulf %137, %146 : vector<2x8xf32>
    %c0_83 = arith.constant 0 : index
    %c0_84 = arith.constant 0 : index
    %148 = vector.load %arg24[%c0_83, %c0_84] : memref<1x8xf32, #tpu.memory_space<vmem>>, vector<1x8xf32>
    %149 = vector.broadcast %148 : vector<1x8xf32> to vector<2x8xf32>
    %150 = arith.mulf %147, %149 : vector<2x8xf32>
    %c0_85 = arith.constant 0 : index
    %c0_86 = arith.constant 0 : index
    %151 = vector.load %arg25[%c0_85, %c0_86] : memref<1x8xf32, #tpu.memory_space<vmem>>, vector<1x8xf32>
    %152 = vector.broadcast %151 : vector<1x8xf32> to vector<2x8xf32>
    %153 = arith.addf %150, %152 : vector<2x8xf32>
    %cst_87 = arith.constant 0.000000e+00 : f32
    %154 = vector.broadcast %cst_87 : f32 to vector<2x8xf32>
    %155 = arith.cmpf ogt, %153, %154 : vector<2x8xf32>
    %cst_88 = arith.constant 1.000000e-01 : f32
    %156 = vector.broadcast %cst_88 : f32 to vector<2x8xf32>
    %157 = arith.mulf %156, %153 : vector<2x8xf32>
    %158 = arith.select %155, %153, %157 : vector<2x8xi1>, vector<2x8xf32>
    %c0_89 = arith.constant 0 : index
    %c0_90 = arith.constant 0 : index
    %159 = vector.load %arg26[%c0_89, %c0_90] : memref<8x24xf32, #tpu.memory_space<vmem>>, vector<8x24xf32>
    %cst_91 = arith.constant dense<0.000000e+00> : vector<2x24xf32>
    %160 = tpu.matmul %158, %159, %cst_91 {dimension_numbers = #tpu.dot_dimension_numbers<[1], [0], [0], [1], [0, 0, 1, 1], [], []>} : vector<2x8xf32>, vector<8x24xf32>, vector<2x24xf32> -> vector<2x24xf32>
    %c0_92 = arith.constant 0 : index
    %c0_93 = arith.constant 0 : index
    %161 = vector.load %arg27[%c0_92, %c0_93] : memref<1x24xf32, #tpu.memory_space<vmem>>, vector<1x24xf32>
    %162 = vector.broadcast %161 : vector<1x24xf32> to vector<2x24xf32>
    %163 = arith.addf %160, %162 : vector<2x24xf32>
    %cst_94 = arith.constant 0.000000e+00 : f32
    %164 = vector.broadcast %cst_94 : f32 to vector<2x24xf32>
    %165 = arith.cmpf ogt, %163, %164 : vector<2x24xf32>
    %cst_95 = arith.constant 1.000000e-01 : f32
    %166 = vector.broadcast %cst_95 : f32 to vector<2x24xf32>
    %167 = arith.mulf %166, %163 : vector<2x24xf32>
    %168 = arith.select %165, %163, %167 : vector<2x24xi1>, vector<2x24xf32>
    %c0_96 = arith.constant 0 : index
    %c0_97 = arith.constant 0 : index
    %169 = vector.load %arg28[%c0_96, %c0_97] : memref<72x12xf32, #tpu.memory_space<vmem>>, vector<24x12xf32>
    %cst_98 = arith.constant dense<0.000000e+00> : vector<2x12xf32>
    %170 = tpu.matmul %126, %169, %cst_98 {dimension_numbers = #tpu.dot_dimension_numbers<[1], [0], [0], [1], [0, 0, 1, 1], [], []>} : vector<2x24xf32>, vector<24x12xf32>, vector<2x12xf32> -> vector<2x12xf32>
    %c24 = arith.constant 24 : index
    %c0_99 = arith.constant 0 : index
    %171 = vector.load %arg28[%c24, %c0_99] : memref<72x12xf32, #tpu.memory_space<vmem>>, vector<24x12xf32>
    %cst_100 = arith.constant dense<0.000000e+00> : vector<2x12xf32>
    %172 = tpu.matmul %168, %171, %cst_100 {dimension_numbers = #tpu.dot_dimension_numbers<[1], [0], [0], [1], [0, 0, 1, 1], [], []>} : vector<2x24xf32>, vector<24x12xf32>, vector<2x12xf32> -> vector<2x12xf32>
    %173 = arith.addf %170, %172 : vector<2x12xf32>
    %c48 = arith.constant 48 : index
    %c0_101 = arith.constant 0 : index
    %174 = vector.load %arg28[%c48, %c0_101] : memref<72x12xf32, #tpu.memory_space<vmem>>, vector<24x12xf32>
    %cst_102 = arith.constant dense<0.000000e+00> : vector<2x12xf32>
    %175 = tpu.matmul %84, %174, %cst_102 {dimension_numbers = #tpu.dot_dimension_numbers<[1], [0], [0], [1], [0, 0, 1, 1], [], []>} : vector<2x24xf32>, vector<24x12xf32>, vector<2x12xf32> -> vector<2x12xf32>
    %176 = arith.addf %173, %175 : vector<2x12xf32>
    %c0_103 = arith.constant 0 : index
    %c0_104 = arith.constant 0 : index
    %177 = vector.load %arg29[%c0_103, %c0_104] : memref<1x12xf32, #tpu.memory_space<vmem>>, vector<1x12xf32>
    %178 = vector.broadcast %177 : vector<1x12xf32> to vector<2x12xf32>
    %179 = arith.addf %176, %178 : vector<2x12xf32>
    %cst_105 = arith.constant 0.000000e+00 : f32
    %180 = vector.broadcast %cst_105 : f32 to vector<2x12xf32>
    %181 = arith.cmpf ogt, %179, %180 : vector<2x12xf32>
    %cst_106 = arith.constant 1.000000e-01 : f32
    %182 = vector.broadcast %cst_106 : f32 to vector<2x12xf32>
    %183 = arith.mulf %182, %179 : vector<2x12xf32>
    %184 = arith.select %181, %179, %183 : vector<2x12xi1>, vector<2x12xf32>
    %c0_107 = arith.constant 0 : index
    %c0_108 = arith.constant 0 : index
    %185 = vector.load %arg30[%c0_107, %c0_108] : memref<12x6xf32, #tpu.memory_space<vmem>>, vector<12x6xf32>
    %cst_109 = arith.constant dense<0.000000e+00> : vector<2x6xf32>
    %186 = tpu.matmul %184, %185, %cst_109 {dimension_numbers = #tpu.dot_dimension_numbers<[1], [0], [0], [1], [0, 0, 1, 1], [], []>} : vector<2x12xf32>, vector<12x6xf32>, vector<2x6xf32> -> vector<2x6xf32>
    %c0_110 = arith.constant 0 : index
    %c0_111 = arith.constant 0 : index
    %187 = vector.load %arg31[%c0_110, %c0_111] : memref<1x6xf32, #tpu.memory_space<vmem>>, vector<1x6xf32>
    %188 = vector.broadcast %187 : vector<1x6xf32> to vector<2x6xf32>
    %189 = arith.addf %186, %188 : vector<2x6xf32>
    %c0_112 = arith.constant 0 : index
    %c0_113 = arith.constant 0 : index
    %190 = vector.load %arg32[%c0_112, %c0_113] : memref<2x6xf32, #tpu.memory_space<vmem>>, vector<2x6xf32>
    tpu.vector_store %arg32[%c0_112, %c0_113], %189 {strides = array<i32>} : memref<2x6xf32, #tpu.memory_space<vmem>>, vector<2x6xf32>,
    return
  }
}

</mosaic_0001>

<llo_original>
// kernel: _lambda_.1
$region0: #{_lambda_.1}
  #allocation0 [shape = 'u32[]', space=smem, size = 0x4, offset = 0x4, fixed_abs, tag = 'smem constant byte address 0x4 - core index']
  #allocation1 [shape = 'u32[72,128]{1,0:T(1,128)}', space=vmem, size = 0x9000, scoped, tag = 'internal scratch']
  %s0 = inlined_call_operand.smem [shape: u32[33], index: -1, kind: input, shape index: {}]
  %s1 = sld [smem:[%s0]]
  %s2 = scalar_lea.smem %s0, 1
  %s3 = sld [smem:[%s2]]
  %s4 = scalar_lea.smem %s0, 2
  %s5 = sld [smem:[%s4]]
  %s6 = scalar_lea.smem %s0, 3
  %s7 = sld [smem:[%s6]]
  %s8 = scalar_lea.smem %s0, 4
  %s9 = sld [smem:[%s8]]
  %s10 = scalar_lea.smem %s0, 5
  %s11 = sld [smem:[%s10]]
  %s12 = scalar_lea.smem %s0, 6
  %s13 = sld [smem:[%s12]]
  %s14 = scalar_lea.smem %s0, 7
  %s15 = sld [smem:[%s14]]
  %s16 = scalar_lea.smem %s0, 8
  %s17 = sld [smem:[%s16]]
  %s18 = scalar_lea.smem %s0, 9
  %s19 = sld [smem:[%s18]]
  %s20 = scalar_lea.smem %s0, 10
  %s21 = sld [smem:[%s20]]
  %s22 = scalar_lea.smem %s0, 11
  %s23 = sld [smem:[%s22]]
  %s24 = scalar_lea.smem %s0, 12
  %s25 = sld [smem:[%s24]]
  %s26 = scalar_lea.smem %s0, 13
  %s27 = sld [smem:[%s26]]
  %s28 = scalar_lea.smem %s0, 14
  %s29 = sld [smem:[%s28]]
  %s30 = scalar_lea.smem %s0, 15
  %s31 = sld [smem:[%s30]]
  %s32 = scalar_lea.smem %s0, 16
  %s33 = sld [smem:[%s32]]
  %s34 = scalar_lea.smem %s0, 17
  %s35 = sld [smem:[%s34]]
  %s36 = scalar_lea.smem %s0, 18
  %s37 = sld [smem:[%s36]]
  %s38 = scalar_lea.smem %s0, 19
  %s39 = sld [smem:[%s38]]
  %s40 = scalar_lea.smem %s0, 20
  %s41 = sld [smem:[%s40]]
  %s42 = scalar_lea.smem %s0, 21
  %s43 = sld [smem:[%s42]]
  %s44 = scalar_lea.smem %s0, 22
  %s45 = sld [smem:[%s44]]
  %s46 = scalar_lea.smem %s0, 23
  %s47 = sld [smem:[%s46]]
  %s48 = scalar_lea.smem %s0, 24
  %s49 = sld [smem:[%s48]]
  %s50 = scalar_lea.smem %s0, 25
  %s51 = sld [smem:[%s50]]
  %s52 = scalar_lea.smem %s0, 26
  %s53 = sld [smem:[%s52]]
  %s54 = scalar_lea.smem %s0, 27
  %s55 = sld [smem:[%s54]]
  %s56 = scalar_lea.smem %s0, 28
  %s57 = sld [smem:[%s56]]
  %s58 = scalar_lea.smem %s0, 29
  %s59 = sld [smem:[%s58]]
  %s60 = scalar_lea.smem %s0, 30
  %s61 = sld [smem:[%s60]]
  %s62 = scalar_lea.smem %s0, 31
  %s63 = sld [smem:[%s62]]
  %s64 = scalar_lea.smem %s0, 32
  %s65 = sld [smem:[%s64]]
  %s66 = sld [smem:[#allocation0]]
  $region138: #{_lambda_.1} parent=0
    _
  %s68 = ssub.s32 1, %s66
  %s69 = scalar_select 0, %s68, %s66
  $region1: #{_lambda_.1} parent=0
    #allocation2 [shape = 'u8[1024]{0}', space=vmem, size = 0x400, scoped, tag = 'output window, operand 0, single buffered']
    #allocation3 [shape = 's32[1]{0}', space=sflag, size = 0x4, scoped, tag = 'scoped memory for _lambda_.1']
    %70 = vsyncpa [#allocation3], 0
    // Predicated region
    $region2: #{_lambda_.1} parent=1 // pred_check
      _
    $region3: #{_lambda_.1} parent=1 // pred_check_branch
      %72 = sbr.rel (0) target = $region5
    $region4: #{_lambda_.1} parent=1 // pred_region
      _
    $region5: #{_lambda_.1} parent=1 // pred_fallthru
      _
    // Predicated region
    $region6: #{_lambda_.1} parent=1 // pred_check
      _
    $region7: #{_lambda_.1} parent=1 // pred_check_branch
      %74 = sbr.rel (0) target = $region9
    $region8: #{_lambda_.1} parent=1 // pred_region
      _
    $region9: #{_lambda_.1} parent=1 // pred_fallthru
      _
    // Predicated region
    $region10: #{_lambda_.1} parent=1 // pred_check
      _
    $region11: #{_lambda_.1} parent=1 // pred_check_branch
      %76 = sbr.rel (0) target = $region13
    $region12: #{_lambda_.1} parent=1 // pred_region
      _
    $region13: #{_lambda_.1} parent=1 // pred_fallthru
      _
    // Predicated region
    $region14: #{_lambda_.1} parent=1 // pred_check
      _
    $region15: #{_lambda_.1} parent=1 // pred_check_branch
      %78 = sbr.rel (0) target = $region17
    $region16: #{_lambda_.1} parent=1 // pred_region
      _
    $region17: #{_lambda_.1} parent=1 // pred_fallthru
      _
    // Predicated region
    $region18: #{_lambda_.1} parent=1 // pred_check
      _
    $region19: #{_lambda_.1} parent=1 // pred_check_branch
      %80 = sbr.rel (0) target = $region21
    $region20: #{_lambda_.1} parent=1 // pred_region
      _
    $region21: #{_lambda_.1} parent=1 // pred_fallthru
      _
    // Predicated region
    $region22: #{_lambda_.1} parent=1 // pred_check
      _
    $region23: #{_lambda_.1} parent=1 // pred_check_branch
      %82 = sbr.rel (0) target = $region25
    $region24: #{_lambda_.1} parent=1 // pred_region
      _
    $region25: #{_lambda_.1} parent=1 // pred_fallthru
      _
    // Predicated region
    $region26: #{_lambda_.1} parent=1 // pred_check
      _
    $region27: #{_lambda_.1} parent=1 // pred_check_branch
      %84 = sbr.rel (0) target = $region29
    $region28: #{_lambda_.1} parent=1 // pred_region
      _
    $region29: #{_lambda_.1} parent=1 // pred_fallthru
      _
    // Predicated region
    $region30: #{_lambda_.1} parent=1 // pred_check
      _
    $region31: #{_lambda_.1} parent=1 // pred_check_branch
      %86 = sbr.rel (0) target = $region33
    $region32: #{_lambda_.1} parent=1 // pred_region
      _
    $region33: #{_lambda_.1} parent=1 // pred_fallthru
      _
    // Predicated region
    $region34: #{_lambda_.1} parent=1 // pred_check
      _
    $region35: #{_lambda_.1} parent=1 // pred_check_branch
      %88 = sbr.rel (0) target = $region37
    $region36: #{_lambda_.1} parent=1 // pred_region
      _
    $region37: #{_lambda_.1} parent=1 // pred_fallthru
      _
    // Predicated region
    $region38: #{_lambda_.1} parent=1 // pred_check
      _
    $region39: #{_lambda_.1} parent=1 // pred_check_branch
      %90 = sbr.rel (0) target = $region41
    $region40: #{_lambda_.1} parent=1 // pred_region
      _
    $region41: #{_lambda_.1} parent=1 // pred_fallthru
      _
    // Predicated region
    $region42: #{_lambda_.1} parent=1 // pred_check
      _
    $region43: #{_lambda_.1} parent=1 // pred_check_branch
      %92 = sbr.rel (0) target = $region45
    $region44: #{_lambda_.1} parent=1 // pred_region
      _
    $region45: #{_lambda_.1} parent=1 // pred_fallthru
      _
    // Predicated region
    $region46: #{_lambda_.1} parent=1 // pred_check
      _
    $region47: #{_lambda_.1} parent=1 // pred_check_branch
      %94 = sbr.rel (0) target = $region49
    $region48: #{_lambda_.1} parent=1 // pred_region
      _
    $region49: #{_lambda_.1} parent=1 // pred_fallthru
      _
    // Predicated region
    $region50: #{_lambda_.1} parent=1 // pred_check
      _
    $region51: #{_lambda_.1} parent=1 // pred_check_branch
      %96 = sbr.rel (0) target = $region53
    $region52: #{_lambda_.1} parent=1 // pred_region
      _
    $region53: #{_lambda_.1} parent=1 // pred_fallthru
      _
    // Predicated region
    $region54: #{_lambda_.1} parent=1 // pred_check
      _
    $region55: #{_lambda_.1} parent=1 // pred_check_branch
      %98 = sbr.rel (0) target = $region57
    $region56: #{_lambda_.1} parent=1 // pred_region
      _
    $region57: #{_lambda_.1} parent=1 // pred_fallthru
      _
    // Predicated region
    $region58: #{_lambda_.1} parent=1 // pred_check
      _
    $region59: #{_lambda_.1} parent=1 // pred_check_branch
      %100 = sbr.rel (0) target = $region61
    $region60: #{_lambda_.1} parent=1 // pred_region
      _
    $region61: #{_lambda_.1} parent=1 // pred_fallthru
      _
    // Predicated region
    $region62: #{_lambda_.1} parent=1 // pred_check
      _
    $region63: #{_lambda_.1} parent=1 // pred_check_branch
      %102 = sbr.rel (0) target = $region65
    $region64: #{_lambda_.1} parent=1 // pred_region
      _
    $region65: #{_lambda_.1} parent=1 // pred_fallthru
      _
    // Predicated region
    $region66: #{_lambda_.1} parent=1 // pred_check
      _
    $region67: #{_lambda_.1} parent=1 // pred_check_branch
      %104 = sbr.rel (0) target = $region69
    $region68: #{_lambda_.1} parent=1 // pred_region
      _
    $region69: #{_lambda_.1} parent=1 // pred_fallthru
      _
    // Predicated region
    $region70: #{_lambda_.1} parent=1 // pred_check
      _
    $region71: #{_lambda_.1} parent=1 // pred_check_branch
      %106 = sbr.rel (0) target = $region73
    $region72: #{_lambda_.1} parent=1 // pred_region
      _
    $region73: #{_lambda_.1} parent=1 // pred_fallthru
      _
    // Predicated region
    $region74: #{_lambda_.1} parent=1 // pred_check
      _
    $region75: #{_lambda_.1} parent=1 // pred_check_branch
      %108 = sbr.rel (0) target = $region77
    $region76: #{_lambda_.1} parent=1 // pred_region
      _
    $region77: #{_lambda_.1} parent=1 // pred_fallthru
      _
    // Predicated region
    $region78: #{_lambda_.1} parent=1 // pred_check
      _
    $region79: #{_lambda_.1} parent=1 // pred_check_branch
      %110 = sbr.rel (0) target = $region81
    $region80: #{_lambda_.1} parent=1 // pred_region
      _
    $region81: #{_lambda_.1} parent=1 // pred_fallthru
      _
    // Predicated region
    $region82: #{_lambda_.1} parent=1 // pred_check
      _
    $region83: #{_lambda_.1} parent=1 // pred_check_branch
      %112 = sbr.rel (0) target = $region85
    $region84: #{_lambda_.1} parent=1 // pred_region
      _
    $region85: #{_lambda_.1} parent=1 // pred_fallthru
      _
    // Predicated region
    $region86: #{_lambda_.1} parent=1 // pred_check
      _
    $region87: #{_lambda_.1} parent=1 // pred_check_branch
      %114 = sbr.rel (0) target = $region89
    $region88: #{_lambda_.1} parent=1 // pred_region
      _
    $region89: #{_lambda_.1} parent=1 // pred_fallthru
      _
    // Predicated region
    $region90: #{_lambda_.1} parent=1 // pred_check
      _
    $region91: #{_lambda_.1} parent=1 // pred_check_branch
      %116 = sbr.rel (0) target = $region93
    $region92: #{_lambda_.1} parent=1 // pred_region
      _
    $region93: #{_lambda_.1} parent=1 // pred_fallthru
      _
    // Predicated region
    $region94: #{_lambda_.1} parent=1 // pred_check
      _
    $region95: #{_lambda_.1} parent=1 // pred_check_branch
      %118 = sbr.rel (0) target = $region97
    $region96: #{_lambda_.1} parent=1 // pred_region
      _
    $region97: #{_lambda_.1} parent=1 // pred_fallthru
      _
    // Predicated region
    $region98: #{_lambda_.1} parent=1 // pred_check
      _
    $region99: #{_lambda_.1} parent=1 // pred_check_branch
      %120 = sbr.rel (0) target = $region101
    $region100: #{_lambda_.1} parent=1 // pred_region
      _
    $region101: #{_lambda_.1} parent=1 // pred_fallthru
      _
    // Predicated region
    $region102: #{_lambda_.1} parent=1 // pred_check
      _
    $region103: #{_lambda_.1} parent=1 // pred_check_branch
      %122 = sbr.rel (0) target = $region105
    $region104: #{_lambda_.1} parent=1 // pred_region
      _
    $region105: #{_lambda_.1} parent=1 // pred_fallthru
      _
    // Predicated region
    $region106: #{_lambda_.1} parent=1 // pred_check
      _
    $region107: #{_lambda_.1} parent=1 // pred_check_branch
      %124 = sbr.rel (0) target = $region109
    $region108: #{_lambda_.1} parent=1 // pred_region
      _
    $region109: #{_lambda_.1} parent=1 // pred_fallthru
      _
    // Predicated region
    $region110: #{_lambda_.1} parent=1 // pred_check
      _
    $region111: #{_lambda_.1} parent=1 // pred_check_branch
      %126 = sbr.rel (0) target = $region113
    $region112: #{_lambda_.1} parent=1 // pred_region
      _
    $region113: #{_lambda_.1} parent=1 // pred_fallthru
      _
    // Predicated region
    $region114: #{_lambda_.1} parent=1 // pred_check
      _
    $region115: #{_lambda_.1} parent=1 // pred_check_branch
      %128 = sbr.rel (0) target = $region117
    $region116: #{_lambda_.1} parent=1 // pred_region
      _
    $region117: #{_lambda_.1} parent=1 // pred_fallthru
      _
    // Predicated region
    $region118: #{_lambda_.1} parent=1 // pred_check
      _
    $region119: #{_lambda_.1} parent=1 // pred_check_branch
      %130 = sbr.rel (0) target = $region121
    $region120: #{_lambda_.1} parent=1 // pred_region
      _
    $region121: #{_lambda_.1} parent=1 // pred_fallthru
      _
    // Predicated region
    $region122: #{_lambda_.1} parent=1 // pred_check
      _
    $region123: #{_lambda_.1} parent=1 // pred_check_branch
      %132 = sbr.rel (0) target = $region125
    $region124: #{_lambda_.1} parent=1 // pred_region
      _
    $region125: #{_lambda_.1} parent=1 // pred_fallthru
      _
    // Predicated region
    $region126: #{_lambda_.1} parent=1 // pred_check
      _
    $region127: #{_lambda_.1} parent=1 // pred_check_branch
      %134 = sbr.rel (0) target = $region129
    $region128: #{_lambda_.1} parent=1 // pred_region
      _
    $region129: #{_lambda_.1} parent=1 // pred_fallthru
      _
    %v135 = vld [vmem:[%s1] sm:$0xff]
    %v136 = vld [vmem:[%s1 + $0x8] sm:$0xff]
    %v137 = vld [vmem:[%s1 + $0x10] sm:$0xff]
    %v138 = vld [vmem:[%s1 + $0x18] sm:$0xff]
    %v139 = vld [vmem:[%s1 + $0x20] sm:$0xff]
    %v140 = vld [vmem:[%s1 + $0x28] sm:$0xff]
    %v141 = vld [vmem:[%s1 + $0x30] sm:$0xff]
    %v142 = vld [vmem:[%s1 + $0x38] sm:$0xff]
    %v143 = vld [vmem:[%s1 + $0x40] sm:$0xff]
    %v144 = vld [vmem:[%s3] sm:$0x3]
    %v145 = vld [vmem:[%s5] sm:$0x3]
    %v146 = vld [vmem:[%s7] sm:$0x3]
    %v147 = vld [vmem:[%s9] sm:$0xf]
    %v148 = vld [vmem:[%s11] sm:$0x1]
    %v150 = vperm.slane %v148, 0
    %vm152 = vcmask 31744
    %v154 = vsel %vm152, %v144, 0
    %vm156 = vcmask 1043456
    %v158 = vsel %vm156, %v147, 0
    %160 = vmatpush.msra.mxu0 0.0
    %161 = vmatpush.msra.mxu0 0.0
    %162 = vmatpush.msra.mxu0 0.0
    %163 = vmatpush.msra.mxu0 0.0
    %164 = vmatpush.msra.mxu0 0.0
    %165 = vmatpush.msra.mxu0 0.0
    %166 = vmatpush.msra.mxu0 0.0
    %167 = vmatpush.msra.mxu0 0.0
    %168 = vmatpush.msra.mxu0 0.0
    %169 = vmatpush.msra.mxu0 0.0
    %170 = vmatpush.msra.mxu0 0.0
    %171 = vmatpush.msra.mxu0 0.0
    %172 = vmatpush.msra.mxu0 0.0
    %173 = vmatpush.msra.mxu0 0.0
    %174 = vmatpush.msra.mxu0 0.0
    %175 = vmatpush.msra.mxu0 %v158
    %176 = vmatmul.f32.gmra.mxu0 %v154
    %v177 = vpop.f32.mrf.mxu0
    %v178 = vadd.f32 %v150, %v177
    %179 = vdwg.mxu0
    %v180 = vsub.f32 0.0, %v178
    %v181 = vmul.f32 %v180, 1.442695
    %v182 = vpow.pop %v181
    %v183 = vadd.f32 %v182, 1.0
    %v184 = vrcp.pop %v183
    %v185 = vld [vmem:[%s13] sm:$0xff]
    %v186 = vld [vmem:[%s13 + $0x8] sm:$0xff]
    %v187 = vld [vmem:[%s13 + $0x10] sm:$0xff]
    %v188 = vld [vmem:[%s13 + $0x18] sm:$0xff]
    %v189 = vld [vmem:[%s13 + $0x20] sm:$0xff]
    %v190 = vld [vmem:[%s13 + $0x28] sm:$0xff]
    %v191 = vld [vmem:[%s13 + $0x30] sm:$0xff]
    %v192 = vld [vmem:[%s13 + $0x38] sm:$0xff]
    %v193 = vld [vmem:[%s13 + $0x40] sm:$0xff]
    %v194 = vld [vmem:[%s13 + $0x48] sm:$0xff]
    %v195 = vld [vmem:[%s13 + $0x50] sm:$0xff]
    %v196 = vld [vmem:[%s13 + $0x58] sm:$0xff]
    %v197 = vld [vmem:[%s13 + $0x60] sm:$0xff]
    %v198 = vld [vmem:[%s13 + $0x68] sm:$0xff]
    %v199 = vld [vmem:[%s13 + $0x70] sm:$0xff]
    %v200 = vld [vmem:[%s13 + $0x78] sm:$0xff]
    %v201 = vld [vmem:[%s13 + $0x80] sm:$0xff]
    %v202 = vld [vmem:[%s13 + $0x88] sm:$0xff]
    %v203 = vld [vmem:[%s13 + $0x90] sm:$0xff]
    %v204 = vld [vmem:[%s13 + $0x98] sm:$0xff]
    %v205 = vld [vmem:[%s13 + $0xa0] sm:$0xff]
    %v206 = vld [vmem:[%s13 + $0xa8] sm:$0xff]
    %v207 = vld [vmem:[%s13 + $0xb0] sm:$0xff]
    %v208 = vld [vmem:[%s13 + $0xb8] sm:$0xff]
    %v209 = vld [vmem:[%s13 + $0xc0] sm:$0xff]
    %v210 = vld [vmem:[%s13 + $0xc8] sm:$0xff]
    %v211 = vld [vmem:[%s13 + $0xd0] sm:$0xff]
    %v212 = vld [vmem:[%s13 + $0xd8] sm:$0xff]
    %v213 = vld [vmem:[%s13 + $0xe0] sm:$0xff]
    %v214 = vld [vmem:[%s13 + $0xe8] sm:$0xff]
    %v215 = vld [vmem:[%s13 + $0xf0] sm:$0xff]
    %v216 = vld [vmem:[%s13 + $0xf8] sm:$0xff]
    %v217 = vld [vmem:[%s13 + $0x100] sm:$0xff]
    %v218 = vld [vmem:[%s13 + $0x108] sm:$0xff]
    %v219 = vld [vmem:[%s13 + $0x110] sm:$0xff]
    %v220 = vld [vmem:[%s13 + $0x118] sm:$0xff]
    %v221 = vld [vmem:[%s13 + $0x120] sm:$0xff]
    %v222 = vld [vmem:[%s13 + $0x128] sm:$0xff]
    %v223 = vld [vmem:[%s13 + $0x130] sm:$0xff]
    %v224 = vld [vmem:[%s13 + $0x138] sm:$0xff]
    %v225 = vld [vmem:[%s13 + $0x140] sm:$0xff]
    %v226 = vld [vmem:[%s13 + $0x148] sm:$0xff]
    %v227 = vld [vmem:[%s13 + $0x150] sm:$0xff]
    %v228 = vld [vmem:[%s13 + $0x158] sm:$0xff]
    %v229 = vld [vmem:[%s13 + $0x160] sm:$0xff]
    %v230 = vld [vmem:[%s13 + $0x168] sm:$0xff]
    %v231 = vld [vmem:[%s13 + $0x170] sm:$0xff]
    %v232 = vld [vmem:[%s13 + $0x178] sm:$0xff]
    %v233 = vld [vmem:[%s13 + $0x180] sm:$0xff]
    %v234 = vld [vmem:[%s13 + $0x188] sm:$0xff]
    %v235 = vld [vmem:[%s13 + $0x190] sm:$0xff]
    %v236 = vld [vmem:[%s13 + $0x198] sm:$0xff]
    %v237 = vld [vmem:[%s13 + $0x1a0] sm:$0xff]
    %v238 = vld [vmem:[%s13 + $0x1a8] sm:$0xff]
    %v239 = vld [vmem:[%s13 + $0x1b0] sm:$0xff]
    %v240 = vld [vmem:[%s13 + $0x1b8] sm:$0xff]
    %v241 = vld [vmem:[%s13 + $0x1c0] sm:$0xff]
    %v242 = vld [vmem:[%s13 + $0x1c8] sm:$0xff]
    %v243 = vld [vmem:[%s13 + $0x1d0] sm:$0xff]
    %v244 = vld [vmem:[%s13 + $0x1d8] sm:$0xff]
    %v245 = vld [vmem:[%s13 + $0x1e0] sm:$0xff]
    %v246 = vld [vmem:[%s13 + $0x1e8] sm:$0xff]
    %v247 = vld [vmem:[%s13 + $0x1f0] sm:$0xff]
    %v248 = vld [vmem:[%s13 + $0x1f8] sm:$0xff]
    %v249 = vld [vmem:[%s13 + $0x200] sm:$0xff]
    %v250 = vld [vmem:[%s13 + $0x208] sm:$0xff]
    %v251 = vld [vmem:[%s13 + $0x210] sm:$0xff]
    %v252 = vld [vmem:[%s13 + $0x218] sm:$0xff]
    %v253 = vld [vmem:[%s13 + $0x220] sm:$0xff]
    %v254 = vld [vmem:[%s13 + $0x228] sm:$0xff]
    %v255 = vld [vmem:[%s13 + $0x230] sm:$0xff]
    %v256 = vld [vmem:[%s13 + $0x238] sm:$0xff]
    %v257 = vld [vmem:[%s13 + $0x240] sm:$0xff]
    %v258 = vld [vmem:[%s13 + $0x248] sm:$0xff]
    %v259 = vld [vmem:[%s13 + $0x250] sm:$0xff]
    %v260 = vld [vmem:[%s13 + $0x258] sm:$0xff]
    %v261 = vld [vmem:[%s13 + $0x260] sm:$0xff]
    %v262 = vld [vmem:[%s13 + $0x268] sm:$0xff]
    %v263 = vld [vmem:[%s13 + $0x270] sm:$0xff]
    %v264 = vld [vmem:[%s13 + $0x278] sm:$0xff]
    %v265 = vld [vmem:[%s13 + $0x280] sm:$0xff]
    %v266 = vld [vmem:[%s13 + $0x288] sm:$0xff]
    %v267 = vld [vmem:[%s13 + $0x290] sm:$0xff]
    %v268 = vld [vmem:[%s13 + $0x298] sm:$0xff]
    %v269 = vld [vmem:[%s13 + $0x2a0] sm:$0xff]
    %v270 = vld [vmem:[%s13 + $0x2a8] sm:$0xff]
    %v271 = vld [vmem:[%s13 + $0x2b0] sm:$0xff]
    %v272 = vld [vmem:[%s13 + $0x2b8] sm:$0xff]
    %v273 = vld [vmem:[%s13 + $0x2c0] sm:$0xff]
    %v274 = vld [vmem:[%s13 + $0x2c8] sm:$0xff]
    %v275 = vld [vmem:[%s13 + $0x2d0] sm:$0xff]
    %v276 = vld [vmem:[%s13 + $0x2d8] sm:$0xff]
    %v277 = vld [vmem:[%s13 + $0x2e0] sm:$0xff]
    %v278 = vld [vmem:[%s13 + $0x2e8] sm:$0xff]
    %v279 = vld [vmem:[%s13 + $0x2f0] sm:$0xff]
    %v280 = vld [vmem:[%s13 + $0x2f8] sm:$0xff]
    %v281 = vld [vmem:[%s13 + $0x300] sm:$0xff]
    %v282 = vld [vmem:[%s13 + $0x308] sm:$0xff]
    %v283 = vld [vmem:[%s13 + $0x310] sm:$0xff]
    %v284 = vld [vmem:[%s13 + $0x318] sm:$0xff]
    %v285 = vld [vmem:[%s13 + $0x320] sm:$0xff]
    %v286 = vld [vmem:[%s13 + $0x328] sm:$0xff]
    %v287 = vld [vmem:[%s13 + $0x330] sm:$0xff]
    %v288 = vld [vmem:[%s13 + $0x338] sm:$0xff]
    %v289 = vld [vmem:[%s13 + $0x340] sm:$0xff]
    %v290 = vld [vmem:[%s13 + $0x348] sm:$0xff]
    %v291 = vld [vmem:[%s13 + $0x350] sm:$0xff]
    %v292 = vld [vmem:[%s13 + $0x358] sm:$0xff]
    %v293 = vld [vmem:[%s13 + $0x360] sm:$0xff]
    %v294 = vld [vmem:[%s13 + $0x368] sm:$0xff]
    %v295 = vld [vmem:[%s13 + $0x370] sm:$0xff]
    %v296 = vld [vmem:[%s13 + $0x378] sm:$0xff]
    %v297 = vld [vmem:[%s13 + $0x380] sm:$0xff]
    %v298 = vld [vmem:[%s13 + $0x388] sm:$0xff]
    %v299 = vld [vmem:[%s13 + $0x390] sm:$0xff]
    %v300 = vld [vmem:[%s13 + $0x398] sm:$0xff]
    %v301 = vld [vmem:[%s13 + $0x3a0] sm:$0xff]
    %v302 = vld [vmem:[%s13 + $0x3a8] sm:$0xff]
    %v303 = vld [vmem:[%s13 + $0x3b0] sm:$0xff]
    %v304 = vld [vmem:[%s13 + $0x3b8] sm:$0xff]
    %v305 = vld [vmem:[%s13 + $0x3c0] sm:$0xff]
    %v306 = vld [vmem:[%s13 + $0x3c8] sm:$0xff]
    %v307 = vld [vmem:[%s13 + $0x3d0] sm:$0xff]
    %v308 = vld [vmem:[%s13 + $0x3d8] sm:$0xff]
    %v309 = vld [vmem:[%s13 + $0x3e0] sm:$0xff]
    %v310 = vld [vmem:[%s13 + $0x3e8] sm:$0xff]
    %v311 = vld [vmem:[%s13 + $0x3f0] sm:$0xff]
    %v312 = vld [vmem:[%s13 + $0x3f8] sm:$0xff]
    %v313 = vld [vmem:[%s13 + $0x400] sm:$0xff]
    %v314 = vld [vmem:[%s13 + $0x408] sm:$0xff]
    %v315 = vld [vmem:[%s13 + $0x410] sm:$0xff]
    %v316 = vld [vmem:[%s13 + $0x418] sm:$0xff]
    %v317 = vld [vmem:[%s13 + $0x420] sm:$0xff]
    %v318 = vld [vmem:[%s13 + $0x428] sm:$0xff]
    %v319 = vld [vmem:[%s13 + $0x430] sm:$0xff]
    %v320 = vld [vmem:[%s13 + $0x438] sm:$0xff]
    %v321 = vld [vmem:[%s13 + $0x440] sm:$0xff]
    %v322 = vld [vmem:[%s13 + $0x448] sm:$0xff]
    %v323 = vld [vmem:[%s13 + $0x450] sm:$0xff]
    %v324 = vld [vmem:[%s13 + $0x458] sm:$0xff]
    %v325 = vld [vmem:[%s13 + $0x460] sm:$0xff]
    %v326 = vld [vmem:[%s13 + $0x468] sm:$0xff]
    %v327 = vld [vmem:[%s13 + $0x470] sm:$0xff]
    %v328 = vld [vmem:[%s13 + $0x478] sm:$0xff]
    %v329 = vld [vmem:[%s13 + $0x480] sm:$0xff]
    %v330 = vld [vmem:[%s13 + $0x488] sm:$0xff]
    %v331 = vld [vmem:[%s13 + $0x490] sm:$0xff]
    %v332 = vld [vmem:[%s13 + $0x498] sm:$0xff]
    %v333 = vld [vmem:[%s13 + $0x4a0] sm:$0xff]
    %v334 = vld [vmem:[%s13 + $0x4a8] sm:$0xff]
    %v335 = vld [vmem:[%s13 + $0x4b0] sm:$0xff]
    %v336 = vld [vmem:[%s13 + $0x4b8] sm:$0xff]
    %v337 = vld [vmem:[%s13 + $0x4c0] sm:$0xff]
    %v338 = vld [vmem:[%s13 + $0x4c8] sm:$0xff]
    %v339 = vld [vmem:[%s13 + $0x4d0] sm:$0xff]
    %v340 = vld [vmem:[%s13 + $0x4d8] sm:$0xff]
    %v341 = vld [vmem:[%s13 + $0x4e0] sm:$0xff]
    %v342 = vld [vmem:[%s13 + $0x4e8] sm:$0xff]
    %v343 = vld [vmem:[%s13 + $0x4f0] sm:$0xff]
    %v344 = vld [vmem:[%s13 + $0x4f8] sm:$0xff]
    %v345 = vld [vmem:[%s13 + $0x500] sm:$0xff]
    %v346 = vld [vmem:[%s13 + $0x508] sm:$0xff]
    %v347 = vld [vmem:[%s13 + $0x510] sm:$0xff]
    %v348 = vld [vmem:[%s13 + $0x518] sm:$0xff]
    %v349 = vld [vmem:[%s13 + $0x520] sm:$0xff]
    %v350 = vld [vmem:[%s13 + $0x528] sm:$0xff]
    %v351 = vld [vmem:[%s13 + $0x530] sm:$0xff]
    %v352 = vld [vmem:[%s13 + $0x538] sm:$0xff]
    %v353 = vld [vmem:[%s13 + $0x540] sm:$0xff]
    %v354 = vld [vmem:[%s13 + $0x548] sm:$0xff]
    %v355 = vld [vmem:[%s13 + $0x550] sm:$0xff]
    %v356 = vld [vmem:[%s13 + $0x558] sm:$0xff]
    %v357 = vld [vmem:[%s13 + $0x560] sm:$0xff]
    %v358 = vld [vmem:[%s13 + $0x568] sm:$0xff]
    %v359 = vld [vmem:[%s13 + $0x570] sm:$0xff]
    %v360 = vld [vmem:[%s13 + $0x578] sm:$0xff]
    %v361 = vld [vmem:[%s13 + $0x580] sm:$0xff]
    %v362 = vld [vmem:[%s13 + $0x588] sm:$0xff]
    %v363 = vld [vmem:[%s13 + $0x590] sm:$0xff]
    %v364 = vld [vmem:[%s13 + $0x598] sm:$0xff]
    %v365 = vld [vmem:[%s13 + $0x5a0] sm:$0xff]
    %v366 = vld [vmem:[%s13 + $0x5a8] sm:$0xff]
    %v367 = vld [vmem:[%s13 + $0x5b0] sm:$0xff]
    %v368 = vld [vmem:[%s13 + $0x5b8] sm:$0xff]
    %v369 = vld [vmem:[%s13 + $0x5c0] sm:$0xff]
    %v370 = vld [vmem:[%s13 + $0x5c8] sm:$0xff]
    %v371 = vld [vmem:[%s13 + $0x5d0] sm:$0xff]
    %v372 = vld [vmem:[%s13 + $0x5d8] sm:$0xff]
    %v373 = vld [vmem:[%s13 + $0x5e0] sm:$0xff]
    %v374 = vld [vmem:[%s13 + $0x5e8] sm:$0xff]
    %v375 = vld [vmem:[%s13 + $0x5f0] sm:$0xff]
    %v376 = vld [vmem:[%s13 + $0x5f8] sm:$0xff]
    %v377 = vld [vmem:[%s13 + $0x600] sm:$0xff]
    %v378 = vld [vmem:[%s13 + $0x608] sm:$0xff]
    %v379 = vld [vmem:[%s13 + $0x610] sm:$0xff]
    %v380 = vld [vmem:[%s13 + $0x618] sm:$0xff]
    %v381 = vld [vmem:[%s13 + $0x620] sm:$0xff]
    %v382 = vld [vmem:[%s13 + $0x628] sm:$0xff]
    %v383 = vld [vmem:[%s13 + $0x630] sm:$0xff]
    %v384 = vld [vmem:[%s13 + $0x638] sm:$0xff]
    %v385 = vld [vmem:[%s13 + $0x640] sm:$0xff]
    %v386 = vld [vmem:[%s13 + $0x648] sm:$0xff]
    %v387 = vld [vmem:[%s13 + $0x650] sm:$0xff]
    %v388 = vld [vmem:[%s13 + $0x658] sm:$0xff]
    %v389 = vld [vmem:[%s13 + $0x660] sm:$0xff]
    %v390 = vld [vmem:[%s13 + $0x668] sm:$0xff]
    %v391 = vld [vmem:[%s13 + $0x670] sm:$0xff]
    %v392 = vld [vmem:[%s13 + $0x678] sm:$0xff]
    %v393 = vld [vmem:[%s13 + $0x680] sm:$0xff]
    %v394 = vld [vmem:[%s13 + $0x688] sm:$0xff]
    %v395 = vld [vmem:[%s13 + $0x690] sm:$0xff]
    %v396 = vld [vmem:[%s13 + $0x698] sm:$0xff]
    %v397 = vld [vmem:[%s13 + $0x6a0] sm:$0xff]
    %v398 = vld [vmem:[%s13 + $0x6a8] sm:$0xff]
    %v399 = vld [vmem:[%s13 + $0x6b0] sm:$0xff]
    %v400 = vld [vmem:[%s13 + $0x6b8] sm:$0xff]
    %v401 = vld [vmem:[%s13 + $0x6c0] sm:$0xff]
    %v402 = vld [vmem:[%s13 + $0x6c8] sm:$0xff]
    %v403 = vld [vmem:[%s13 + $0x6d0] sm:$0xff]
    %v404 = vld [vmem:[%s13 + $0x6d8] sm:$0xff]
    %v405 = vld [vmem:[%s13 + $0x6e0] sm:$0xff]
    %v406 = vld [vmem:[%s13 + $0x6e8] sm:$0xff]
    %v407 = vld [vmem:[%s13 + $0x6f0] sm:$0xff]
    %v408 = vld [vmem:[%s13 + $0x6f8] sm:$0xff]
    %v409 = vld [vmem:[%s13 + $0x700] sm:$0xff]
    %v410 = vld [vmem:[%s13 + $0x708] sm:$0xff]
    %v411 = vld [vmem:[%s13 + $0x710] sm:$0xff]
    %v412 = vld [vmem:[%s13 + $0x718] sm:$0xff]
    %v413 = vld [vmem:[%s13 + $0x720] sm:$0xff]
    %v414 = vld [vmem:[%s13 + $0x728] sm:$0xff]
    %v415 = vld [vmem:[%s13 + $0x730] sm:$0xff]
    %v416 = vld [vmem:[%s13 + $0x738] sm:$0xff]
    %v417 = vld [vmem:[%s13 + $0x740] sm:$0xff]
    %v418 = vld [vmem:[%s13 + $0x748] sm:$0xff]
    %v419 = vld [vmem:[%s13 + $0x750] sm:$0xff]
    %v420 = vld [vmem:[%s13 + $0x758] sm:$0xff]
    %v421 = vld [vmem:[%s13 + $0x760] sm:$0xff]
    %v422 = vld [vmem:[%s13 + $0x768] sm:$0xff]
    %v423 = vld [vmem:[%s13 + $0x770] sm:$0xff]
    %v424 = vld [vmem:[%s13 + $0x778] sm:$0xff]
    %v425 = vld [vmem:[%s13 + $0x780] sm:$0xff]
    %v426 = vld [vmem:[%s13 + $0x788] sm:$0xff]
    %v427 = vld [vmem:[%s13 + $0x790] sm:$0xff]
    %v428 = vld [vmem:[%s13 + $0x798] sm:$0xff]
    %v429 = vld [vmem:[%s13 + $0x7a0] sm:$0xff]
    %v430 = vld [vmem:[%s13 + $0x7a8] sm:$0xff]
    %v431 = vld [vmem:[%s13 + $0x7b0] sm:$0xff]
    %v432 = vld [vmem:[%s13 + $0x7b8] sm:$0xff]
    %v433 = vld [vmem:[%s13 + $0x7c0] sm:$0xff]
    %v434 = vld [vmem:[%s13 + $0x7c8] sm:$0xff]
    %v435 = vld [vmem:[%s13 + $0x7d0] sm:$0xff]
    %v436 = vld [vmem:[%s13 + $0x7d8] sm:$0xff]
    %v437 = vld [vmem:[%s13 + $0x7e0] sm:$0xff]
    %v438 = vld [vmem:[%s13 + $0x7e8] sm:$0xff]
    %v439 = vld [vmem:[%s13 + $0x7f0] sm:$0xff]
    %v440 = vld [vmem:[%s13 + $0x7f8] sm:$0xff]
    %v441 = vld [vmem:[%s13 + $0x800] sm:$0xff]
    %v442 = vld [vmem:[%s13 + $0x808] sm:$0xff]
    %v443 = vld [vmem:[%s13 + $0x810] sm:$0xff]
    %v444 = vld [vmem:[%s13 + $0x818] sm:$0xff]
    %v445 = vld [vmem:[%s13 + $0x820] sm:$0xff]
    %v446 = vld [vmem:[%s13 + $0x828] sm:$0xff]
    %v447 = vld [vmem:[%s13 + $0x830] sm:$0xff]
    %v448 = vld [vmem:[%s13 + $0x838] sm:$0xff]
    %v449 = vld [vmem:[%s13 + $0x840] sm:$0xff]
    %v450 = vld [vmem:[%s13 + $0x848] sm:$0xff]
    %v451 = vld [vmem:[%s13 + $0x850] sm:$0xff]
    %v452 = vld [vmem:[%s13 + $0x858] sm:$0xff]
    %v453 = vld [vmem:[%s13 + $0x860] sm:$0xff]
    %v454 = vld [vmem:[%s13 + $0x868] sm:$0xff]
    %v455 = vld [vmem:[%s13 + $0x870] sm:$0xff]
    %v456 = vld [vmem:[%s13 + $0x878] sm:$0xff]
    %v457 = vld [vmem:[%s13 + $0x880] sm:$0xff]
    %v458 = vld [vmem:[%s13 + $0x888] sm:$0xff]
    %v459 = vld [vmem:[%s13 + $0x890] sm:$0xff]
    %v460 = vld [vmem:[%s13 + $0x898] sm:$0xff]
    %v461 = vld [vmem:[%s13 + $0x8a0] sm:$0xff]
    %v462 = vld [vmem:[%s13 + $0x8a8] sm:$0xff]
    %v463 = vld [vmem:[%s13 + $0x8b0] sm:$0xff]
    %v464 = vld [vmem:[%s13 + $0x8b8] sm:$0xff]
    %v465 = vld [vmem:[%s13 + $0x8c0] sm:$0xff]
    %v466 = vld [vmem:[%s13 + $0x8c8] sm:$0xff]
    %v467 = vld [vmem:[%s13 + $0x8d0] sm:$0xff]
    %v468 = vld [vmem:[%s13 + $0x8d8] sm:$0xff]
    %v469 = vld [vmem:[%s13 + $0x8e0] sm:$0xff]
    %v470 = vld [vmem:[%s13 + $0x8e8] sm:$0xff]
    %v471 = vld [vmem:[%s13 + $0x8f0] sm:$0xff]
    %v472 = vld [vmem:[%s13 + $0x8f8] sm:$0xff]
    %v473 = vld [vmem:[%s15] sm:$0xff]
    %v474 = vld [vmem:[%s15 + $0x8] sm:$0xff]
    %v475 = vld [vmem:[%s15 + $0x10] sm:$0xff]
    %v476 = vld [vmem:[%s15 + $0x18] sm:$0xff]
    %v477 = vld [vmem:[%s15 + $0x20] sm:$0xf]
    %v483 = vperm.slane %v473, 0
    %v484 = vperm.slane %v473, 1
    %v485 = vperm.slane %v473, 2
    %v486 = vperm.slane %v473, 3
    %v487 = vperm.slane %v473, 4
    %v488 = vperm.slane %v473, 5
    %v489 = vperm.slane %v473, 6
    %v490 = vperm.slane %v473, 7
    %v491 = vperm.slane %v474, 0
    %v492 = vperm.slane %v474, 1
    %v493 = vperm.slane %v474, 2
    %v494 = vperm.slane %v474, 3
    %v495 = vperm.slane %v474, 4
    %v496 = vperm.slane %v474, 5
    %v497 = vperm.slane %v474, 6
    %v498 = vperm.slane %v474, 7
    %v499 = vperm.slane %v475, 0
    %v500 = vperm.slane %v475, 1
    %v501 = vperm.slane %v475, 2
    %v502 = vperm.slane %v475, 3
    %v503 = vperm.slane %v475, 4
    %v504 = vperm.slane %v475, 5
    %v505 = vperm.slane %v475, 6
    %v506 = vperm.slane %v475, 7
    %v507 = vperm.slane %v476, 0
    %v508 = vperm.slane %v476, 1
    %v509 = vperm.slane %v476, 2
    %v510 = vperm.slane %v476, 3
    %v511 = vperm.slane %v476, 4
    %v512 = vperm.slane %v476, 5
    %v513 = vperm.slane %v476, 6
    %v514 = vperm.slane %v476, 7
    %v515 = vperm.slane %v477, 0
    %v516 = vperm.slane %v477, 1
    %v517 = vperm.slane %v477, 2
    %v518 = vperm.slane %v477, 3
    %vm555 = vcmask 523264
    %v557 = vsel %vm555, %v184, 0
    %559 = vmatpush.msra.mxu0 0.0
    %560 = vmatpush.msra.mxu0 0.0
    %561 = vmatpush.msra.mxu0 0.0
    %562 = vmatpush.msra.mxu0 0.0
    %563 = vmatpush.msra.mxu0 0.0
    %564 = vmatpush.msra.mxu0 0.0
    %565 = vmatpush.msra.mxu0 0.0
    %566 = vmatpush.msra.mxu0 0.0
    %567 = vmatpush.msra.mxu0 %v437
    %568 = vmatpush.msra.mxu0 %v401
    %569 = vmatpush.msra.mxu0 %v365
    %570 = vmatpush.msra.mxu0 %v329
    %571 = vmatpush.msra.mxu0 %v293
    %572 = vmatpush.msra.mxu0 %v257
    %573 = vmatpush.msra.mxu0 %v221
    %574 = vmatpush.msra.mxu0 %v185
    %575 = vmatmul.f32.gmra.mxu0 %v557
    %v576 = vpop.f32.mrf.mxu0
    %v577 = vadd.f32 %v483, %v576
    %578 = vdwg.mxu0
    %579 = vmatpush.msra.mxu0 0.0
    %580 = vmatpush.msra.mxu0 0.0
    %581 = vmatpush.msra.mxu0 0.0
    %582 = vmatpush.msra.mxu0 0.0
    %583 = vmatpush.msra.mxu0 0.0
    %584 = vmatpush.msra.mxu0 0.0
    %585 = vmatpush.msra.mxu0 0.0
    %586 = vmatpush.msra.mxu0 0.0
    %587 = vmatpush.msra.mxu0 %v438
    %588 = vmatpush.msra.mxu0 %v402
    %589 = vmatpush.msra.mxu0 %v366
    %590 = vmatpush.msra.mxu0 %v330
    %591 = vmatpush.msra.mxu0 %v294
    %592 = vmatpush.msra.mxu0 %v258
    %593 = vmatpush.msra.mxu0 %v222
    %594 = vmatpush.msra.mxu0 %v186
    %595 = vmatmul.f32.gmra.mxu0 %v557
    %v596 = vpop.f32.mrf.mxu0
    %v597 = vadd.f32 %v484, %v596
    %598 = vdwg.mxu0
    %599 = vmatpush.msra.mxu0 0.0
    %600 = vmatpush.msra.mxu0 0.0
    %601 = vmatpush.msra.mxu0 0.0
    %602 = vmatpush.msra.mxu0 0.0
    %603 = vmatpush.msra.mxu0 0.0
    %604 = vmatpush.msra.mxu0 0.0
    %605 = vmatpush.msra.mxu0 0.0
    %606 = vmatpush.msra.mxu0 0.0
    %607 = vmatpush.msra.mxu0 %v439
    %608 = vmatpush.msra.mxu0 %v403
    %609 = vmatpush.msra.mxu0 %v367
    %610 = vmatpush.msra.mxu0 %v331
    %611 = vmatpush.msra.mxu0 %v295
    %612 = vmatpush.msra.mxu0 %v259
    %613 = vmatpush.msra.mxu0 %v223
    %614 = vmatpush.msra.mxu0 %v187
    %615 = vmatmul.f32.gmra.mxu0 %v557
    %v616 = vpop.f32.mrf.mxu0
    %v617 = vadd.f32 %v485, %v616
    %618 = vdwg.mxu0
    %619 = vmatpush.msra.mxu0 0.0
    %620 = vmatpush.msra.mxu0 0.0
    %621 = vmatpush.msra.mxu0 0.0
    %622 = vmatpush.msra.mxu0 0.0
    %623 = vmatpush.msra.mxu0 0.0
    %624 = vmatpush.msra.mxu0 0.0
    %625 = vmatpush.msra.mxu0 0.0
    %626 = vmatpush.msra.mxu0 0.0
    %627 = vmatpush.msra.mxu0 %v440
    %628 = vmatpush.msra.mxu0 %v404
    %629 = vmatpush.msra.mxu0 %v368
    %630 = vmatpush.msra.mxu0 %v332
    %631 = vmatpush.msra.mxu0 %v296
    %632 = vmatpush.msra.mxu0 %v260
    %633 = vmatpush.msra.mxu0 %v224
    %634 = vmatpush.msra.mxu0 %v188
    %635 = vmatmul.f32.gmra.mxu0 %v557
    %v636 = vpop.f32.mrf.mxu0
    %v637 = vadd.f32 %v486, %v636
    %638 = vdwg.mxu0
    %639 = vmatpush.msra.mxu0 0.0
    %640 = vmatpush.msra.mxu0 0.0
    %641 = vmatpush.msra.mxu0 0.0
    %642 = vmatpush.msra.mxu0 0.0
    %643 = vmatpush.msra.mxu0 0.0
    %644 = vmatpush.msra.mxu0 0.0
    %645 = vmatpush.msra.mxu0 0.0
    %646 = vmatpush.msra.mxu0 0.0
    %647 = vmatpush.msra.mxu0 %v441
    %648 = vmatpush.msra.mxu0 %v405
    %649 = vmatpush.msra.mxu0 %v369
    %650 = vmatpush.msra.mxu0 %v333
    %651 = vmatpush.msra.mxu0 %v297
    %652 = vmatpush.msra.mxu0 %v261
    %653 = vmatpush.msra.mxu0 %v225
    %654 = vmatpush.msra.mxu0 %v189
    %655 = vmatmul.f32.gmra.mxu0 %v557
    %v656 = vpop.f32.mrf.mxu0
    %v657 = vadd.f32 %v487, %v656
    %658 = vdwg.mxu0
    %659 = vmatpush.msra.mxu0 0.0
    %660 = vmatpush.msra.mxu0 0.0
    %661 = vmatpush.msra.mxu0 0.0
    %662 = vmatpush.msra.mxu0 0.0
    %663 = vmatpush.msra.mxu0 0.0
    %664 = vmatpush.msra.mxu0 0.0
    %665 = vmatpush.msra.mxu0 0.0
    %666 = vmatpush.msra.mxu0 0.0
    %667 = vmatpush.msra.mxu0 %v442
    %668 = vmatpush.msra.mxu0 %v406
    %669 = vmatpush.msra.mxu0 %v370
    %670 = vmatpush.msra.mxu0 %v334
    %671 = vmatpush.msra.mxu0 %v298
    %672 = vmatpush.msra.mxu0 %v262
    %673 = vmatpush.msra.mxu0 %v226
    %674 = vmatpush.msra.mxu0 %v190
    %675 = vmatmul.f32.gmra.mxu0 %v557
    %v676 = vpop.f32.mrf.mxu0
    %v677 = vadd.f32 %v488, %v676
    %678 = vdwg.mxu0
    %679 = vmatpush.msra.mxu0 0.0
    %680 = vmatpush.msra.mxu0 0.0
    %681 = vmatpush.msra.mxu0 0.0
    %682 = vmatpush.msra.mxu0 0.0
    %683 = vmatpush.msra.mxu0 0.0
    %684 = vmatpush.msra.mxu0 0.0
    %685 = vmatpush.msra.mxu0 0.0
    %686 = vmatpush.msra.mxu0 0.0
    %687 = vmatpush.msra.mxu0 %v443
    %688 = vmatpush.msra.mxu0 %v407
    %689 = vmatpush.msra.mxu0 %v371
    %690 = vmatpush.msra.mxu0 %v335
    %691 = vmatpush.msra.mxu0 %v299
    %692 = vmatpush.msra.mxu0 %v263
    %693 = vmatpush.msra.mxu0 %v227
    %694 = vmatpush.msra.mxu0 %v191
    %695 = vmatmul.f32.gmra.mxu0 %v557
    %v696 = vpop.f32.mrf.mxu0
    %v697 = vadd.f32 %v489, %v696
    %698 = vdwg.mxu0
    %699 = vmatpush.msra.mxu0 0.0
    %700 = vmatpush.msra.mxu0 0.0
    %701 = vmatpush.msra.mxu0 0.0
    %702 = vmatpush.msra.mxu0 0.0
    %703 = vmatpush.msra.mxu0 0.0
    %704 = vmatpush.msra.mxu0 0.0
    %705 = vmatpush.msra.mxu0 0.0
    %706 = vmatpush.msra.mxu0 0.0
    %707 = vmatpush.msra.mxu0 %v444
    %708 = vmatpush.msra.mxu0 %v408
    %709 = vmatpush.msra.mxu0 %v372
    %710 = vmatpush.msra.mxu0 %v336
    %711 = vmatpush.msra.mxu0 %v300
    %712 = vmatpush.msra.mxu0 %v264
    %713 = vmatpush.msra.mxu0 %v228
    %714 = vmatpush.msra.mxu0 %v192
    %715 = vmatmul.f32.gmra.mxu0 %v557
    %v716 = vpop.f32.mrf.mxu0
    %v717 = vadd.f32 %v490, %v716
    %718 = vdwg.mxu0
    %719 = vmatpush.msra.mxu0 0.0
    %720 = vmatpush.msra.mxu0 0.0
    %721 = vmatpush.msra.mxu0 0.0
    %722 = vmatpush.msra.mxu0 0.0
    %723 = vmatpush.msra.mxu0 0.0
    %724 = vmatpush.msra.mxu0 0.0
    %725 = vmatpush.msra.mxu0 0.0
    %726 = vmatpush.msra.mxu0 0.0
    %727 = vmatpush.msra.mxu0 %v445
    %728 = vmatpush.msra.mxu0 %v409
    %729 = vmatpush.msra.mxu0 %v373
    %730 = vmatpush.msra.mxu0 %v337
    %731 = vmatpush.msra.mxu0 %v301
    %732 = vmatpush.msra.mxu0 %v265
    %733 = vmatpush.msra.mxu0 %v229
    %734 = vmatpush.msra.mxu0 %v193
    %735 = vmatmul.f32.gmra.mxu0 %v557
    %v736 = vpop.f32.mrf.mxu0
    %v737 = vadd.f32 %v491, %v736
    %738 = vdwg.mxu0
    %739 = vmatpush.msra.mxu0 0.0
    %740 = vmatpush.msra.mxu0 0.0
    %741 = vmatpush.msra.mxu0 0.0
    %742 = vmatpush.msra.mxu0 0.0
    %743 = vmatpush.msra.mxu0 0.0
    %744 = vmatpush.msra.mxu0 0.0
    %745 = vmatpush.msra.mxu0 0.0
    %746 = vmatpush.msra.mxu0 0.0
    %747 = vmatpush.msra.mxu0 %v446
    %748 = vmatpush.msra.mxu0 %v410
    %749 = vmatpush.msra.mxu0 %v374
    %750 = vmatpush.msra.mxu0 %v338
    %751 = vmatpush.msra.mxu0 %v302
    %752 = vmatpush.msra.mxu0 %v266
    %753 = vmatpush.msra.mxu0 %v230
    %754 = vmatpush.msra.mxu0 %v194
    %755 = vmatmul.f32.gmra.mxu0 %v557
    %v756 = vpop.f32.mrf.mxu0
    %v757 = vadd.f32 %v492, %v756
    %758 = vdwg.mxu0
    %759 = vmatpush.msra.mxu0 0.0
    %760 = vmatpush.msra.mxu0 0.0
    %761 = vmatpush.msra.mxu0 0.0
    %762 = vmatpush.msra.mxu0 0.0
    %763 = vmatpush.msra.mxu0 0.0
    %764 = vmatpush.msra.mxu0 0.0
    %765 = vmatpush.msra.mxu0 0.0
    %766 = vmatpush.msra.mxu0 0.0
    %767 = vmatpush.msra.mxu0 %v447
    %768 = vmatpush.msra.mxu0 %v411
    %769 = vmatpush.msra.mxu0 %v375
    %770 = vmatpush.msra.mxu0 %v339
    %771 = vmatpush.msra.mxu0 %v303
    %772 = vmatpush.msra.mxu0 %v267
    %773 = vmatpush.msra.mxu0 %v231
    %774 = vmatpush.msra.mxu0 %v195
    %775 = vmatmul.f32.gmra.mxu0 %v557
    %v776 = vpop.f32.mrf.mxu0
    %v777 = vadd.f32 %v493, %v776
    %778 = vdwg.mxu0
    %779 = vmatpush.msra.mxu0 0.0
    %780 = vmatpush.msra.mxu0 0.0
    %781 = vmatpush.msra.mxu0 0.0
    %782 = vmatpush.msra.mxu0 0.0
    %783 = vmatpush.msra.mxu0 0.0
    %784 = vmatpush.msra.mxu0 0.0
    %785 = vmatpush.msra.mxu0 0.0
    %786 = vmatpush.msra.mxu0 0.0
    %787 = vmatpush.msra.mxu0 %v448
    %788 = vmatpush.msra.mxu0 %v412
    %789 = vmatpush.msra.mxu0 %v376
    %790 = vmatpush.msra.mxu0 %v340
    %791 = vmatpush.msra.mxu0 %v304
    %792 = vmatpush.msra.mxu0 %v268
    %793 = vmatpush.msra.mxu0 %v232
    %794 = vmatpush.msra.mxu0 %v196
    %795 = vmatmul.f32.gmra.mxu0 %v557
    %v796 = vpop.f32.mrf.mxu0
    %v797 = vadd.f32 %v494, %v796
    %798 = vdwg.mxu0
    %799 = vmatpush.msra.mxu0 0.0
    %800 = vmatpush.msra.mxu0 0.0
    %801 = vmatpush.msra.mxu0 0.0
    %802 = vmatpush.msra.mxu0 0.0
    %803 = vmatpush.msra.mxu0 0.0
    %804 = vmatpush.msra.mxu0 0.0
    %805 = vmatpush.msra.mxu0 0.0
    %806 = vmatpush.msra.mxu0 0.0
    %807 = vmatpush.msra.mxu0 %v449
    %808 = vmatpush.msra.mxu0 %v413
    %809 = vmatpush.msra.mxu0 %v377
    %810 = vmatpush.msra.mxu0 %v341
    %811 = vmatpush.msra.mxu0 %v305
    %812 = vmatpush.msra.mxu0 %v269
    %813 = vmatpush.msra.mxu0 %v233
    %814 = vmatpush.msra.mxu0 %v197
    %815 = vmatmul.f32.gmra.mxu0 %v557
    %v816 = vpop.f32.mrf.mxu0
    %v817 = vadd.f32 %v495, %v816
    %818 = vdwg.mxu0
    %819 = vmatpush.msra.mxu0 0.0
    %820 = vmatpush.msra.mxu0 0.0
    %821 = vmatpush.msra.mxu0 0.0
    %822 = vmatpush.msra.mxu0 0.0
    %823 = vmatpush.msra.mxu0 0.0
    %824 = vmatpush.msra.mxu0 0.0
    %825 = vmatpush.msra.mxu0 0.0
    %826 = vmatpush.msra.mxu0 0.0
    %827 = vmatpush.msra.mxu0 %v450
    %828 = vmatpush.msra.mxu0 %v414
    %829 = vmatpush.msra.mxu0 %v378
    %830 = vmatpush.msra.mxu0 %v342
    %831 = vmatpush.msra.mxu0 %v306
    %832 = vmatpush.msra.mxu0 %v270
    %833 = vmatpush.msra.mxu0 %v234
    %834 = vmatpush.msra.mxu0 %v198
    %835 = vmatmul.f32.gmra.mxu0 %v557
    %v836 = vpop.f32.mrf.mxu0
    %v837 = vadd.f32 %v496, %v836
    %838 = vdwg.mxu0
    %839 = vmatpush.msra.mxu0 0.0
    %840 = vmatpush.msra.mxu0 0.0
    %841 = vmatpush.msra.mxu0 0.0
    %842 = vmatpush.msra.mxu0 0.0
    %843 = vmatpush.msra.mxu0 0.0
    %844 = vmatpush.msra.mxu0 0.0
    %845 = vmatpush.msra.mxu0 0.0
    %846 = vmatpush.msra.mxu0 0.0
    %847 = vmatpush.msra.mxu0 %v451
    %848 = vmatpush.msra.mxu0 %v415
    %849 = vmatpush.msra.mxu0 %v379
    %850 = vmatpush.msra.mxu0 %v343
    %851 = vmatpush.msra.mxu0 %v307
    %852 = vmatpush.msra.mxu0 %v271
    %853 = vmatpush.msra.mxu0 %v235
    %854 = vmatpush.msra.mxu0 %v199
    %855 = vmatmul.f32.gmra.mxu0 %v557
    %v856 = vpop.f32.mrf.mxu0
    %v857 = vadd.f32 %v497, %v856
    %858 = vdwg.mxu0
    %859 = vmatpush.msra.mxu0 0.0
    %860 = vmatpush.msra.mxu0 0.0
    %861 = vmatpush.msra.mxu0 0.0
    %862 = vmatpush.msra.mxu0 0.0
    %863 = vmatpush.msra.mxu0 0.0
    %864 = vmatpush.msra.mxu0 0.0
    %865 = vmatpush.msra.mxu0 0.0
    %866 = vmatpush.msra.mxu0 0.0
    %867 = vmatpush.msra.mxu0 %v452
    %868 = vmatpush.msra.mxu0 %v416
    %869 = vmatpush.msra.mxu0 %v380
    %870 = vmatpush.msra.mxu0 %v344
    %871 = vmatpush.msra.mxu0 %v308
    %872 = vmatpush.msra.mxu0 %v272
    %873 = vmatpush.msra.mxu0 %v236
    %874 = vmatpush.msra.mxu0 %v200
    %875 = vmatmul.f32.gmra.mxu0 %v557
    %v876 = vpop.f32.mrf.mxu0
    %v877 = vadd.f32 %v498, %v876
    %878 = vdwg.mxu0
    %879 = vmatpush.msra.mxu0 0.0
    %880 = vmatpush.msra.mxu0 0.0
    %881 = vmatpush.msra.mxu0 0.0
    %882 = vmatpush.msra.mxu0 0.0
    %883 = vmatpush.msra.mxu0 0.0
    %884 = vmatpush.msra.mxu0 0.0
    %885 = vmatpush.msra.mxu0 0.0
    %886 = vmatpush.msra.mxu0 0.0
    %887 = vmatpush.msra.mxu0 %v453
    %888 = vmatpush.msra.mxu0 %v417
    %889 = vmatpush.msra.mxu0 %v381
    %890 = vmatpush.msra.mxu0 %v345
    %891 = vmatpush.msra.mxu0 %v309
    %892 = vmatpush.msra.mxu0 %v273
    %893 = vmatpush.msra.mxu0 %v237
    %894 = vmatpush.msra.mxu0 %v201
    %895 = vmatmul.f32.gmra.mxu0 %v557
    %v896 = vpop.f32.mrf.mxu0
    %v897 = vadd.f32 %v499, %v896
    %898 = vdwg.mxu0
    %899 = vmatpush.msra.mxu0 0.0
    %900 = vmatpush.msra.mxu0 0.0
    %901 = vmatpush.msra.mxu0 0.0
    %902 = vmatpush.msra.mxu0 0.0
    %903 = vmatpush.msra.mxu0 0.0
    %904 = vmatpush.msra.mxu0 0.0
    %905 = vmatpush.msra.mxu0 0.0
    %906 = vmatpush.msra.mxu0 0.0
    %907 = vmatpush.msra.mxu0 %v454
    %908 = vmatpush.msra.mxu0 %v418
    %909 = vmatpush.msra.mxu0 %v382
    %910 = vmatpush.msra.mxu0 %v346
    %911 = vmatpush.msra.mxu0 %v310
    %912 = vmatpush.msra.mxu0 %v274
    %913 = vmatpush.msra.mxu0 %v238
    %914 = vmatpush.msra.mxu0 %v202
    %915 = vmatmul.f32.gmra.mxu0 %v557
    %v916 = vpop.f32.mrf.mxu0
    %v917 = vadd.f32 %v500, %v916
    %918 = vdwg.mxu0
    %919 = vmatpush.msra.mxu0 0.0
    %920 = vmatpush.msra.mxu0 0.0
    %921 = vmatpush.msra.mxu0 0.0
    %922 = vmatpush.msra.mxu0 0.0
    %923 = vmatpush.msra.mxu0 0.0
    %924 = vmatpush.msra.mxu0 0.0
    %925 = vmatpush.msra.mxu0 0.0
    %926 = vmatpush.msra.mxu0 0.0
    %927 = vmatpush.msra.mxu0 %v455
    %928 = vmatpush.msra.mxu0 %v419
    %929 = vmatpush.msra.mxu0 %v383
    %930 = vmatpush.msra.mxu0 %v347
    %931 = vmatpush.msra.mxu0 %v311
    %932 = vmatpush.msra.mxu0 %v275
    %933 = vmatpush.msra.mxu0 %v239
    %934 = vmatpush.msra.mxu0 %v203
    %935 = vmatmul.f32.gmra.mxu0 %v557
    %v936 = vpop.f32.mrf.mxu0
    %v937 = vadd.f32 %v501, %v936
    %938 = vdwg.mxu0
    %939 = vmatpush.msra.mxu0 0.0
    %940 = vmatpush.msra.mxu0 0.0
    %941 = vmatpush.msra.mxu0 0.0
    %942 = vmatpush.msra.mxu0 0.0
    %943 = vmatpush.msra.mxu0 0.0
    %944 = vmatpush.msra.mxu0 0.0
    %945 = vmatpush.msra.mxu0 0.0
    %946 = vmatpush.msra.mxu0 0.0
    %947 = vmatpush.msra.mxu0 %v456
    %948 = vmatpush.msra.mxu0 %v420
    %949 = vmatpush.msra.mxu0 %v384
    %950 = vmatpush.msra.mxu0 %v348
    %951 = vmatpush.msra.mxu0 %v312
    %952 = vmatpush.msra.mxu0 %v276
    %953 = vmatpush.msra.mxu0 %v240
    %954 = vmatpush.msra.mxu0 %v204
    %955 = vmatmul.f32.gmra.mxu0 %v557
    %v956 = vpop.f32.mrf.mxu0
    %v957 = vadd.f32 %v502, %v956
    %958 = vdwg.mxu0
    %959 = vmatpush.msra.mxu0 0.0
    %960 = vmatpush.msra.mxu0 0.0
    %961 = vmatpush.msra.mxu0 0.0
    %962 = vmatpush.msra.mxu0 0.0
    %963 = vmatpush.msra.mxu0 0.0
    %964 = vmatpush.msra.mxu0 0.0
    %965 = vmatpush.msra.mxu0 0.0
    %966 = vmatpush.msra.mxu0 0.0
    %967 = vmatpush.msra.mxu0 %v457
    %968 = vmatpush.msra.mxu0 %v421
    %969 = vmatpush.msra.mxu0 %v385
    %970 = vmatpush.msra.mxu0 %v349
    %971 = vmatpush.msra.mxu0 %v313
    %972 = vmatpush.msra.mxu0 %v277
    %973 = vmatpush.msra.mxu0 %v241
    %974 = vmatpush.msra.mxu0 %v205
    %975 = vmatmul.f32.gmra.mxu0 %v557
    %v976 = vpop.f32.mrf.mxu0
    %v977 = vadd.f32 %v503, %v976
    %978 = vdwg.mxu0
    %979 = vmatpush.msra.mxu0 0.0
    %980 = vmatpush.msra.mxu0 0.0
    %981 = vmatpush.msra.mxu0 0.0
    %982 = vmatpush.msra.mxu0 0.0
    %983 = vmatpush.msra.mxu0 0.0
    %984 = vmatpush.msra.mxu0 0.0
    %985 = vmatpush.msra.mxu0 0.0
    %986 = vmatpush.msra.mxu0 0.0
    %987 = vmatpush.msra.mxu0 %v458
    %988 = vmatpush.msra.mxu0 %v422
    %989 = vmatpush.msra.mxu0 %v386
    %990 = vmatpush.msra.mxu0 %v350
    %991 = vmatpush.msra.mxu0 %v314
    %992 = vmatpush.msra.mxu0 %v278
    %993 = vmatpush.msra.mxu0 %v242
    %994 = vmatpush.msra.mxu0 %v206
    %995 = vmatmul.f32.gmra.mxu0 %v557
    %v996 = vpop.f32.mrf.mxu0
    %v997 = vadd.f32 %v504, %v996
    %998 = vdwg.mxu0
    %999 = vmatpush.msra.mxu0 0.0
    %1000 = vmatpush.msra.mxu0 0.0
    %1001 = vmatpush.msra.mxu0 0.0
    %1002 = vmatpush.msra.mxu0 0.0
    %1003 = vmatpush.msra.mxu0 0.0
    %1004 = vmatpush.msra.mxu0 0.0
    %1005 = vmatpush.msra.mxu0 0.0
    %1006 = vmatpush.msra.mxu0 0.0
    %1007 = vmatpush.msra.mxu0 %v459
    %1008 = vmatpush.msra.mxu0 %v423
    %1009 = vmatpush.msra.mxu0 %v387
    %1010 = vmatpush.msra.mxu0 %v351
    %1011 = vmatpush.msra.mxu0 %v315
    %1012 = vmatpush.msra.mxu0 %v279
    %1013 = vmatpush.msra.mxu0 %v243
    %1014 = vmatpush.msra.mxu0 %v207
    %1015 = vmatmul.f32.gmra.mxu0 %v557
    %v1016 = vpop.f32.mrf.mxu0
    %v1017 = vadd.f32 %v505, %v1016
    %1018 = vdwg.mxu0
    %1019 = vmatpush.msra.mxu0 0.0
    %1020 = vmatpush.msra.mxu0 0.0
    %1021 = vmatpush.msra.mxu0 0.0
    %1022 = vmatpush.msra.mxu0 0.0
    %1023 = vmatpush.msra.mxu0 0.0
    %1024 = vmatpush.msra.mxu0 0.0
    %1025 = vmatpush.msra.mxu0 0.0
    %1026 = vmatpush.msra.mxu0 0.0
    %1027 = vmatpush.msra.mxu0 %v460
    %1028 = vmatpush.msra.mxu0 %v424
    %1029 = vmatpush.msra.mxu0 %v388
    %1030 = vmatpush.msra.mxu0 %v352
    %1031 = vmatpush.msra.mxu0 %v316
    %1032 = vmatpush.msra.mxu0 %v280
    %1033 = vmatpush.msra.mxu0 %v244
    %1034 = vmatpush.msra.mxu0 %v208
    %1035 = vmatmul.f32.gmra.mxu0 %v557
    %v1036 = vpop.f32.mrf.mxu0
    %v1037 = vadd.f32 %v506, %v1036
    %1038 = vdwg.mxu0
    %1039 = vmatpush.msra.mxu0 0.0
    %1040 = vmatpush.msra.mxu0 0.0
    %1041 = vmatpush.msra.mxu0 0.0
    %1042 = vmatpush.msra.mxu0 0.0
    %1043 = vmatpush.msra.mxu0 0.0
    %1044 = vmatpush.msra.mxu0 0.0
    %1045 = vmatpush.msra.mxu0 0.0
    %1046 = vmatpush.msra.mxu0 0.0
    %1047 = vmatpush.msra.mxu0 %v461
    %1048 = vmatpush.msra.mxu0 %v425
    %1049 = vmatpush.msra.mxu0 %v389
    %1050 = vmatpush.msra.mxu0 %v353
    %1051 = vmatpush.msra.mxu0 %v317
    %1052 = vmatpush.msra.mxu0 %v281
    %1053 = vmatpush.msra.mxu0 %v245
    %1054 = vmatpush.msra.mxu0 %v209
    %1055 = vmatmul.f32.gmra.mxu0 %v557
    %v1056 = vpop.f32.mrf.mxu0
    %v1057 = vadd.f32 %v507, %v1056
    %1058 = vdwg.mxu0
    %1059 = vmatpush.msra.mxu0 0.0
    %1060 = vmatpush.msra.mxu0 0.0
    %1061 = vmatpush.msra.mxu0 0.0
    %1062 = vmatpush.msra.mxu0 0.0
    %1063 = vmatpush.msra.mxu0 0.0
    %1064 = vmatpush.msra.mxu0 0.0
    %1065 = vmatpush.msra.mxu0 0.0
    %1066 = vmatpush.msra.mxu0 0.0
    %1067 = vmatpush.msra.mxu0 %v462
    %1068 = vmatpush.msra.mxu0 %v426
    %1069 = vmatpush.msra.mxu0 %v390
    %1070 = vmatpush.msra.mxu0 %v354
    %1071 = vmatpush.msra.mxu0 %v318
    %1072 = vmatpush.msra.mxu0 %v282
    %1073 = vmatpush.msra.mxu0 %v246
    %1074 = vmatpush.msra.mxu0 %v210
    %1075 = vmatmul.f32.gmra.mxu0 %v557
    %v1076 = vpop.f32.mrf.mxu0
    %v1077 = vadd.f32 %v508, %v1076
    %1078 = vdwg.mxu0
    %1079 = vmatpush.msra.mxu0 0.0
    %1080 = vmatpush.msra.mxu0 0.0
    %1081 = vmatpush.msra.mxu0 0.0
    %1082 = vmatpush.msra.mxu0 0.0
    %1083 = vmatpush.msra.mxu0 0.0
    %1084 = vmatpush.msra.mxu0 0.0
    %1085 = vmatpush.msra.mxu0 0.0
    %1086 = vmatpush.msra.mxu0 0.0
    %1087 = vmatpush.msra.mxu0 %v463
    %1088 = vmatpush.msra.mxu0 %v427
    %1089 = vmatpush.msra.mxu0 %v391
    %1090 = vmatpush.msra.mxu0 %v355
    %1091 = vmatpush.msra.mxu0 %v319
    %1092 = vmatpush.msra.mxu0 %v283
    %1093 = vmatpush.msra.mxu0 %v247
    %1094 = vmatpush.msra.mxu0 %v211
    %1095 = vmatmul.f32.gmra.mxu0 %v557
    %v1096 = vpop.f32.mrf.mxu0
    %v1097 = vadd.f32 %v509, %v1096
    %1098 = vdwg.mxu0
    %1099 = vmatpush.msra.mxu0 0.0
    %1100 = vmatpush.msra.mxu0 0.0
    %1101 = vmatpush.msra.mxu0 0.0
    %1102 = vmatpush.msra.mxu0 0.0
    %1103 = vmatpush.msra.mxu0 0.0
    %1104 = vmatpush.msra.mxu0 0.0
    %1105 = vmatpush.msra.mxu0 0.0
    %1106 = vmatpush.msra.mxu0 0.0
    %1107 = vmatpush.msra.mxu0 %v464
    %1108 = vmatpush.msra.mxu0 %v428
    %1109 = vmatpush.msra.mxu0 %v392
    %1110 = vmatpush.msra.mxu0 %v356
    %1111 = vmatpush.msra.mxu0 %v320
    %1112 = vmatpush.msra.mxu0 %v284
    %1113 = vmatpush.msra.mxu0 %v248
    %1114 = vmatpush.msra.mxu0 %v212
    %1115 = vmatmul.f32.gmra.mxu0 %v557
    %v1116 = vpop.f32.mrf.mxu0
    %v1117 = vadd.f32 %v510, %v1116
    %1118 = vdwg.mxu0
    %1119 = vmatpush.msra.mxu0 0.0
    %1120 = vmatpush.msra.mxu0 0.0
    %1121 = vmatpush.msra.mxu0 0.0
    %1122 = vmatpush.msra.mxu0 0.0
    %1123 = vmatpush.msra.mxu0 0.0
    %1124 = vmatpush.msra.mxu0 0.0
    %1125 = vmatpush.msra.mxu0 0.0
    %1126 = vmatpush.msra.mxu0 0.0
    %1127 = vmatpush.msra.mxu0 %v465
    %1128 = vmatpush.msra.mxu0 %v429
    %1129 = vmatpush.msra.mxu0 %v393
    %1130 = vmatpush.msra.mxu0 %v357
    %1131 = vmatpush.msra.mxu0 %v321
    %1132 = vmatpush.msra.mxu0 %v285
    %1133 = vmatpush.msra.mxu0 %v249
    %1134 = vmatpush.msra.mxu0 %v213
    %1135 = vmatmul.f32.gmra.mxu0 %v557
    %v1136 = vpop.f32.mrf.mxu0
    %v1137 = vadd.f32 %v511, %v1136
    %1138 = vdwg.mxu0
    %1139 = vmatpush.msra.mxu0 0.0
    %1140 = vmatpush.msra.mxu0 0.0
    %1141 = vmatpush.msra.mxu0 0.0
    %1142 = vmatpush.msra.mxu0 0.0
    %1143 = vmatpush.msra.mxu0 0.0
    %1144 = vmatpush.msra.mxu0 0.0
    %1145 = vmatpush.msra.mxu0 0.0
    %1146 = vmatpush.msra.mxu0 0.0
    %1147 = vmatpush.msra.mxu0 %v466
    %1148 = vmatpush.msra.mxu0 %v430
    %1149 = vmatpush.msra.mxu0 %v394
    %1150 = vmatpush.msra.mxu0 %v358
    %1151 = vmatpush.msra.mxu0 %v322
    %1152 = vmatpush.msra.mxu0 %v286
    %1153 = vmatpush.msra.mxu0 %v250
    %1154 = vmatpush.msra.mxu0 %v214
    %1155 = vmatmul.f32.gmra.mxu0 %v557
    %v1156 = vpop.f32.mrf.mxu0
    %v1157 = vadd.f32 %v512, %v1156
    %1158 = vdwg.mxu0
    %1159 = vmatpush.msra.mxu0 0.0
    %1160 = vmatpush.msra.mxu0 0.0
    %1161 = vmatpush.msra.mxu0 0.0
    %1162 = vmatpush.msra.mxu0 0.0
    %1163 = vmatpush.msra.mxu0 0.0
    %1164 = vmatpush.msra.mxu0 0.0
    %1165 = vmatpush.msra.mxu0 0.0
    %1166 = vmatpush.msra.mxu0 0.0
    %1167 = vmatpush.msra.mxu0 %v467
    %1168 = vmatpush.msra.mxu0 %v431
    %1169 = vmatpush.msra.mxu0 %v395
    %1170 = vmatpush.msra.mxu0 %v359
    %1171 = vmatpush.msra.mxu0 %v323
    %1172 = vmatpush.msra.mxu0 %v287
    %1173 = vmatpush.msra.mxu0 %v251
    %1174 = vmatpush.msra.mxu0 %v215
    %1175 = vmatmul.f32.gmra.mxu0 %v557
    %v1176 = vpop.f32.mrf.mxu0
    %v1177 = vadd.f32 %v513, %v1176
    %1178 = vdwg.mxu0
    %1179 = vmatpush.msra.mxu0 0.0
    %1180 = vmatpush.msra.mxu0 0.0
    %1181 = vmatpush.msra.mxu0 0.0
    %1182 = vmatpush.msra.mxu0 0.0
    %1183 = vmatpush.msra.mxu0 0.0
    %1184 = vmatpush.msra.mxu0 0.0
    %1185 = vmatpush.msra.mxu0 0.0
    %1186 = vmatpush.msra.mxu0 0.0
    %1187 = vmatpush.msra.mxu0 %v468
    %1188 = vmatpush.msra.mxu0 %v432
    %1189 = vmatpush.msra.mxu0 %v396
    %1190 = vmatpush.msra.mxu0 %v360
    %1191 = vmatpush.msra.mxu0 %v324
    %1192 = vmatpush.msra.mxu0 %v288
    %1193 = vmatpush.msra.mxu0 %v252
    %1194 = vmatpush.msra.mxu0 %v216
    %1195 = vmatmul.f32.gmra.mxu0 %v557
    %v1196 = vpop.f32.mrf.mxu0
    %v1197 = vadd.f32 %v514, %v1196
    %1198 = vdwg.mxu0
    %1199 = vmatpush.msra.mxu0 0.0
    %1200 = vmatpush.msra.mxu0 0.0
    %1201 = vmatpush.msra.mxu0 0.0
    %1202 = vmatpush.msra.mxu0 0.0
    %1203 = vmatpush.msra.mxu0 0.0
    %1204 = vmatpush.msra.mxu0 0.0
    %1205 = vmatpush.msra.mxu0 0.0
    %1206 = vmatpush.msra.mxu0 0.0
    %1207 = vmatpush.msra.mxu0 %v469
    %1208 = vmatpush.msra.mxu0 %v433
    %1209 = vmatpush.msra.mxu0 %v397
    %1210 = vmatpush.msra.mxu0 %v361
    %1211 = vmatpush.msra.mxu0 %v325
    %1212 = vmatpush.msra.mxu0 %v289
    %1213 = vmatpush.msra.mxu0 %v253
    %1214 = vmatpush.msra.mxu0 %v217
    %1215 = vmatmul.f32.gmra.mxu0 %v557
    %v1216 = vpop.f32.mrf.mxu0
    %v1217 = vadd.f32 %v515, %v1216
    %1218 = vdwg.mxu0
    %1219 = vmatpush.msra.mxu0 0.0
    %1220 = vmatpush.msra.mxu0 0.0
    %1221 = vmatpush.msra.mxu0 0.0
    %1222 = vmatpush.msra.mxu0 0.0
    %1223 = vmatpush.msra.mxu0 0.0
    %1224 = vmatpush.msra.mxu0 0.0
    %1225 = vmatpush.msra.mxu0 0.0
    %1226 = vmatpush.msra.mxu0 0.0
    %1227 = vmatpush.msra.mxu0 %v470
    %1228 = vmatpush.msra.mxu0 %v434
    %1229 = vmatpush.msra.mxu0 %v398
    %1230 = vmatpush.msra.mxu0 %v362
    %1231 = vmatpush.msra.mxu0 %v326
    %1232 = vmatpush.msra.mxu0 %v290
    %1233 = vmatpush.msra.mxu0 %v254
    %1234 = vmatpush.msra.mxu0 %v218
    %1235 = vmatmul.f32.gmra.mxu0 %v557
    %v1236 = vpop.f32.mrf.mxu0
    %v1237 = vadd.f32 %v516, %v1236
    %1238 = vdwg.mxu0
    %1239 = vmatpush.msra.mxu0 0.0
    %1240 = vmatpush.msra.mxu0 0.0
    %1241 = vmatpush.msra.mxu0 0.0
    %1242 = vmatpush.msra.mxu0 0.0
    %1243 = vmatpush.msra.mxu0 0.0
    %1244 = vmatpush.msra.mxu0 0.0
    %1245 = vmatpush.msra.mxu0 0.0
    %1246 = vmatpush.msra.mxu0 0.0
    %1247 = vmatpush.msra.mxu0 %v471
    %1248 = vmatpush.msra.mxu0 %v435
    %1249 = vmatpush.msra.mxu0 %v399
    %1250 = vmatpush.msra.mxu0 %v363
    %1251 = vmatpush.msra.mxu0 %v327
    %1252 = vmatpush.msra.mxu0 %v291
    %1253 = vmatpush.msra.mxu0 %v255
    %1254 = vmatpush.msra.mxu0 %v219
    %1255 = vmatmul.f32.gmra.mxu0 %v557
    %v1256 = vpop.f32.mrf.mxu0
    %v1257 = vadd.f32 %v517, %v1256
    %1258 = vdwg.mxu0
    %1259 = vmatpush.msra.mxu0 0.0
    %1260 = vmatpush.msra.mxu0 0.0
    %1261 = vmatpush.msra.mxu0 0.0
    %1262 = vmatpush.msra.mxu0 0.0
    %1263 = vmatpush.msra.mxu0 0.0
    %1264 = vmatpush.msra.mxu0 0.0
    %1265 = vmatpush.msra.mxu0 0.0
    %1266 = vmatpush.msra.mxu0 0.0
    %1267 = vmatpush.msra.mxu0 %v472
    %1268 = vmatpush.msra.mxu0 %v436
    %1269 = vmatpush.msra.mxu0 %v400
    %1270 = vmatpush.msra.mxu0 %v364
    %1271 = vmatpush.msra.mxu0 %v328
    %1272 = vmatpush.msra.mxu0 %v292
    %1273 = vmatpush.msra.mxu0 %v256
    %1274 = vmatpush.msra.mxu0 %v220
    %1275 = vmatmul.f32.gmra.mxu0 %v557
    %v1276 = vpop.f32.mrf.mxu0
    %v1277 = vadd.f32 %v518, %v1276
    %1278 = vdwg.mxu0
    %v1279 = vsub.f32 0.0, %v577
    %v1280 = vsub.f32 0.0, %v597
    %v1281 = vsub.f32 0.0, %v617
    %v1282 = vsub.f32 0.0, %v637
    %v1283 = vsub.f32 0.0, %v657
    %v1284 = vsub.f32 0.0, %v677
    %v1285 = vsub.f32 0.0, %v697
    %v1286 = vsub.f32 0.0, %v717
    %v1287 = vsub.f32 0.0, %v737
    %v1288 = vsub.f32 0.0, %v757
    %v1289 = vsub.f32 0.0, %v777
    %v1290 = vsub.f32 0.0, %v797
    %v1291 = vsub.f32 0.0, %v817
    %v1292 = vsub.f32 0.0, %v837
    %v1293 = vsub.f32 0.0, %v857
    %v1294 = vsub.f32 0.0, %v877
    %v1295 = vsub.f32 0.0, %v897
    %v1296 = vsub.f32 0.0, %v917
    %v1297 = vsub.f32 0.0, %v937
    %v1298 = vsub.f32 0.0, %v957
    %v1299 = vsub.f32 0.0, %v977
    %v1300 = vsub.f32 0.0, %v997
    %v1301 = vsub.f32 0.0, %v1017
    %v1302 = vsub.f32 0.0, %v1037
    %v1303 = vsub.f32 0.0, %v1057
    %v1304 = vsub.f32 0.0, %v1077
    %v1305 = vsub.f32 0.0, %v1097
    %v1306 = vsub.f32 0.0, %v1117
    %v1307 = vsub.f32 0.0, %v1137
    %v1308 = vsub.f32 0.0, %v1157
    %v1309 = vsub.f32 0.0, %v1177
    %v1310 = vsub.f32 0.0, %v1197
    %v1311 = vsub.f32 0.0, %v1217
    %v1312 = vsub.f32 0.0, %v1237
    %v1313 = vsub.f32 0.0, %v1257
    %v1314 = vsub.f32 0.0, %v1277
    %v1315 = vmul.f32 %v1279, 1.442695
    %v1316 = vpow.pop %v1315
    %v1317 = vmul.f32 %v1280, 1.442695
    %v1318 = vpow.pop %v1317
    %v1319 = vmul.f32 %v1281, 1.442695
    %v1320 = vpow.pop %v1319
    %v1321 = vmul.f32 %v1282, 1.442695
    %v1322 = vpow.pop %v1321
    %v1323 = vmul.f32 %v1283, 1.442695
    %v1324 = vpow.pop %v1323
    %v1325 = vmul.f32 %v1284, 1.442695
    %v1326 = vpow.pop %v1325
    %v1327 = vmul.f32 %v1285, 1.442695
    %v1328 = vpow.pop %v1327
    %v1329 = vmul.f32 %v1286, 1.442695
    %v1330 = vpow.pop %v1329
    %v1331 = vmul.f32 %v1287, 1.442695
    %v1332 = vpow.pop %v1331
    %v1333 = vmul.f32 %v1288, 1.442695
    %v1334 = vpow.pop %v1333
    %v1335 = vmul.f32 %v1289, 1.442695
    %v1336 = vpow.pop %v1335
    %v1337 = vmul.f32 %v1290, 1.442695
    %v1338 = vpow.pop %v1337
    %v1339 = vmul.f32 %v1291, 1.442695
    %v1340 = vpow.pop %v1339
    %v1341 = vmul.f32 %v1292, 1.442695
    %v1342 = vpow.pop %v1341
    %v1343 = vmul.f32 %v1293, 1.442695
    %v1344 = vpow.pop %v1343
    %v1345 = vmul.f32 %v1294, 1.442695
    %v1346 = vpow.pop %v1345
    %v1347 = vmul.f32 %v1295, 1.442695
    %v1348 = vpow.pop %v1347
    %v1349 = vmul.f32 %v1296, 1.442695
    %v1350 = vpow.pop %v1349
    %v1351 = vmul.f32 %v1297, 1.442695
    %v1352 = vpow.pop %v1351
    %v1353 = vmul.f32 %v1298, 1.442695
    %v1354 = vpow.pop %v1353
    %v1355 = vmul.f32 %v1299, 1.442695
    %v1356 = vpow.pop %v1355
    %v1357 = vmul.f32 %v1300, 1.442695
    %v1358 = vpow.pop %v1357
    %v1359 = vmul.f32 %v1301, 1.442695
    %v1360 = vpow.pop %v1359
    %v1361 = vmul.f32 %v1302, 1.442695
    %v1362 = vpow.pop %v1361
    %v1363 = vmul.f32 %v1303, 1.442695
    %v1364 = vpow.pop %v1363
    %v1365 = vmul.f32 %v1304, 1.442695
    %v1366 = vpow.pop %v1365
    %v1367 = vmul.f32 %v1305, 1.442695
    %v1368 = vpow.pop %v1367
    %v1369 = vmul.f32 %v1306, 1.442695
    %v1370 = vpow.pop %v1369
    %v1371 = vmul.f32 %v1307, 1.442695
    %v1372 = vpow.pop %v1371
    %v1373 = vmul.f32 %v1308, 1.442695
    %v1374 = vpow.pop %v1373
    %v1375 = vmul.f32 %v1309, 1.442695
    %v1376 = vpow.pop %v1375
    %v1377 = vmul.f32 %v1310, 1.442695
    %v1378 = vpow.pop %v1377
    %v1379 = vmul.f32 %v1311, 1.442695
    %v1380 = vpow.pop %v1379
    %v1381 = vmul.f32 %v1312, 1.442695
    %v1382 = vpow.pop %v1381
    %v1383 = vmul.f32 %v1313, 1.442695
    %v1384 = vpow.pop %v1383
    %v1385 = vmul.f32 %v1314, 1.442695
    %v1386 = vpow.pop %v1385
    %v1387 = vadd.f32 %v1316, 1.0
    %v1388 = vadd.f32 %v1318, 1.0
    %v1389 = vadd.f32 %v1320, 1.0
    %v1390 = vadd.f32 %v1322, 1.0
    %v1391 = vadd.f32 %v1324, 1.0
    %v1392 = vadd.f32 %v1326, 1.0
    %v1393 = vadd.f32 %v1328, 1.0
    %v1394 = vadd.f32 %v1330, 1.0
    %v1395 = vadd.f32 %v1332, 1.0
    %v1396 = vadd.f32 %v1334, 1.0
    %v1397 = vadd.f32 %v1336, 1.0
    %v1398 = vadd.f32 %v1338, 1.0
    %v1399 = vadd.f32 %v1340, 1.0
    %v1400 = vadd.f32 %v1342, 1.0
    %v1401 = vadd.f32 %v1344, 1.0
    %v1402 = vadd.f32 %v1346, 1.0
    %v1403 = vadd.f32 %v1348, 1.0
    %v1404 = vadd.f32 %v1350, 1.0
    %v1405 = vadd.f32 %v1352, 1.0
    %v1406 = vadd.f32 %v1354, 1.0
    %v1407 = vadd.f32 %v1356, 1.0
    %v1408 = vadd.f32 %v1358, 1.0
    %v1409 = vadd.f32 %v1360, 1.0
    %v1410 = vadd.f32 %v1362, 1.0
    %v1411 = vadd.f32 %v1364, 1.0
    %v1412 = vadd.f32 %v1366, 1.0
    %v1413 = vadd.f32 %v1368, 1.0
    %v1414 = vadd.f32 %v1370, 1.0
    %v1415 = vadd.f32 %v1372, 1.0
    %v1416 = vadd.f32 %v1374, 1.0
    %v1417 = vadd.f32 %v1376, 1.0
    %v1418 = vadd.f32 %v1378, 1.0
    %v1419 = vadd.f32 %v1380, 1.0
    %v1420 = vadd.f32 %v1382, 1.0
    %v1421 = vadd.f32 %v1384, 1.0
    %v1422 = vadd.f32 %v1386, 1.0
    %v1423 = vrcp.pop %v1387
    %v1424 = vrcp.pop %v1388
    %v1425 = vrcp.pop %v1389
    %v1426 = vrcp.pop %v1390
    %v1427 = vrcp.pop %v1391
    %v1428 = vrcp.pop %v1392
    %v1429 = vrcp.pop %v1393
    %v1430 = vrcp.pop %v1394
    %v1431 = vrcp.pop %v1395
    %v1432 = vrcp.pop %v1396
    %v1433 = vrcp.pop %v1397
    %v1434 = vrcp.pop %v1398
    %v1435 = vrcp.pop %v1399
    %v1436 = vrcp.pop %v1400
    %v1437 = vrcp.pop %v1401
    %v1438 = vrcp.pop %v1402
    %v1439 = vrcp.pop %v1403
    %v1440 = vrcp.pop %v1404
    %v1441 = vrcp.pop %v1405
    %v1442 = vrcp.pop %v1406
    %v1443 = vrcp.pop %v1407
    %v1444 = vrcp.pop %v1408
    %v1445 = vrcp.pop %v1409
    %v1446 = vrcp.pop %v1410
    %v1447 = vrcp.pop %v1411
    %v1448 = vrcp.pop %v1412
    %v1449 = vrcp.pop %v1413
    %v1450 = vrcp.pop %v1414
    %v1451 = vrcp.pop %v1415
    %v1452 = vrcp.pop %v1416
    %v1453 = vrcp.pop %v1417
    %v1454 = vrcp.pop %v1418
    %v1455 = vrcp.pop %v1419
    %v1456 = vrcp.pop %v1420
    %v1457 = vrcp.pop %v1421
    %v1458 = vrcp.pop %v1422
    %v1459 = vld [vmem:[%s17] sm:$0xff]
    %v1460 = vld [vmem:[%s17 + $0x8] sm:$0xff]
    %v1461 = vld [vmem:[%s17 + $0x10] sm:$0xff]
    %v1462 = vld [vmem:[%s17 + $0x18] sm:$0xff]
    %v1463 = vld [vmem:[%s17 + $0x20] sm:$0xff]
    %v1464 = vld [vmem:[%s17 + $0x28] sm:$0xff]
    %v1465 = vld [vmem:[%s17 + $0x30] sm:$0xff]
    %v1466 = vld [vmem:[%s17 + $0x38] sm:$0xff]
    %v1467 = vld [vmem:[%s17 + $0x40] sm:$0xff]
    %v1468 = vld [vmem:[%s17 + $0x48] sm:$0xff]
    %v1469 = vld [vmem:[%s17 + $0x50] sm:$0xff]
    %v1470 = vld [vmem:[%s17 + $0x58] sm:$0xff]
    %v1471 = vld [vmem:[%s17 + $0x60] sm:$0xff]
    %v1472 = vld [vmem:[%s17 + $0x68] sm:$0xff]
    %v1473 = vld [vmem:[%s17 + $0x70] sm:$0xff]
    %v1474 = vld [vmem:[%s17 + $0x78] sm:$0xff]
    %v1475 = vld [vmem:[%s17 + $0x80] sm:$0xff]
    %v1476 = vld [vmem:[%s17 + $0x88] sm:$0xff]
    %v1477 = vld [vmem:[%s17 + $0x90] sm:$0xff]
    %v1478 = vld [vmem:[%s17 + $0x98] sm:$0xff]
    %v1479 = vld [vmem:[%s17 + $0xa0] sm:$0xff]
    %v1480 = vld [vmem:[%s17 + $0xa8] sm:$0xff]
    %v1481 = vld [vmem:[%s17 + $0xb0] sm:$0xff]
    %v1482 = vld [vmem:[%s17 + $0xb8] sm:$0xff]
    %v1483 = vld [vmem:[%s17 + $0xc0] sm:$0xff]
    %v1484 = vld [vmem:[%s17 + $0xc8] sm:$0xff]
    %v1485 = vld [vmem:[%s17 + $0xd0] sm:$0xff]
    %v1486 = vld [vmem:[%s17 + $0xd8] sm:$0xff]
    %v1487 = vld [vmem:[%s17 + $0xe0] sm:$0xff]
    %v1488 = vld [vmem:[%s17 + $0xe8] sm:$0xff]
    %v1489 = vld [vmem:[%s17 + $0xf0] sm:$0xff]
    %v1490 = vld [vmem:[%s17 + $0xf8] sm:$0xff]
    %v1491 = vld [vmem:[%s17 + $0x100] sm:$0xff]
    %v1492 = vld [vmem:[%s17 + $0x108] sm:$0xff]
    %v1493 = vld [vmem:[%s17 + $0x110] sm:$0xff]
    %v1494 = vld [vmem:[%s17 + $0x118] sm:$0xff]
    %v1495 = vld [vmem:[%s17 + $0x120] sm:$0xff]
    %v1496 = vld [vmem:[%s17 + $0x128] sm:$0xff]
    %v1497 = vld [vmem:[%s17 + $0x130] sm:$0xff]
    %v1498 = vld [vmem:[%s17 + $0x138] sm:$0xff]
    %v1499 = vld [vmem:[%s17 + $0x140] sm:$0xff]
    %v1500 = vld [vmem:[%s17 + $0x148] sm:$0xff]
    %v1501 = vld [vmem:[%s17 + $0x150] sm:$0xff]
    %v1502 = vld [vmem:[%s17 + $0x158] sm:$0xff]
    %v1503 = vld [vmem:[%s17 + $0x160] sm:$0xff]
    %v1504 = vld [vmem:[%s17 + $0x168] sm:$0xff]
    %v1505 = vld [vmem:[%s17 + $0x170] sm:$0xff]
    %v1506 = vld [vmem:[%s17 + $0x178] sm:$0xff]
    %v1507 = vld [vmem:[%s17 + $0x180] sm:$0xff]
    %v1508 = vld [vmem:[%s17 + $0x188] sm:$0xff]
    %v1509 = vld [vmem:[%s17 + $0x190] sm:$0xff]
    %v1510 = vld [vmem:[%s17 + $0x198] sm:$0xff]
    %v1511 = vld [vmem:[%s17 + $0x1a0] sm:$0xff]
    %v1512 = vld [vmem:[%s17 + $0x1a8] sm:$0xff]
    %v1513 = vld [vmem:[%s17 + $0x1b0] sm:$0xff]
    %v1514 = vld [vmem:[%s17 + $0x1b8] sm:$0xff]
    %v1515 = vld [vmem:[%s17 + $0x1c0] sm:$0xff]
    %v1516 = vld [vmem:[%s17 + $0x1c8] sm:$0xff]
    %v1517 = vld [vmem:[%s17 + $0x1d0] sm:$0xff]
    %v1518 = vld [vmem:[%s17 + $0x1d8] sm:$0xff]
    %v1519 = vld [vmem:[%s17 + $0x1e0] sm:$0xff]
    %v1520 = vld [vmem:[%s17 + $0x1e8] sm:$0xff]
    %v1521 = vld [vmem:[%s17 + $0x1f0] sm:$0xff]
    %v1522 = vld [vmem:[%s17 + $0x1f8] sm:$0xff]
    %v1523 = vld [vmem:[%s17 + $0x200] sm:$0xff]
    %v1524 = vld [vmem:[%s17 + $0x208] sm:$0xff]
    %v1525 = vld [vmem:[%s17 + $0x210] sm:$0xff]
    %v1526 = vld [vmem:[%s17 + $0x218] sm:$0xff]
    %v1527 = vld [vmem:[%s17 + $0x220] sm:$0xff]
    %v1528 = vld [vmem:[%s17 + $0x228] sm:$0xff]
    %v1529 = vld [vmem:[%s17 + $0x230] sm:$0xff]
    %v1530 = vld [vmem:[%s17 + $0x238] sm:$0xff]
    %v1531 = vld [vmem:[%s17 + $0x240] sm:$0xff]
    %v1532 = vld [vmem:[%s17 + $0x248] sm:$0xff]
    %v1533 = vld [vmem:[%s17 + $0x250] sm:$0xff]
    %v1534 = vld [vmem:[%s17 + $0x258] sm:$0xff]
    %v1535 = vld [vmem:[%s17 + $0x260] sm:$0xff]
    %v1536 = vld [vmem:[%s17 + $0x268] sm:$0xff]
    %v1537 = vld [vmem:[%s17 + $0x270] sm:$0xff]
    %v1538 = vld [vmem:[%s17 + $0x278] sm:$0xff]
    %v1539 = vld [vmem:[%s17 + $0x280] sm:$0xff]
    %v1540 = vld [vmem:[%s17 + $0x288] sm:$0xff]
    %v1541 = vld [vmem:[%s17 + $0x290] sm:$0xff]
    %v1542 = vld [vmem:[%s17 + $0x298] sm:$0xff]
    %v1543 = vld [vmem:[%s17 + $0x2a0] sm:$0xff]
    %v1544 = vld [vmem:[%s17 + $0x2a8] sm:$0xff]
    %v1545 = vld [vmem:[%s17 + $0x2b0] sm:$0xff]
    %v1546 = vld [vmem:[%s17 + $0x2b8] sm:$0xff]
    %v1547 = vld [vmem:[%s17 + $0x2c0] sm:$0xff]
    %v1548 = vld [vmem:[%s17 + $0x2c8] sm:$0xff]
    %v1549 = vld [vmem:[%s17 + $0x2d0] sm:$0xff]
    %v1550 = vld [vmem:[%s17 + $0x2d8] sm:$0xff]
    %v1551 = vld [vmem:[%s17 + $0x2e0] sm:$0xff]
    %v1552 = vld [vmem:[%s17 + $0x2e8] sm:$0xff]
    %v1553 = vld [vmem:[%s17 + $0x2f0] sm:$0xff]
    %v1554 = vld [vmem:[%s17 + $0x2f8] sm:$0xff]
    %v1555 = vld [vmem:[%s17 + $0x300] sm:$0xff]
    %v1556 = vld [vmem:[%s17 + $0x308] sm:$0xff]
    %v1557 = vld [vmem:[%s17 + $0x310] sm:$0xff]
    %v1558 = vld [vmem:[%s17 + $0x318] sm:$0xff]
    %v1559 = vld [vmem:[%s17 + $0x320] sm:$0xff]
    %v1560 = vld [vmem:[%s17 + $0x328] sm:$0xff]
    %v1561 = vld [vmem:[%s17 + $0x330] sm:$0xff]
    %v1562 = vld [vmem:[%s17 + $0x338] sm:$0xff]
    %v1563 = vld [vmem:[%s17 + $0x340] sm:$0xff]
    %v1564 = vld [vmem:[%s17 + $0x348] sm:$0xff]
    %v1565 = vld [vmem:[%s17 + $0x350] sm:$0xff]
    %v1566 = vld [vmem:[%s17 + $0x358] sm:$0xff]
    %v1567 = vld [vmem:[%s17 + $0x360] sm:$0xff]
    %v1568 = vld [vmem:[%s17 + $0x368] sm:$0xff]
    %v1569 = vld [vmem:[%s17 + $0x370] sm:$0xff]
    %v1570 = vld [vmem:[%s17 + $0x378] sm:$0xff]
    %v1571 = vld [vmem:[%s17 + $0x380] sm:$0xff]
    %v1572 = vld [vmem:[%s17 + $0x388] sm:$0xff]
    %v1573 = vld [vmem:[%s17 + $0x390] sm:$0xff]
    %v1574 = vld [vmem:[%s17 + $0x398] sm:$0xff]
    %v1575 = vld [vmem:[%s17 + $0x3a0] sm:$0xff]
    %v1576 = vld [vmem:[%s17 + $0x3a8] sm:$0xff]
    %v1577 = vld [vmem:[%s17 + $0x3b0] sm:$0xff]
    %v1578 = vld [vmem:[%s17 + $0x3b8] sm:$0xff]
    %v1579 = vld [vmem:[%s17 + $0x3c0] sm:$0xff]
    %v1580 = vld [vmem:[%s17 + $0x3c8] sm:$0xff]
    %v1581 = vld [vmem:[%s17 + $0x3d0] sm:$0xff]
    %v1582 = vld [vmem:[%s17 + $0x3d8] sm:$0xff]
    %v1583 = vld [vmem:[%s17 + $0x3e0] sm:$0xff]
    %v1584 = vld [vmem:[%s17 + $0x3e8] sm:$0xff]
    %v1585 = vld [vmem:[%s17 + $0x3f0] sm:$0xff]
    %v1586 = vld [vmem:[%s17 + $0x3f8] sm:$0xff]
    %v1587 = vld [vmem:[%s17 + $0x400] sm:$0xff]
    %v1588 = vld [vmem:[%s17 + $0x408] sm:$0xff]
    %v1589 = vld [vmem:[%s17 + $0x410] sm:$0xff]
    %v1590 = vld [vmem:[%s17 + $0x418] sm:$0xff]
    %v1591 = vld [vmem:[%s17 + $0x420] sm:$0xff]
    %v1592 = vld [vmem:[%s17 + $0x428] sm:$0xff]
    %v1593 = vld [vmem:[%s17 + $0x430] sm:$0xff]
    %v1594 = vld [vmem:[%s17 + $0x438] sm:$0xff]
    %v1595 = vld [vmem:[%s17 + $0x440] sm:$0xff]
    %v1596 = vld [vmem:[%s17 + $0x448] sm:$0xff]
    %v1597 = vld [vmem:[%s17 + $0x450] sm:$0xff]
    %v1598 = vld [vmem:[%s17 + $0x458] sm:$0xff]
    %v1599 = vld [vmem:[%s17 + $0x460] sm:$0xff]
    %v1600 = vld [vmem:[%s17 + $0x468] sm:$0xff]
    %v1601 = vld [vmem:[%s17 + $0x470] sm:$0xff]
    %v1602 = vld [vmem:[%s17 + $0x478] sm:$0xff]
    %v1603 = vld [vmem:[%s17 + $0x480] sm:$0xff]
    %v1604 = vld [vmem:[%s17 + $0x488] sm:$0xff]
    %v1605 = vld [vmem:[%s17 + $0x490] sm:$0xff]
    %v1606 = vld [vmem:[%s17 + $0x498] sm:$0xff]
    %v1607 = vld [vmem:[%s17 + $0x4a0] sm:$0xff]
    %v1608 = vld [vmem:[%s17 + $0x4a8] sm:$0xff]
    %v1609 = vld [vmem:[%s17 + $0x4b0] sm:$0xff]
    %v1610 = vld [vmem:[%s17 + $0x4b8] sm:$0xff]
    %v1611 = vld [vmem:[%s17 + $0x4c0] sm:$0xff]
    %v1612 = vld [vmem:[%s17 + $0x4c8] sm:$0xff]
    %v1613 = vld [vmem:[%s17 + $0x4d0] sm:$0xff]
    %v1614 = vld [vmem:[%s17 + $0x4d8] sm:$0xff]
    %v1615 = vld [vmem:[%s17 + $0x4e0] sm:$0xff]
    %v1616 = vld [vmem:[%s17 + $0x4e8] sm:$0xff]
    %v1617 = vld [vmem:[%s17 + $0x4f0] sm:$0xff]
    %v1618 = vld [vmem:[%s17 + $0x4f8] sm:$0xff]
    %v1619 = vld [vmem:[%s17 + $0x500] sm:$0xff]
    %v1620 = vld [vmem:[%s17 + $0x508] sm:$0xff]
    %v1621 = vld [vmem:[%s17 + $0x510] sm:$0xff]
    %v1622 = vld [vmem:[%s17 + $0x518] sm:$0xff]
    %v1623 = vld [vmem:[%s17 + $0x520] sm:$0xff]
    %v1624 = vld [vmem:[%s17 + $0x528] sm:$0xff]
    %v1625 = vld [vmem:[%s17 + $0x530] sm:$0xff]
    %v1626 = vld [vmem:[%s17 + $0x538] sm:$0xff]
    %v1627 = vld [vmem:[%s17 + $0x540] sm:$0xff]
    %v1628 = vld [vmem:[%s17 + $0x548] sm:$0xff]
    %v1629 = vld [vmem:[%s17 + $0x550] sm:$0xff]
    %v1630 = vld [vmem:[%s17 + $0x558] sm:$0xff]
    %v1631 = vld [vmem:[%s17 + $0x560] sm:$0xff]
    %v1632 = vld [vmem:[%s17 + $0x568] sm:$0xff]
    %v1633 = vld [vmem:[%s17 + $0x570] sm:$0xff]
    %v1634 = vld [vmem:[%s17 + $0x578] sm:$0xff]
    %v1635 = vld [vmem:[%s17 + $0x580] sm:$0xff]
    %v1636 = vld [vmem:[%s17 + $0x588] sm:$0xff]
    %v1637 = vld [vmem:[%s17 + $0x590] sm:$0xff]
    %v1638 = vld [vmem:[%s17 + $0x598] sm:$0xff]
    %v1639 = vld [vmem:[%s17 + $0x5a0] sm:$0xff]
    %v1640 = vld [vmem:[%s17 + $0x5a8] sm:$0xff]
    %v1641 = vld [vmem:[%s17 + $0x5b0] sm:$0xff]
    %v1642 = vld [vmem:[%s17 + $0x5b8] sm:$0xff]
    %v1643 = vld [vmem:[%s17 + $0x5c0] sm:$0xff]
    %v1644 = vld [vmem:[%s17 + $0x5c8] sm:$0xff]
    %v1645 = vld [vmem:[%s17 + $0x5d0] sm:$0xff]
    %v1646 = vld [vmem:[%s17 + $0x5d8] sm:$0xff]
    %v1647 = vld [vmem:[%s17 + $0x5e0] sm:$0xff]
    %v1648 = vld [vmem:[%s17 + $0x5e8] sm:$0xff]
    %v1649 = vld [vmem:[%s17 + $0x5f0] sm:$0xff]
    %v1650 = vld [vmem:[%s17 + $0x5f8] sm:$0xff]
    %v1651 = vld [vmem:[%s17 + $0x600] sm:$0xff]
    %v1652 = vld [vmem:[%s17 + $0x608] sm:$0xff]
    %v1653 = vld [vmem:[%s17 + $0x610] sm:$0xff]
    %v1654 = vld [vmem:[%s17 + $0x618] sm:$0xff]
    %v1655 = vld [vmem:[%s17 + $0x620] sm:$0xff]
    %v1656 = vld [vmem:[%s17 + $0x628] sm:$0xff]
    %v1657 = vld [vmem:[%s17 + $0x630] sm:$0xff]
    %v1658 = vld [vmem:[%s17 + $0x638] sm:$0xff]
    %v1659 = vld [vmem:[%s17 + $0x640] sm:$0xff]
    %v1660 = vld [vmem:[%s17 + $0x648] sm:$0xff]
    %v1661 = vld [vmem:[%s17 + $0x650] sm:$0xff]
    %v1662 = vld [vmem:[%s17 + $0x658] sm:$0xff]
    %v1663 = vld [vmem:[%s17 + $0x660] sm:$0xff]
    %v1664 = vld [vmem:[%s17 + $0x668] sm:$0xff]
    %v1665 = vld [vmem:[%s17 + $0x670] sm:$0xff]
    %v1666 = vld [vmem:[%s17 + $0x678] sm:$0xff]
    %v1667 = vld [vmem:[%s17 + $0x680] sm:$0xff]
    %v1668 = vld [vmem:[%s17 + $0x688] sm:$0xff]
    %v1669 = vld [vmem:[%s17 + $0x690] sm:$0xff]
    %v1670 = vld [vmem:[%s17 + $0x698] sm:$0xff]
    %v1671 = vld [vmem:[%s17 + $0x6a0] sm:$0xff]
    %v1672 = vld [vmem:[%s17 + $0x6a8] sm:$0xff]
    %v1673 = vld [vmem:[%s17 + $0x6b0] sm:$0xff]
    %v1674 = vld [vmem:[%s17 + $0x6b8] sm:$0xff]
    %v1675 = vld [vmem:[%s17 + $0x6c0] sm:$0xff]
    %v1676 = vld [vmem:[%s17 + $0x6c8] sm:$0xff]
    %v1677 = vld [vmem:[%s17 + $0x6d0] sm:$0xff]
    %v1678 = vld [vmem:[%s17 + $0x6d8] sm:$0xff]
    %v1679 = vld [vmem:[%s17 + $0x6e0] sm:$0xff]
    %v1680 = vld [vmem:[%s17 + $0x6e8] sm:$0xff]
    %v1681 = vld [vmem:[%s17 + $0x6f0] sm:$0xff]
    %v1682 = vld [vmem:[%s17 + $0x6f8] sm:$0xff]
    %v1683 = vld [vmem:[%s17 + $0x700] sm:$0xff]
    %v1684 = vld [vmem:[%s17 + $0x708] sm:$0xff]
    %v1685 = vld [vmem:[%s17 + $0x710] sm:$0xff]
    %v1686 = vld [vmem:[%s17 + $0x718] sm:$0xff]
    %v1687 = vld [vmem:[%s17 + $0x720] sm:$0xff]
    %v1688 = vld [vmem:[%s17 + $0x728] sm:$0xff]
    %v1689 = vld [vmem:[%s17 + $0x730] sm:$0xff]
    %v1690 = vld [vmem:[%s17 + $0x738] sm:$0xff]
    %v1691 = vld [vmem:[%s17 + $0x740] sm:$0xff]
    %v1692 = vld [vmem:[%s17 + $0x748] sm:$0xff]
    %v1693 = vld [vmem:[%s17 + $0x750] sm:$0xff]
    %v1694 = vld [vmem:[%s17 + $0x758] sm:$0xff]
    %v1695 = vld [vmem:[%s17 + $0x760] sm:$0xff]
    %v1696 = vld [vmem:[%s17 + $0x768] sm:$0xff]
    %v1697 = vld [vmem:[%s17 + $0x770] sm:$0xff]
    %v1698 = vld [vmem:[%s17 + $0x778] sm:$0xff]
    %v1699 = vld [vmem:[%s17 + $0x780] sm:$0xff]
    %v1700 = vld [vmem:[%s17 + $0x788] sm:$0xff]
    %v1701 = vld [vmem:[%s17 + $0x790] sm:$0xff]
    %v1702 = vld [vmem:[%s17 + $0x798] sm:$0xff]
    %v1703 = vld [vmem:[%s17 + $0x7a0] sm:$0xff]
    %v1704 = vld [vmem:[%s17 + $0x7a8] sm:$0xff]
    %v1705 = vld [vmem:[%s17 + $0x7b0] sm:$0xff]
    %v1706 = vld [vmem:[%s17 + $0x7b8] sm:$0xff]
    %v1707 = vld [vmem:[%s17 + $0x7c0] sm:$0xff]
    %v1708 = vld [vmem:[%s17 + $0x7c8] sm:$0xff]
    %v1709 = vld [vmem:[%s17 + $0x7d0] sm:$0xff]
    %v1710 = vld [vmem:[%s17 + $0x7d8] sm:$0xff]
    %v1711 = vld [vmem:[%s17 + $0x7e0] sm:$0xff]
    %v1712 = vld [vmem:[%s17 + $0x7e8] sm:$0xff]
    %v1713 = vld [vmem:[%s17 + $0x7f0] sm:$0xff]
    %v1714 = vld [vmem:[%s17 + $0x7f8] sm:$0xff]
    %v1715 = vld [vmem:[%s17 + $0x800] sm:$0xff]
    %v1716 = vld [vmem:[%s17 + $0x808] sm:$0xff]
    %v1717 = vld [vmem:[%s17 + $0x810] sm:$0xff]
    %v1718 = vld [vmem:[%s17 + $0x818] sm:$0xff]
    %v1719 = vld [vmem:[%s17 + $0x820] sm:$0xff]
    %v1720 = vld [vmem:[%s17 + $0x828] sm:$0xff]
    %v1721 = vld [vmem:[%s17 + $0x830] sm:$0xff]
    %v1722 = vld [vmem:[%s17 + $0x838] sm:$0xff]
    %v1723 = vld [vmem:[%s17 + $0x840] sm:$0xff]
    %v1724 = vld [vmem:[%s17 + $0x848] sm:$0xff]
    %v1725 = vld [vmem:[%s17 + $0x850] sm:$0xff]
    %v1726 = vld [vmem:[%s17 + $0x858] sm:$0xff]
    %v1727 = vld [vmem:[%s17 + $0x860] sm:$0xff]
    %v1728 = vld [vmem:[%s17 + $0x868] sm:$0xff]
    %v1729 = vld [vmem:[%s17 + $0x870] sm:$0xff]
    %v1730 = vld [vmem:[%s17 + $0x878] sm:$0xff]
    %v1731 = vld [vmem:[%s17 + $0x880] sm:$0xff]
    %v1732 = vld [vmem:[%s17 + $0x888] sm:$0xff]
    %v1733 = vld [vmem:[%s17 + $0x890] sm:$0xff]
    %v1734 = vld [vmem:[%s17 + $0x898] sm:$0xff]
    %v1735 = vld [vmem:[%s17 + $0x8a0] sm:$0xff]
    %v1736 = vld [vmem:[%s17 + $0x8a8] sm:$0xff]
    %v1737 = vld [vmem:[%s17 + $0x8b0] sm:$0xff]
    %v1738 = vld [vmem:[%s17 + $0x8b8] sm:$0xff]
    %v1739 = vld [vmem:[%s17 + $0x8c0] sm:$0xff]
    %v1740 = vld [vmem:[%s17 + $0x8c8] sm:$0xff]
    %v1741 = vld [vmem:[%s17 + $0x8d0] sm:$0xff]
    %v1742 = vld [vmem:[%s17 + $0x8d8] sm:$0xff]
    %v1743 = vld [vmem:[%s17 + $0x8e0] sm:$0xff]
    %v1744 = vld [vmem:[%s17 + $0x8e8] sm:$0xff]
    %v1745 = vld [vmem:[%s17 + $0x8f0] sm:$0xff]
    %v1746 = vld [vmem:[%s17 + $0x8f8] sm:$0xff]
    %v1747 = vld [vmem:[%s17 + $0x900] sm:$0xff]
    %v1748 = vld [vmem:[%s17 + $0x908] sm:$0xff]
    %v1749 = vld [vmem:[%s17 + $0x910] sm:$0xff]
    %v1750 = vld [vmem:[%s17 + $0x918] sm:$0xff]
    %v1751 = vld [vmem:[%s17 + $0x920] sm:$0xff]
    %v1752 = vld [vmem:[%s17 + $0x928] sm:$0xff]
    %v1753 = vld [vmem:[%s17 + $0x930] sm:$0xff]
    %v1754 = vld [vmem:[%s17 + $0x938] sm:$0xff]
    %v1755 = vld [vmem:[%s17 + $0x940] sm:$0xff]
    %v1756 = vld [vmem:[%s17 + $0x948] sm:$0xff]
    %v1757 = vld [vmem:[%s17 + $0x950] sm:$0xff]
    %v1758 = vld [vmem:[%s17 + $0x958] sm:$0xff]
    %v1759 = vld [vmem:[%s17 + $0x960] sm:$0xff]
    %v1760 = vld [vmem:[%s17 + $0x968] sm:$0xff]
    %v1761 = vld [vmem:[%s17 + $0x970] sm:$0xff]
    %v1762 = vld [vmem:[%s17 + $0x978] sm:$0xff]
    %v1763 = vld [vmem:[%s17 + $0x980] sm:$0xff]
    %v1764 = vld [vmem:[%s17 + $0x988] sm:$0xff]
    %v1765 = vld [vmem:[%s17 + $0x990] sm:$0xff]
    %v1766 = vld [vmem:[%s17 + $0x998] sm:$0xff]
    %v1767 = vld [vmem:[%s17 + $0x9a0] sm:$0xff]
    %v1768 = vld [vmem:[%s17 + $0x9a8] sm:$0xff]
    %v1769 = vld [vmem:[%s17 + $0x9b0] sm:$0xff]
    %v1770 = vld [vmem:[%s17 + $0x9b8] sm:$0xff]
    %v1771 = vld [vmem:[%s17 + $0x9c0] sm:$0xff]
    %v1772 = vld [vmem:[%s17 + $0x9c8] sm:$0xff]
    %v1773 = vld [vmem:[%s17 + $0x9d0] sm:$0xff]
    %v1774 = vld [vmem:[%s17 + $0x9d8] sm:$0xff]
    %v1775 = vld [vmem:[%s17 + $0x9e0] sm:$0xff]
    %v1776 = vld [vmem:[%s17 + $0x9e8] sm:$0xff]
    %v1777 = vld [vmem:[%s17 + $0x9f0] sm:$0xff]
    %v1778 = vld [vmem:[%s17 + $0x9f8] sm:$0xff]
    %v1779 = vld [vmem:[%s17 + $0xa00] sm:$0xff]
    %v1780 = vld [vmem:[%s17 + $0xa08] sm:$0xff]
    %v1781 = vld [vmem:[%s17 + $0xa10] sm:$0xff]
    %v1782 = vld [vmem:[%s17 + $0xa18] sm:$0xff]
    %v1783 = vld [vmem:[%s17 + $0xa20] sm:$0xff]
    %v1784 = vld [vmem:[%s17 + $0xa28] sm:$0xff]
    %v1785 = vld [vmem:[%s17 + $0xa30] sm:$0xff]
    %v1786 = vld [vmem:[%s17 + $0xa38] sm:$0xff]
    %v1787 = vld [vmem:[%s17 + $0xa40] sm:$0xff]
    %v1788 = vld [vmem:[%s17 + $0xa48] sm:$0xff]
    %v1789 = vld [vmem:[%s17 + $0xa50] sm:$0xff]
    %v1790 = vld [vmem:[%s17 + $0xa58] sm:$0xff]
    %v1791 = vld [vmem:[%s17 + $0xa60] sm:$0xff]
    %v1792 = vld [vmem:[%s17 + $0xa68] sm:$0xff]
    %v1793 = vld [vmem:[%s17 + $0xa70] sm:$0xff]
    %v1794 = vld [vmem:[%s17 + $0xa78] sm:$0xff]
    %v1795 = vld [vmem:[%s17 + $0xa80] sm:$0xff]
    %v1796 = vld [vmem:[%s17 + $0xa88] sm:$0xff]
    %v1797 = vld [vmem:[%s17 + $0xa90] sm:$0xff]
    %v1798 = vld [vmem:[%s17 + $0xa98] sm:$0xff]
    %v1799 = vld [vmem:[%s17 + $0xaa0] sm:$0xff]
    %v1800 = vld [vmem:[%s17 + $0xaa8] sm:$0xff]
    %v1801 = vld [vmem:[%s17 + $0xab0] sm:$0xff]
    %v1802 = vld [vmem:[%s17 + $0xab8] sm:$0xff]
    %v1803 = vld [vmem:[%s17 + $0xac0] sm:$0xff]
    %v1804 = vld [vmem:[%s17 + $0xac8] sm:$0xff]
    %v1805 = vld [vmem:[%s17 + $0xad0] sm:$0xff]
    %v1806 = vld [vmem:[%s17 + $0xad8] sm:$0xff]
    %v1807 = vld [vmem:[%s17 + $0xae0] sm:$0xff]
    %v1808 = vld [vmem:[%s17 + $0xae8] sm:$0xff]
    %v1809 = vld [vmem:[%s17 + $0xaf0] sm:$0xff]
    %v1810 = vld [vmem:[%s17 + $0xaf8] sm:$0xff]
    %v1811 = vld [vmem:[%s17 + $0xb00] sm:$0xff]
    %v1812 = vld [vmem:[%s17 + $0xb08] sm:$0xff]
    %v1813 = vld [vmem:[%s17 + $0xb10] sm:$0xff]
    %v1814 = vld [vmem:[%s17 + $0xb18] sm:$0xff]
    %v1815 = vld [vmem:[%s17 + $0xb20] sm:$0xff]
    %v1816 = vld [vmem:[%s17 + $0xb28] sm:$0xff]
    %v1817 = vld [vmem:[%s17 + $0xb30] sm:$0xff]
    %v1818 = vld [vmem:[%s17 + $0xb38] sm:$0xff]
    %v1819 = vld [vmem:[%s17 + $0xb40] sm:$0xff]
    %v1820 = vld [vmem:[%s17 + $0xb48] sm:$0xff]
    %v1821 = vld [vmem:[%s17 + $0xb50] sm:$0xff]
    %v1822 = vld [vmem:[%s17 + $0xb58] sm:$0xff]
    %v1823 = vld [vmem:[%s17 + $0xb60] sm:$0xff]
    %v1824 = vld [vmem:[%s17 + $0xb68] sm:$0xff]
    %v1825 = vld [vmem:[%s17 + $0xb70] sm:$0xff]
    %v1826 = vld [vmem:[%s17 + $0xb78] sm:$0xff]
    %v1827 = vld [vmem:[%s17 + $0xb80] sm:$0xff]
    %v1828 = vld [vmem:[%s17 + $0xb88] sm:$0xff]
    %v1829 = vld [vmem:[%s17 + $0xb90] sm:$0xff]
    %v1830 = vld [vmem:[%s17 + $0xb98] sm:$0xff]
    %v1831 = vld [vmem:[%s17 + $0xba0] sm:$0xff]
    %v1832 = vld [vmem:[%s17 + $0xba8] sm:$0xff]
    %v1833 = vld [vmem:[%s17 + $0xbb0] sm:$0xff]
    %v1834 = vld [vmem:[%s17 + $0xbb8] sm:$0xff]
    %v1835 = vld [vmem:[%s17 + $0xbc0] sm:$0xff]
    %v1836 = vld [vmem:[%s17 + $0xbc8] sm:$0xff]
    %v1837 = vld [vmem:[%s17 + $0xbd0] sm:$0xff]
    %v1838 = vld [vmem:[%s17 + $0xbd8] sm:$0xff]
    %v1839 = vld [vmem:[%s17 + $0xbe0] sm:$0xff]
    %v1840 = vld [vmem:[%s17 + $0xbe8] sm:$0xff]
    %v1841 = vld [vmem:[%s17 + $0xbf0] sm:$0xff]
    %v1842 = vld [vmem:[%s17 + $0xbf8] sm:$0xff]
    %v1843 = vld [vmem:[%s17 + $0xc00] sm:$0xff]
    %v1844 = vld [vmem:[%s17 + $0xc08] sm:$0xff]
    %v1845 = vld [vmem:[%s17 + $0xc10] sm:$0xff]
    %v1846 = vld [vmem:[%s17 + $0xc18] sm:$0xff]
    %v1847 = vld [vmem:[%s17 + $0xc20] sm:$0xff]
    %v1848 = vld [vmem:[%s17 + $0xc28] sm:$0xff]
    %v1849 = vld [vmem:[%s17 + $0xc30] sm:$0xff]
    %v1850 = vld [vmem:[%s17 + $0xc38] sm:$0xff]
    %v1851 = vld [vmem:[%s17 + $0xc40] sm:$0xff]
    %v1852 = vld [vmem:[%s17 + $0xc48] sm:$0xff]
    %v1853 = vld [vmem:[%s17 + $0xc50] sm:$0xff]
    %v1854 = vld [vmem:[%s17 + $0xc58] sm:$0xff]
    %v1855 = vld [vmem:[%s17 + $0xc60] sm:$0xff]
    %v1856 = vld [vmem:[%s17 + $0xc68] sm:$0xff]
    %v1857 = vld [vmem:[%s17 + $0xc70] sm:$0xff]
    %v1858 = vld [vmem:[%s17 + $0xc78] sm:$0xff]
    %v1859 = vld [vmem:[%s17 + $0xc80] sm:$0xff]
    %v1860 = vld [vmem:[%s17 + $0xc88] sm:$0xff]
    %v1861 = vld [vmem:[%s17 + $0xc90] sm:$0xff]
    %v1862 = vld [vmem:[%s17 + $0xc98] sm:$0xff]
    %v1863 = vld [vmem:[%s17 + $0xca0] sm:$0xff]
    %v1864 = vld [vmem:[%s17 + $0xca8] sm:$0xff]
    %v1865 = vld [vmem:[%s17 + $0xcb0] sm:$0xff]
    %v1866 = vld [vmem:[%s17 + $0xcb8] sm:$0xff]
    %v1867 = vld [vmem:[%s17 + $0xcc0] sm:$0xff]
    %v1868 = vld [vmem:[%s17 + $0xcc8] sm:$0xff]
    %v1869 = vld [vmem:[%s17 + $0xcd0] sm:$0xff]
    %v1870 = vld [vmem:[%s17 + $0xcd8] sm:$0xff]
    %v1871 = vld [vmem:[%s17 + $0xce0] sm:$0xff]
    %v1872 = vld [vmem:[%s17 + $0xce8] sm:$0xff]
    %v1873 = vld [vmem:[%s17 + $0xcf0] sm:$0xff]
    %v1874 = vld [vmem:[%s17 + $0xcf8] sm:$0xff]
    %v1875 = vld [vmem:[%s17 + $0xd00] sm:$0xff]
    %v1876 = vld [vmem:[%s17 + $0xd08] sm:$0xff]
    %v1877 = vld [vmem:[%s17 + $0xd10] sm:$0xff]
    %v1878 = vld [vmem:[%s17 + $0xd18] sm:$0xff]
    %v1879 = vld [vmem:[%s17 + $0xd20] sm:$0xff]
    %v1880 = vld [vmem:[%s17 + $0xd28] sm:$0xff]
    %v1881 = vld [vmem:[%s17 + $0xd30] sm:$0xff]
    %v1882 = vld [vmem:[%s17 + $0xd38] sm:$0xff]
    %v1883 = vld [vmem:[%s17 + $0xd40] sm:$0xff]
    %v1884 = vld [vmem:[%s17 + $0xd48] sm:$0xff]
    %v1885 = vld [vmem:[%s17 + $0xd50] sm:$0xff]
    %v1886 = vld [vmem:[%s17 + $0xd58] sm:$0xff]
    %v1887 = vld [vmem:[%s17 + $0xd60] sm:$0xff]
    %v1888 = vld [vmem:[%s17 + $0xd68] sm:$0xff]
    %v1889 = vld [vmem:[%s17 + $0xd70] sm:$0xff]
    %v1890 = vld [vmem:[%s17 + $0xd78] sm:$0xff]
    %v1891 = vld [vmem:[%s17 + $0xd80] sm:$0xff]
    %v1892 = vld [vmem:[%s17 + $0xd88] sm:$0xff]
    %v1893 = vld [vmem:[%s17 + $0xd90] sm:$0xff]
    %v1894 = vld [vmem:[%s17 + $0xd98] sm:$0xff]
    %v1895 = vld [vmem:[%s17 + $0xda0] sm:$0xff]
    %v1896 = vld [vmem:[%s17 + $0xda8] sm:$0xff]
    %v1897 = vld [vmem:[%s17 + $0xdb0] sm:$0xff]
    %v1898 = vld [vmem:[%s17 + $0xdb8] sm:$0xff]
    %v1899 = vld [vmem:[%s17 + $0xdc0] sm:$0xff]
    %v1900 = vld [vmem:[%s17 + $0xdc8] sm:$0xff]
    %v1901 = vld [vmem:[%s17 + $0xdd0] sm:$0xff]
    %v1902 = vld [vmem:[%s17 + $0xdd8] sm:$0xff]
    %v1903 = vld [vmem:[%s17 + $0xde0] sm:$0xff]
    %v1904 = vld [vmem:[%s17 + $0xde8] sm:$0xff]
    %v1905 = vld [vmem:[%s17 + $0xdf0] sm:$0xff]
    %v1906 = vld [vmem:[%s17 + $0xdf8] sm:$0xff]
    %v1907 = vld [vmem:[%s17 + $0xe00] sm:$0xff]
    %v1908 = vld [vmem:[%s17 + $0xe08] sm:$0xff]
    %v1909 = vld [vmem:[%s17 + $0xe10] sm:$0xff]
    %v1910 = vld [vmem:[%s17 + $0xe18] sm:$0xff]
    %v1911 = vld [vmem:[%s17 + $0xe20] sm:$0xff]
    %v1912 = vld [vmem:[%s17 + $0xe28] sm:$0xff]
    %v1913 = vld [vmem:[%s17 + $0xe30] sm:$0xff]
    %v1914 = vld [vmem:[%s17 + $0xe38] sm:$0xff]
    %v1915 = vld [vmem:[%s17 + $0xe40] sm:$0xff]
    %v1916 = vld [vmem:[%s17 + $0xe48] sm:$0xff]
    %v1917 = vld [vmem:[%s17 + $0xe50] sm:$0xff]
    %v1918 = vld [vmem:[%s17 + $0xe58] sm:$0xff]
    %v1919 = vld [vmem:[%s17 + $0xe60] sm:$0xff]
    %v1920 = vld [vmem:[%s17 + $0xe68] sm:$0xff]
    %v1921 = vld [vmem:[%s17 + $0xe70] sm:$0xff]
    %v1922 = vld [vmem:[%s17 + $0xe78] sm:$0xff]
    %v1923 = vld [vmem:[%s17 + $0xe80] sm:$0xff]
    %v1924 = vld [vmem:[%s17 + $0xe88] sm:$0xff]
    %v1925 = vld [vmem:[%s17 + $0xe90] sm:$0xff]
    %v1926 = vld [vmem:[%s17 + $0xe98] sm:$0xff]
    %v1927 = vld [vmem:[%s17 + $0xea0] sm:$0xff]
    %v1928 = vld [vmem:[%s17 + $0xea8] sm:$0xff]
    %v1929 = vld [vmem:[%s17 + $0xeb0] sm:$0xff]
    %v1930 = vld [vmem:[%s17 + $0xeb8] sm:$0xff]
    %v1931 = vld [vmem:[%s17 + $0xec0] sm:$0xff]
    %v1932 = vld [vmem:[%s17 + $0xec8] sm:$0xff]
    %v1933 = vld [vmem:[%s17 + $0xed0] sm:$0xff]
    %v1934 = vld [vmem:[%s17 + $0xed8] sm:$0xff]
    %v1935 = vld [vmem:[%s17 + $0xee0] sm:$0xff]
    %v1936 = vld [vmem:[%s17 + $0xee8] sm:$0xff]
    %v1937 = vld [vmem:[%s17 + $0xef0] sm:$0xff]
    %v1938 = vld [vmem:[%s17 + $0xef8] sm:$0xff]
    %v1939 = vld [vmem:[%s17 + $0xf00] sm:$0xff]
    %v1940 = vld [vmem:[%s17 + $0xf08] sm:$0xff]
    %v1941 = vld [vmem:[%s17 + $0xf10] sm:$0xff]
    %v1942 = vld [vmem:[%s17 + $0xf18] sm:$0xff]
    %v1943 = vld [vmem:[%s17 + $0xf20] sm:$0xff]
    %v1944 = vld [vmem:[%s17 + $0xf28] sm:$0xff]
    %v1945 = vld [vmem:[%s17 + $0xf30] sm:$0xff]
    %v1946 = vld [vmem:[%s17 + $0xf38] sm:$0xff]
    %v1947 = vld [vmem:[%s17 + $0xf40] sm:$0xff]
    %v1948 = vld [vmem:[%s17 + $0xf48] sm:$0xff]
    %v1949 = vld [vmem:[%s17 + $0xf50] sm:$0xff]
    %v1950 = vld [vmem:[%s17 + $0xf58] sm:$0xff]
    %v1951 = vld [vmem:[%s17 + $0xf60] sm:$0xff]
    %v1952 = vld [vmem:[%s17 + $0xf68] sm:$0xff]
    %v1953 = vld [vmem:[%s17 + $0xf70] sm:$0xff]
    %v1954 = vld [vmem:[%s17 + $0xf78] sm:$0xff]
    %v1955 = vld [vmem:[%s17 + $0xf80] sm:$0xff]
    %v1956 = vld [vmem:[%s17 + $0xf88] sm:$0xff]
    %v1957 = vld [vmem:[%s17 + $0xf90] sm:$0xff]
    %v1958 = vld [vmem:[%s17 + $0xf98] sm:$0xff]
    %v1959 = vld [vmem:[%s17 + $0xfa0] sm:$0xff]
    %v1960 = vld [vmem:[%s17 + $0xfa8] sm:$0xff]
    %v1961 = vld [vmem:[%s17 + $0xfb0] sm:$0xff]
    %v1962 = vld [vmem:[%s17 + $0xfb8] sm:$0xff]
    %v1963 = vld [vmem:[%s17 + $0xfc0] sm:$0xff]
    %v1964 = vld [vmem:[%s17 + $0xfc8] sm:$0xff]
    %v1965 = vld [vmem:[%s17 + $0xfd0] sm:$0xff]
    %v1966 = vld [vmem:[%s17 + $0xfd8] sm:$0xff]
    %v1967 = vld [vmem:[%s17 + $0xfe0] sm:$0xff]
    %v1968 = vld [vmem:[%s17 + $0xfe8] sm:$0xff]
    %v1969 = vld [vmem:[%s17 + $0xff0] sm:$0xff]
    %v1970 = vld [vmem:[%s17 + $0xff8] sm:$0xff]
    %v1971 = vld [vmem:[%s17 + $0x1000] sm:$0xff]
    %v1972 = vld [vmem:[%s17 + $0x1008] sm:$0xff]
    %v1973 = vld [vmem:[%s17 + $0x1010] sm:$0xff]
    %v1974 = vld [vmem:[%s17 + $0x1018] sm:$0xff]
    %v1975 = vld [vmem:[%s17 + $0x1020] sm:$0xff]
    %v1976 = vld [vmem:[%s17 + $0x1028] sm:$0xff]
    %v1977 = vld [vmem:[%s17 + $0x1030] sm:$0xff]
    %v1978 = vld [vmem:[%s17 + $0x1038] sm:$0xff]
    %v1979 = vld [vmem:[%s17 + $0x1040] sm:$0xff]
    %v1980 = vld [vmem:[%s17 + $0x1048] sm:$0xff]
    %v1981 = vld [vmem:[%s17 + $0x1050] sm:$0xff]
    %v1982 = vld [vmem:[%s17 + $0x1058] sm:$0xff]
    %v1983 = vld [vmem:[%s17 + $0x1060] sm:$0xff]
    %v1984 = vld [vmem:[%s17 + $0x1068] sm:$0xff]
    %v1985 = vld [vmem:[%s17 + $0x1070] sm:$0xff]
    %v1986 = vld [vmem:[%s17 + $0x1078] sm:$0xff]
    %v1987 = vld [vmem:[%s17 + $0x1080] sm:$0xff]
    %v1988 = vld [vmem:[%s17 + $0x1088] sm:$0xff]
    %v1989 = vld [vmem:[%s17 + $0x1090] sm:$0xff]
    %v1990 = vld [vmem:[%s17 + $0x1098] sm:$0xff]
    %v1991 = vld [vmem:[%s17 + $0x10a0] sm:$0xff]
    %v1992 = vld [vmem:[%s17 + $0x10a8] sm:$0xff]
    %v1993 = vld [vmem:[%s17 + $0x10b0] sm:$0xff]
    %v1994 = vld [vmem:[%s17 + $0x10b8] sm:$0xff]
    %v1995 = vld [vmem:[%s17 + $0x10c0] sm:$0xff]
    %v1996 = vld [vmem:[%s17 + $0x10c8] sm:$0xff]
    %v1997 = vld [vmem:[%s17 + $0x10d0] sm:$0xff]
    %v1998 = vld [vmem:[%s17 + $0x10d8] sm:$0xff]
    %v1999 = vld [vmem:[%s17 + $0x10e0] sm:$0xff]
    %v2000 = vld [vmem:[%s17 + $0x10e8] sm:$0xff]
    %v2001 = vld [vmem:[%s17 + $0x10f0] sm:$0xff]
    %v2002 = vld [vmem:[%s17 + $0x10f8] sm:$0xff]
    %v2003 = vld [vmem:[%s17 + $0x1100] sm:$0xff]
    %v2004 = vld [vmem:[%s17 + $0x1108] sm:$0xff]
    %v2005 = vld [vmem:[%s17 + $0x1110] sm:$0xff]
    %v2006 = vld [vmem:[%s17 + $0x1118] sm:$0xff]
    %v2007 = vld [vmem:[%s17 + $0x1120] sm:$0xff]
    %v2008 = vld [vmem:[%s17 + $0x1128] sm:$0xff]
    %v2009 = vld [vmem:[%s17 + $0x1130] sm:$0xff]
    %v2010 = vld [vmem:[%s17 + $0x1138] sm:$0xff]
    %v2011 = vld [vmem:[%s17 + $0x1140] sm:$0xff]
    %v2012 = vld [vmem:[%s17 + $0x1148] sm:$0xff]
    %v2013 = vld [vmem:[%s17 + $0x1150] sm:$0xff]
    %v2014 = vld [vmem:[%s17 + $0x1158] sm:$0xff]
    %v2015 = vld [vmem:[%s17 + $0x1160] sm:$0xff]
    %v2016 = vld [vmem:[%s17 + $0x1168] sm:$0xff]
    %v2017 = vld [vmem:[%s17 + $0x1170] sm:$0xff]
    %v2018 = vld [vmem:[%s17 + $0x1178] sm:$0xff]
    %v2019 = vld [vmem:[%s17 + $0x1180] sm:$0xff]
    %v2020 = vld [vmem:[%s17 + $0x1188] sm:$0xff]
    %v2021 = vld [vmem:[%s17 + $0x1190] sm:$0xff]
    %v2022 = vld [vmem:[%s17 + $0x1198] sm:$0xff]
    %v2023 = vld [vmem:[%s17 + $0x11a0] sm:$0xff]
    %v2024 = vld [vmem:[%s17 + $0x11a8] sm:$0xff]
    %v2025 = vld [vmem:[%s17 + $0x11b0] sm:$0xff]
    %v2026 = vld [vmem:[%s17 + $0x11b8] sm:$0xff]
    %v2027 = vld [vmem:[%s17 + $0x11c0] sm:$0xff]
    %v2028 = vld [vmem:[%s17 + $0x11c8] sm:$0xff]
    %v2029 = vld [vmem:[%s17 + $0x11d0] sm:$0xff]
    %v2030 = vld [vmem:[%s17 + $0x11d8] sm:$0xff]
    %v2031 = vld [vmem:[%s17 + $0x11e0] sm:$0xff]
    %v2032 = vld [vmem:[%s17 + $0x11e8] sm:$0xff]
    %v2033 = vld [vmem:[%s17 + $0x11f0] sm:$0xff]
    %v2034 = vld [vmem:[%s17 + $0x11f8] sm:$0xff]
    %v2035 = vld [vmem:[%s17 + $0x1200] sm:$0xff]
    %v2036 = vld [vmem:[%s17 + $0x1208] sm:$0xff]
    %v2037 = vld [vmem:[%s17 + $0x1210] sm:$0xff]
    %v2038 = vld [vmem:[%s17 + $0x1218] sm:$0xff]
    %v2039 = vld [vmem:[%s17 + $0x1220] sm:$0xff]
    %v2040 = vld [vmem:[%s17 + $0x1228] sm:$0xff]
    %v2041 = vld [vmem:[%s17 + $0x1230] sm:$0xff]
    %v2042 = vld [vmem:[%s17 + $0x1238] sm:$0xff]
    %v2043 = vld [vmem:[%s17 + $0x1240] sm:$0xff]
    %v2044 = vld [vmem:[%s17 + $0x1248] sm:$0xff]
    %v2045 = vld [vmem:[%s17 + $0x1250] sm:$0xff]
    %v2046 = vld [vmem:[%s17 + $0x1258] sm:$0xff]
    %v2047 = vld [vmem:[%s17 + $0x1260] sm:$0xff]
    %v2048 = vld [vmem:[%s17 + $0x1268] sm:$0xff]
    %v2049 = vld [vmem:[%s17 + $0x1270] sm:$0xff]
    %v2050 = vld [vmem:[%s17 + $0x1278] sm:$0xff]
    %v2051 = vld [vmem:[%s17 + $0x1280] sm:$0xff]
    %v2052 = vld [vmem:[%s17 + $0x1288] sm:$0xff]
    %v2053 = vld [vmem:[%s17 + $0x1290] sm:$0xff]
    %v2054 = vld [vmem:[%s17 + $0x1298] sm:$0xff]
    %v2055 = vld [vmem:[%s17 + $0x12a0] sm:$0xff]
    %v2056 = vld [vmem:[%s17 + $0x12a8] sm:$0xff]
    %v2057 = vld [vmem:[%s17 + $0x12b0] sm:$0xff]
    %v2058 = vld [vmem:[%s17 + $0x12b8] sm:$0xff]
    %v2059 = vld [vmem:[%s17 + $0x12c0] sm:$0xff]
    %v2060 = vld [vmem:[%s17 + $0x12c8] sm:$0xff]
    %v2061 = vld [vmem:[%s17 + $0x12d0] sm:$0xff]
    %v2062 = vld [vmem:[%s17 + $0x12d8] sm:$0xff]
    %v2063 = vld [vmem:[%s17 + $0x12e0] sm:$0xff]
    %v2064 = vld [vmem:[%s17 + $0x12e8] sm:$0xff]
    %v2065 = vld [vmem:[%s17 + $0x12f0] sm:$0xff]
    %v2066 = vld [vmem:[%s17 + $0x12f8] sm:$0xff]
    %v2067 = vld [vmem:[%s17 + $0x1300] sm:$0xff]
    %v2068 = vld [vmem:[%s17 + $0x1308] sm:$0xff]
    %v2069 = vld [vmem:[%s17 + $0x1310] sm:$0xff]
    %v2070 = vld [vmem:[%s17 + $0x1318] sm:$0xff]
    %v2071 = vld [vmem:[%s17 + $0x1320] sm:$0xff]
    %v2072 = vld [vmem:[%s17 + $0x1328] sm:$0xff]
    %v2073 = vld [vmem:[%s17 + $0x1330] sm:$0xff]
    %v2074 = vld [vmem:[%s17 + $0x1338] sm:$0xff]
    %v2075 = vld [vmem:[%s17 + $0x1340] sm:$0xff]
    %v2076 = vld [vmem:[%s17 + $0x1348] sm:$0xff]
    %v2077 = vld [vmem:[%s17 + $0x1350] sm:$0xff]
    %v2078 = vld [vmem:[%s17 + $0x1358] sm:$0xff]
    %v2079 = vld [vmem:[%s17 + $0x1360] sm:$0xff]
    %v2080 = vld [vmem:[%s17 + $0x1368] sm:$0xff]
    %v2081 = vld [vmem:[%s17 + $0x1370] sm:$0xff]
    %v2082 = vld [vmem:[%s17 + $0x1378] sm:$0xff]
    %v2083 = vld [vmem:[%s17 + $0x1380] sm:$0xff]
    %v2084 = vld [vmem:[%s17 + $0x1388] sm:$0xff]
    %v2085 = vld [vmem:[%s17 + $0x1390] sm:$0xff]
    %v2086 = vld [vmem:[%s17 + $0x1398] sm:$0xff]
    %v2087 = vld [vmem:[%s17 + $0x13a0] sm:$0xff]
    %v2088 = vld [vmem:[%s17 + $0x13a8] sm:$0xff]
    %v2089 = vld [vmem:[%s17 + $0x13b0] sm:$0xff]
    %v2090 = vld [vmem:[%s17 + $0x13b8] sm:$0xff]
    %v2091 = vld [vmem:[%s17 + $0x13c0] sm:$0xff]
    %v2092 = vld [vmem:[%s17 + $0x13c8] sm:$0xff]
    %v2093 = vld [vmem:[%s17 + $0x13d0] sm:$0xff]
    %v2094 = vld [vmem:[%s17 + $0x13d8] sm:$0xff]
    %v2095 = vld [vmem:[%s17 + $0x13e0] sm:$0xff]
    %v2096 = vld [vmem:[%s17 + $0x13e8] sm:$0xff]
    %v2097 = vld [vmem:[%s17 + $0x13f0] sm:$0xff]
    %v2098 = vld [vmem:[%s17 + $0x13f8] sm:$0xff]
    %v2099 = vld [vmem:[%s17 + $0x1400] sm:$0xff]
    %v2100 = vld [vmem:[%s17 + $0x1408] sm:$0xff]
    %v2101 = vld [vmem:[%s17 + $0x1410] sm:$0xff]
    %v2102 = vld [vmem:[%s17 + $0x1418] sm:$0xff]
    %v2103 = vld [vmem:[%s17 + $0x1420] sm:$0xff]
    %v2104 = vld [vmem:[%s17 + $0x1428] sm:$0xff]
    %v2105 = vld [vmem:[%s17 + $0x1430] sm:$0xff]
    %v2106 = vld [vmem:[%s17 + $0x1438] sm:$0xff]
    %v2107 = vld [vmem:[%s17 + $0x1440] sm:$0xff]
    %v2108 = vld [vmem:[%s17 + $0x1448] sm:$0xff]
    %v2109 = vld [vmem:[%s17 + $0x1450] sm:$0xff]
    %v2110 = vld [vmem:[%s17 + $0x1458] sm:$0xff]
    %v2111 = vld [vmem:[%s17 + $0x1460] sm:$0xff]
    %v2112 = vld [vmem:[%s17 + $0x1468] sm:$0xff]
    %v2113 = vld [vmem:[%s17 + $0x1470] sm:$0xff]
    %v2114 = vld [vmem:[%s17 + $0x1478] sm:$0xff]
    %v2115 = vld [vmem:[%s17 + $0x1480] sm:$0xff]
    %v2116 = vld [vmem:[%s17 + $0x1488] sm:$0xff]
    %v2117 = vld [vmem:[%s17 + $0x1490] sm:$0xff]
    %v2118 = vld [vmem:[%s17 + $0x1498] sm:$0xff]
    %v2119 = vld [vmem:[%s17 + $0x14a0] sm:$0xff]
    %v2120 = vld [vmem:[%s17 + $0x14a8] sm:$0xff]
    %v2121 = vld [vmem:[%s17 + $0x14b0] sm:$0xff]
    %v2122 = vld [vmem:[%s17 + $0x14b8] sm:$0xff]
    %v2123 = vld [vmem:[%s17 + $0x14c0] sm:$0xff]
    %v2124 = vld [vmem:[%s17 + $0x14c8] sm:$0xff]
    %v2125 = vld [vmem:[%s17 + $0x14d0] sm:$0xff]
    %v2126 = vld [vmem:[%s17 + $0x14d8] sm:$0xff]
    %v2127 = vld [vmem:[%s17 + $0x14e0] sm:$0xff]
    %v2128 = vld [vmem:[%s17 + $0x14e8] sm:$0xff]
    %v2129 = vld [vmem:[%s17 + $0x14f0] sm:$0xff]
    %v2130 = vld [vmem:[%s17 + $0x14f8] sm:$0xff]
    %v2131 = vld [vmem:[%s17 + $0x1500] sm:$0xff]
    %v2132 = vld [vmem:[%s17 + $0x1508] sm:$0xff]
    %v2133 = vld [vmem:[%s17 + $0x1510] sm:$0xff]
    %v2134 = vld [vmem:[%s17 + $0x1518] sm:$0xff]
    %v2135 = vld [vmem:[%s17 + $0x1520] sm:$0xff]
    %v2136 = vld [vmem:[%s17 + $0x1528] sm:$0xff]
    %v2137 = vld [vmem:[%s17 + $0x1530] sm:$0xff]
    %v2138 = vld [vmem:[%s17 + $0x1538] sm:$0xff]
    %v2139 = vld [vmem:[%s17 + $0x1540] sm:$0xff]
    %v2140 = vld [vmem:[%s17 + $0x1548] sm:$0xff]
    %v2141 = vld [vmem:[%s17 + $0x1550] sm:$0xff]
    %v2142 = vld [vmem:[%s17 + $0x1558] sm:$0xff]
    %v2143 = vld [vmem:[%s17 + $0x1560] sm:$0xff]
    %v2144 = vld [vmem:[%s17 + $0x1568] sm:$0xff]
    %v2145 = vld [vmem:[%s17 + $0x1570] sm:$0xff]
    %v2146 = vld [vmem:[%s17 + $0x1578] sm:$0xff]
    %v2147 = vld [vmem:[%s17 + $0x1580] sm:$0xff]
    %v2148 = vld [vmem:[%s17 + $0x1588] sm:$0xff]
    %v2149 = vld [vmem:[%s17 + $0x1590] sm:$0xff]
    %v2150 = vld [vmem:[%s17 + $0x1598] sm:$0xff]
    %v2151 = vld [vmem:[%s17 + $0x15a0] sm:$0xff]
    %v2152 = vld [vmem:[%s17 + $0x15a8] sm:$0xff]
    %v2153 = vld [vmem:[%s17 + $0x15b0] sm:$0xff]
    %v2154 = vld [vmem:[%s17 + $0x15b8] sm:$0xff]
    %v2155 = vld [vmem:[%s17 + $0x15c0] sm:$0xff]
    %v2156 = vld [vmem:[%s17 + $0x15c8] sm:$0xff]
    %v2157 = vld [vmem:[%s17 + $0x15d0] sm:$0xff]
    %v2158 = vld [vmem:[%s17 + $0x15d8] sm:$0xff]
    %v2159 = vld [vmem:[%s17 + $0x15e0] sm:$0xff]
    %v2160 = vld [vmem:[%s17 + $0x15e8] sm:$0xff]
    %v2161 = vld [vmem:[%s17 + $0x15f0] sm:$0xff]
    %v2162 = vld [vmem:[%s17 + $0x15f8] sm:$0xff]
    %v2163 = vld [vmem:[%s17 + $0x1600] sm:$0xff]
    %v2164 = vld [vmem:[%s17 + $0x1608] sm:$0xff]
    %v2165 = vld [vmem:[%s17 + $0x1610] sm:$0xff]
    %v2166 = vld [vmem:[%s17 + $0x1618] sm:$0xff]
    %v2167 = vld [vmem:[%s17 + $0x1620] sm:$0xff]
    %v2168 = vld [vmem:[%s17 + $0x1628] sm:$0xff]
    %v2169 = vld [vmem:[%s17 + $0x1630] sm:$0xff]
    %v2170 = vld [vmem:[%s17 + $0x1638] sm:$0xff]
    %v2171 = vld [vmem:[%s17 + $0x1640] sm:$0xff]
    %v2172 = vld [vmem:[%s17 + $0x1648] sm:$0xff]
    %v2173 = vld [vmem:[%s17 + $0x1650] sm:$0xff]
    %v2174 = vld [vmem:[%s17 + $0x1658] sm:$0xff]
    %v2175 = vld [vmem:[%s17 + $0x1660] sm:$0xff]
    %v2176 = vld [vmem:[%s17 + $0x1668] sm:$0xff]
    %v2177 = vld [vmem:[%s17 + $0x1670] sm:$0xff]
    %v2178 = vld [vmem:[%s17 + $0x1678] sm:$0xff]
    %v2179 = vld [vmem:[%s17 + $0x1680] sm:$0xff]
    %v2180 = vld [vmem:[%s17 + $0x1688] sm:$0xff]
    %v2181 = vld [vmem:[%s17 + $0x1690] sm:$0xff]
    %v2182 = vld [vmem:[%s17 + $0x1698] sm:$0xff]
    %v2183 = vld [vmem:[%s17 + $0x16a0] sm:$0xff]
    %v2184 = vld [vmem:[%s17 + $0x16a8] sm:$0xff]
    %v2185 = vld [vmem:[%s17 + $0x16b0] sm:$0xff]
    %v2186 = vld [vmem:[%s17 + $0x16b8] sm:$0xff]
    %v2187 = vld [vmem:[%s17 + $0x16c0] sm:$0xff]
    %v2188 = vld [vmem:[%s17 + $0x16c8] sm:$0xff]
    %v2189 = vld [vmem:[%s17 + $0x16d0] sm:$0xff]
    %v2190 = vld [vmem:[%s17 + $0x16d8] sm:$0xff]
    %v2191 = vld [vmem:[%s17 + $0x16e0] sm:$0xff]
    %v2192 = vld [vmem:[%s17 + $0x16e8] sm:$0xff]
    %v2193 = vld [vmem:[%s17 + $0x16f0] sm:$0xff]
    %v2194 = vld [vmem:[%s17 + $0x16f8] sm:$0xff]
    %v2195 = vld [vmem:[%s17 + $0x1700] sm:$0xff]
    %v2196 = vld [vmem:[%s17 + $0x1708] sm:$0xff]
    %v2197 = vld [vmem:[%s17 + $0x1710] sm:$0xff]
    %v2198 = vld [vmem:[%s17 + $0x1718] sm:$0xff]
    %v2199 = vld [vmem:[%s17 + $0x1720] sm:$0xff]
    %v2200 = vld [vmem:[%s17 + $0x1728] sm:$0xff]
    %v2201 = vld [vmem:[%s17 + $0x1730] sm:$0xff]
    %v2202 = vld [vmem:[%s17 + $0x1738] sm:$0xff]
    %v2203 = vld [vmem:[%s17 + $0x1740] sm:$0xff]
    %v2204 = vld [vmem:[%s17 + $0x1748] sm:$0xff]
    %v2205 = vld [vmem:[%s17 + $0x1750] sm:$0xff]
    %v2206 = vld [vmem:[%s17 + $0x1758] sm:$0xff]
    %v2207 = vld [vmem:[%s17 + $0x1760] sm:$0xff]
    %v2208 = vld [vmem:[%s17 + $0x1768] sm:$0xff]
    %v2209 = vld [vmem:[%s17 + $0x1770] sm:$0xff]
    %v2210 = vld [vmem:[%s17 + $0x1778] sm:$0xff]
    %v2211 = vld [vmem:[%s17 + $0x1780] sm:$0xff]
    %v2212 = vld [vmem:[%s17 + $0x1788] sm:$0xff]
    %v2213 = vld [vmem:[%s17 + $0x1790] sm:$0xff]
    %v2214 = vld [vmem:[%s17 + $0x1798] sm:$0xff]
    %v2215 = vld [vmem:[%s17 + $0x17a0] sm:$0xff]
    %v2216 = vld [vmem:[%s17 + $0x17a8] sm:$0xff]
    %v2217 = vld [vmem:[%s17 + $0x17b0] sm:$0xff]
    %v2218 = vld [vmem:[%s17 + $0x17b8] sm:$0xff]
    %v2219 = vld [vmem:[%s17 + $0x17c0] sm:$0xff]
    %v2220 = vld [vmem:[%s17 + $0x17c8] sm:$0xff]
    %v2221 = vld [vmem:[%s17 + $0x17d0] sm:$0xff]
    %v2222 = vld [vmem:[%s17 + $0x17d8] sm:$0xff]
    %v2223 = vld [vmem:[%s17 + $0x17e0] sm:$0xff]
    %v2224 = vld [vmem:[%s17 + $0x17e8] sm:$0xff]
    %v2225 = vld [vmem:[%s17 + $0x17f0] sm:$0xff]
    %v2226 = vld [vmem:[%s17 + $0x17f8] sm:$0xff]
    %v2227 = vld [vmem:[%s17 + $0x1800] sm:$0xff]
    %v2228 = vld [vmem:[%s17 + $0x1808] sm:$0xff]
    %v2229 = vld [vmem:[%s17 + $0x1810] sm:$0xff]
    %v2230 = vld [vmem:[%s17 + $0x1818] sm:$0xff]
    %v2231 = vld [vmem:[%s17 + $0x1820] sm:$0xff]
    %v2232 = vld [vmem:[%s17 + $0x1828] sm:$0xff]
    %v2233 = vld [vmem:[%s17 + $0x1830] sm:$0xff]
    %v2234 = vld [vmem:[%s17 + $0x1838] sm:$0xff]
    %v2235 = vld [vmem:[%s17 + $0x1840] sm:$0xff]
    %v2236 = vld [vmem:[%s17 + $0x1848] sm:$0xff]
    %v2237 = vld [vmem:[%s17 + $0x1850] sm:$0xff]
    %v2238 = vld [vmem:[%s17 + $0x1858] sm:$0xff]
    %v2239 = vld [vmem:[%s17 + $0x1860] sm:$0xff]
    %v2240 = vld [vmem:[%s17 + $0x1868] sm:$0xff]
    %v2241 = vld [vmem:[%s17 + $0x1870] sm:$0xff]
    %v2242 = vld [vmem:[%s17 + $0x1878] sm:$0xff]
    %v2243 = vld [vmem:[%s17 + $0x1880] sm:$0xff]
    %v2244 = vld [vmem:[%s17 + $0x1888] sm:$0xff]
    %v2245 = vld [vmem:[%s17 + $0x1890] sm:$0xff]
    %v2246 = vld [vmem:[%s17 + $0x1898] sm:$0xff]
    %v2247 = vld [vmem:[%s17 + $0x18a0] sm:$0xff]
    %v2248 = vld [vmem:[%s17 + $0x18a8] sm:$0xff]
    %v2249 = vld [vmem:[%s17 + $0x18b0] sm:$0xff]
    %v2250 = vld [vmem:[%s17 + $0x18b8] sm:$0xff]
    %v2251 = vld [vmem:[%s17 + $0x18c0] sm:$0xff]
    %v2252 = vld [vmem:[%s17 + $0x18c8] sm:$0xff]
    %v2253 = vld [vmem:[%s17 + $0x18d0] sm:$0xff]
    %v2254 = vld [vmem:[%s17 + $0x18d8] sm:$0xff]
    %v2255 = vld [vmem:[%s17 + $0x18e0] sm:$0xff]
    %v2256 = vld [vmem:[%s17 + $0x18e8] sm:$0xff]
    %v2257 = vld [vmem:[%s17 + $0x18f0] sm:$0xff]
    %v2258 = vld [vmem:[%s17 + $0x18f8] sm:$0xff]
    %v2259 = vld [vmem:[%s17 + $0x1900] sm:$0xff]
    %v2260 = vld [vmem:[%s17 + $0x1908] sm:$0xff]
    %v2261 = vld [vmem:[%s17 + $0x1910] sm:$0xff]
    %v2262 = vld [vmem:[%s17 + $0x1918] sm:$0xff]
    %v2263 = vld [vmem:[%s17 + $0x1920] sm:$0xff]
    %v2264 = vld [vmem:[%s17 + $0x1928] sm:$0xff]
    %v2265 = vld [vmem:[%s17 + $0x1930] sm:$0xff]
    %v2266 = vld [vmem:[%s17 + $0x1938] sm:$0xff]
    %v2267 = vld [vmem:[%s17 + $0x1940] sm:$0xff]
    %v2268 = vld [vmem:[%s17 + $0x1948] sm:$0xff]
    %v2269 = vld [vmem:[%s17 + $0x1950] sm:$0xff]
    %v2270 = vld [vmem:[%s17 + $0x1958] sm:$0xff]
    %v2271 = vld [vmem:[%s17 + $0x1960] sm:$0xff]
    %v2272 = vld [vmem:[%s17 + $0x1968] sm:$0xff]
    %v2273 = vld [vmem:[%s17 + $0x1970] sm:$0xff]
    %v2274 = vld [vmem:[%s17 + $0x1978] sm:$0xff]
    %v2275 = vld [vmem:[%s17 + $0x1980] sm:$0xff]
    %v2276 = vld [vmem:[%s17 + $0x1988] sm:$0xff]
    %v2277 = vld [vmem:[%s17 + $0x1990] sm:$0xff]
    %v2278 = vld [vmem:[%s17 + $0x1998] sm:$0xff]
    %v2279 = vld [vmem:[%s17 + $0x19a0] sm:$0xff]
    %v2280 = vld [vmem:[%s17 + $0x19a8] sm:$0xff]
    %v2281 = vld [vmem:[%s17 + $0x19b0] sm:$0xff]
    %v2282 = vld [vmem:[%s17 + $0x19b8] sm:$0xff]
    %v2283 = vld [vmem:[%s17 + $0x19c0] sm:$0xff]
    %v2284 = vld [vmem:[%s17 + $0x19c8] sm:$0xff]
    %v2285 = vld [vmem:[%s17 + $0x19d0] sm:$0xff]
    %v2286 = vld [vmem:[%s17 + $0x19d8] sm:$0xff]
    %v2287 = vld [vmem:[%s17 + $0x19e0] sm:$0xff]
    %v2288 = vld [vmem:[%s17 + $0x19e8] sm:$0xff]
    %v2289 = vld [vmem:[%s17 + $0x19f0] sm:$0xff]
    %v2290 = vld [vmem:[%s17 + $0x19f8] sm:$0xff]
    %v2291 = vld [vmem:[%s17 + $0x1a00] sm:$0xff]
    %v2292 = vld [vmem:[%s17 + $0x1a08] sm:$0xff]
    %v2293 = vld [vmem:[%s17 + $0x1a10] sm:$0xff]
    %v2294 = vld [vmem:[%s17 + $0x1a18] sm:$0xff]
    %v2295 = vld [vmem:[%s17 + $0x1a20] sm:$0xff]
    %v2296 = vld [vmem:[%s17 + $0x1a28] sm:$0xff]
    %v2297 = vld [vmem:[%s17 + $0x1a30] sm:$0xff]
    %v2298 = vld [vmem:[%s17 + $0x1a38] sm:$0xff]
    %v2299 = vld [vmem:[%s17 + $0x1a40] sm:$0xff]
    %v2300 = vld [vmem:[%s17 + $0x1a48] sm:$0xff]
    %v2301 = vld [vmem:[%s17 + $0x1a50] sm:$0xff]
    %v2302 = vld [vmem:[%s17 + $0x1a58] sm:$0xff]
    %v2303 = vld [vmem:[%s17 + $0x1a60] sm:$0xff]
    %v2304 = vld [vmem:[%s17 + $0x1a68] sm:$0xff]
    %v2305 = vld [vmem:[%s17 + $0x1a70] sm:$0xff]
    %v2306 = vld [vmem:[%s17 + $0x1a78] sm:$0xff]
    %v2307 = vld [vmem:[%s17 + $0x1a80] sm:$0xff]
    %v2308 = vld [vmem:[%s17 + $0x1a88] sm:$0xff]
    %v2309 = vld [vmem:[%s17 + $0x1a90] sm:$0xff]
    %v2310 = vld [vmem:[%s17 + $0x1a98] sm:$0xff]
    %v2311 = vld [vmem:[%s17 + $0x1aa0] sm:$0xff]
    %v2312 = vld [vmem:[%s17 + $0x1aa8] sm:$0xff]
    %v2313 = vld [vmem:[%s17 + $0x1ab0] sm:$0xff]
    %v2314 = vld [vmem:[%s17 + $0x1ab8] sm:$0xff]
    %v2315 = vld [vmem:[%s17 + $0x1ac0] sm:$0xff]
    %v2316 = vld [vmem:[%s17 + $0x1ac8] sm:$0xff]
    %v2317 = vld [vmem:[%s17 + $0x1ad0] sm:$0xff]
    %v2318 = vld [vmem:[%s17 + $0x1ad8] sm:$0xff]
    %v2319 = vld [vmem:[%s17 + $0x1ae0] sm:$0xff]
    %v2320 = vld [vmem:[%s17 + $0x1ae8] sm:$0xff]
    %v2321 = vld [vmem:[%s17 + $0x1af0] sm:$0xff]
    %v2322 = vld [vmem:[%s17 + $0x1af8] sm:$0xff]
    %v2323 = vld [vmem:[%s17 + $0x1b00] sm:$0xff]
    %v2324 = vld [vmem:[%s17 + $0x1b08] sm:$0xff]
    %v2325 = vld [vmem:[%s17 + $0x1b10] sm:$0xff]
    %v2326 = vld [vmem:[%s17 + $0x1b18] sm:$0xff]
    %v2327 = vld [vmem:[%s17 + $0x1b20] sm:$0xff]
    %v2328 = vld [vmem:[%s17 + $0x1b28] sm:$0xff]
    %v2329 = vld [vmem:[%s17 + $0x1b30] sm:$0xff]
    %v2330 = vld [vmem:[%s17 + $0x1b38] sm:$0xff]
    %v2331 = vld [vmem:[%s17 + $0x1b40] sm:$0xff]
    %v2332 = vld [vmem:[%s17 + $0x1b48] sm:$0xff]
    %v2333 = vld [vmem:[%s17 + $0x1b50] sm:$0xff]
    %v2334 = vld [vmem:[%s17 + $0x1b58] sm:$0xff]
    %v2335 = vld [vmem:[%s17 + $0x1b60] sm:$0xff]
    %v2336 = vld [vmem:[%s17 + $0x1b68] sm:$0xff]
    %v2337 = vld [vmem:[%s17 + $0x1b70] sm:$0xff]
    %v2338 = vld [vmem:[%s17 + $0x1b78] sm:$0xff]
    %v2339 = vld [vmem:[%s17 + $0x1b80] sm:$0xff]
    %v2340 = vld [vmem:[%s17 + $0x1b88] sm:$0xff]
    %v2341 = vld [vmem:[%s17 + $0x1b90] sm:$0xff]
    %v2342 = vld [vmem:[%s17 + $0x1b98] sm:$0xff]
    %v2343 = vld [vmem:[%s17 + $0x1ba0] sm:$0xff]
    %v2344 = vld [vmem:[%s17 + $0x1ba8] sm:$0xff]
    %v2345 = vld [vmem:[%s17 + $0x1bb0] sm:$0xff]
    %v2346 = vld [vmem:[%s17 + $0x1bb8] sm:$0xff]
    %v2347 = vld [vmem:[%s17 + $0x1bc0] sm:$0xff]
    %v2348 = vld [vmem:[%s17 + $0x1bc8] sm:$0xff]
    %v2349 = vld [vmem:[%s17 + $0x1bd0] sm:$0xff]
    %v2350 = vld [vmem:[%s17 + $0x1bd8] sm:$0xff]
    %v2351 = vld [vmem:[%s17 + $0x1be0] sm:$0xff]
    %v2352 = vld [vmem:[%s17 + $0x1be8] sm:$0xff]
    %v2353 = vld [vmem:[%s17 + $0x1bf0] sm:$0xff]
    %v2354 = vld [vmem:[%s17 + $0x1bf8] sm:$0xff]
    %v2355 = vld [vmem:[%s17 + $0x1c00] sm:$0xff]
    %v2356 = vld [vmem:[%s17 + $0x1c08] sm:$0xff]
    %v2357 = vld [vmem:[%s17 + $0x1c10] sm:$0xff]
    %v2358 = vld [vmem:[%s17 + $0x1c18] sm:$0xff]
    %v2359 = vld [vmem:[%s17 + $0x1c20] sm:$0xff]
    %v2360 = vld [vmem:[%s17 + $0x1c28] sm:$0xff]
    %v2361 = vld [vmem:[%s17 + $0x1c30] sm:$0xff]
    %v2362 = vld [vmem:[%s17 + $0x1c38] sm:$0xff]
    %v2363 = vld [vmem:[%s17 + $0x1c40] sm:$0xff]
    %v2364 = vld [vmem:[%s17 + $0x1c48] sm:$0xff]
    %v2365 = vld [vmem:[%s17 + $0x1c50] sm:$0xff]
    %v2366 = vld [vmem:[%s17 + $0x1c58] sm:$0xff]
    %v2367 = vld [vmem:[%s17 + $0x1c60] sm:$0xff]
    %v2368 = vld [vmem:[%s17 + $0x1c68] sm:$0xff]
    %v2369 = vld [vmem:[%s17 + $0x1c70] sm:$0xff]
    %v2370 = vld [vmem:[%s17 + $0x1c78] sm:$0xff]
    %v2371 = vld [vmem:[%s17 + $0x1c80] sm:$0xff]
    %v2372 = vld [vmem:[%s17 + $0x1c88] sm:$0xff]
    %v2373 = vld [vmem:[%s17 + $0x1c90] sm:$0xff]
    %v2374 = vld [vmem:[%s17 + $0x1c98] sm:$0xff]
    %v2375 = vld [vmem:[%s17 + $0x1ca0] sm:$0xff]
    %v2376 = vld [vmem:[%s17 + $0x1ca8] sm:$0xff]
    %v2377 = vld [vmem:[%s17 + $0x1cb0] sm:$0xff]
    %v2378 = vld [vmem:[%s17 + $0x1cb8] sm:$0xff]
    %v2379 = vld [vmem:[%s17 + $0x1cc0] sm:$0xff]
    %v2380 = vld [vmem:[%s17 + $0x1cc8] sm:$0xff]
    %v2381 = vld [vmem:[%s17 + $0x1cd0] sm:$0xff]
    %v2382 = vld [vmem:[%s17 + $0x1cd8] sm:$0xff]
    %v2383 = vld [vmem:[%s17 + $0x1ce0] sm:$0xff]
    %v2384 = vld [vmem:[%s17 + $0x1ce8] sm:$0xff]
    %v2385 = vld [vmem:[%s17 + $0x1cf0] sm:$0xff]
    %v2386 = vld [vmem:[%s17 + $0x1cf8] sm:$0xff]
    %v2387 = vld [vmem:[%s17 + $0x1d00] sm:$0xff]
    %v2388 = vld [vmem:[%s17 + $0x1d08] sm:$0xff]
    %v2389 = vld [vmem:[%s17 + $0x1d10] sm:$0xff]
    %v2390 = vld [vmem:[%s17 + $0x1d18] sm:$0xff]
    %v2391 = vld [vmem:[%s17 + $0x1d20] sm:$0xff]
    %v2392 = vld [vmem:[%s17 + $0x1d28] sm:$0xff]
    %v2393 = vld [vmem:[%s17 + $0x1d30] sm:$0xff]
    %v2394 = vld [vmem:[%s17 + $0x1d38] sm:$0xff]
    %v2395 = vld [vmem:[%s17 + $0x1d40] sm:$0xff]
    %v2396 = vld [vmem:[%s17 + $0x1d48] sm:$0xff]
    %v2397 = vld [vmem:[%s17 + $0x1d50] sm:$0xff]
    %v2398 = vld [vmem:[%s17 + $0x1d58] sm:$0xff]
    %v2399 = vld [vmem:[%s17 + $0x1d60] sm:$0xff]
    %v2400 = vld [vmem:[%s17 + $0x1d68] sm:$0xff]
    %v2401 = vld [vmem:[%s17 + $0x1d70] sm:$0xff]
    %v2402 = vld [vmem:[%s17 + $0x1d78] sm:$0xff]
    %v2403 = vld [vmem:[%s17 + $0x1d80] sm:$0xff]
    %v2404 = vld [vmem:[%s17 + $0x1d88] sm:$0xff]
    %v2405 = vld [vmem:[%s17 + $0x1d90] sm:$0xff]
    %v2406 = vld [vmem:[%s17 + $0x1d98] sm:$0xff]
    %v2407 = vld [vmem:[%s17 + $0x1da0] sm:$0xff]
    %v2408 = vld [vmem:[%s17 + $0x1da8] sm:$0xff]
    %v2409 = vld [vmem:[%s17 + $0x1db0] sm:$0xff]
    %v2410 = vld [vmem:[%s17 + $0x1db8] sm:$0xff]
    %v2411 = vld [vmem:[%s17 + $0x1dc0] sm:$0xff]
    %v2412 = vld [vmem:[%s17 + $0x1dc8] sm:$0xff]
    %v2413 = vld [vmem:[%s17 + $0x1dd0] sm:$0xff]
    %v2414 = vld [vmem:[%s17 + $0x1dd8] sm:$0xff]
    %v2415 = vld [vmem:[%s17 + $0x1de0] sm:$0xff]
    %v2416 = vld [vmem:[%s17 + $0x1de8] sm:$0xff]
    %v2417 = vld [vmem:[%s17 + $0x1df0] sm:$0xff]
    %v2418 = vld [vmem:[%s17 + $0x1df8] sm:$0xff]
    %v2419 = vld [vmem:[%s17 + $0x1e00] sm:$0xff]
    %v2420 = vld [vmem:[%s17 + $0x1e08] sm:$0xff]
    %v2421 = vld [vmem:[%s17 + $0x1e10] sm:$0xff]
    %v2422 = vld [vmem:[%s17 + $0x1e18] sm:$0xff]
    %v2423 = vld [vmem:[%s17 + $0x1e20] sm:$0xff]
    %v2424 = vld [vmem:[%s17 + $0x1e28] sm:$0xff]
    %v2425 = vld [vmem:[%s17 + $0x1e30] sm:$0xff]
    %v2426 = vld [vmem:[%s17 + $0x1e38] sm:$0xff]
    %v2427 = vld [vmem:[%s17 + $0x1e40] sm:$0xff]
    %v2428 = vld [vmem:[%s17 + $0x1e48] sm:$0xff]
    %v2429 = vld [vmem:[%s17 + $0x1e50] sm:$0xff]
    %v2430 = vld [vmem:[%s17 + $0x1e58] sm:$0xff]
    %v2431 = vld [vmem:[%s17 + $0x1e60] sm:$0xff]
    %v2432 = vld [vmem:[%s17 + $0x1e68] sm:$0xff]
    %v2433 = vld [vmem:[%s17 + $0x1e70] sm:$0xff]
    %v2434 = vld [vmem:[%s17 + $0x1e78] sm:$0xff]
    %v2435 = vld [vmem:[%s17 + $0x1e80] sm:$0xff]
    %v2436 = vld [vmem:[%s17 + $0x1e88] sm:$0xff]
    %v2437 = vld [vmem:[%s17 + $0x1e90] sm:$0xff]
    %v2438 = vld [vmem:[%s17 + $0x1e98] sm:$0xff]
    %v2439 = vld [vmem:[%s17 + $0x1ea0] sm:$0xff]
    %v2440 = vld [vmem:[%s17 + $0x1ea8] sm:$0xff]
    %v2441 = vld [vmem:[%s17 + $0x1eb0] sm:$0xff]
    %v2442 = vld [vmem:[%s17 + $0x1eb8] sm:$0xff]
    %v2443 = vld [vmem:[%s17 + $0x1ec0] sm:$0xff]
    %v2444 = vld [vmem:[%s17 + $0x1ec8] sm:$0xff]
    %v2445 = vld [vmem:[%s17 + $0x1ed0] sm:$0xff]
    %v2446 = vld [vmem:[%s17 + $0x1ed8] sm:$0xff]
    %v2447 = vld [vmem:[%s17 + $0x1ee0] sm:$0xff]
    %v2448 = vld [vmem:[%s17 + $0x1ee8] sm:$0xff]
    %v2449 = vld [vmem:[%s17 + $0x1ef0] sm:$0xff]
    %v2450 = vld [vmem:[%s17 + $0x1ef8] sm:$0xff]
    %v2451 = vld [vmem:[%s17 + $0x1f00] sm:$0xff]
    %v2452 = vld [vmem:[%s17 + $0x1f08] sm:$0xff]
    %v2453 = vld [vmem:[%s17 + $0x1f10] sm:$0xff]
    %v2454 = vld [vmem:[%s17 + $0x1f18] sm:$0xff]
    %v2455 = vld [vmem:[%s17 + $0x1f20] sm:$0xff]
    %v2456 = vld [vmem:[%s17 + $0x1f28] sm:$0xff]
    %v2457 = vld [vmem:[%s17 + $0x1f30] sm:$0xff]
    %v2458 = vld [vmem:[%s17 + $0x1f38] sm:$0xff]
    %v2459 = vld [vmem:[%s17 + $0x1f40] sm:$0xff]
    %v2460 = vld [vmem:[%s17 + $0x1f48] sm:$0xff]
    %v2461 = vld [vmem:[%s17 + $0x1f50] sm:$0xff]
    %v2462 = vld [vmem:[%s17 + $0x1f58] sm:$0xff]
    %v2463 = vld [vmem:[%s17 + $0x1f60] sm:$0xff]
    %v2464 = vld [vmem:[%s17 + $0x1f68] sm:$0xff]
    %v2465 = vld [vmem:[%s17 + $0x1f70] sm:$0xff]
    %v2466 = vld [vmem:[%s17 + $0x1f78] sm:$0xff]
    %v2467 = vld [vmem:[%s17 + $0x1f80] sm:$0xff]
    %v2468 = vld [vmem:[%s17 + $0x1f88] sm:$0xff]
    %v2469 = vld [vmem:[%s17 + $0x1f90] sm:$0xff]
    %v2470 = vld [vmem:[%s17 + $0x1f98] sm:$0xff]
    %v2471 = vld [vmem:[%s17 + $0x1fa0] sm:$0xff]
    %v2472 = vld [vmem:[%s17 + $0x1fa8] sm:$0xff]
    %v2473 = vld [vmem:[%s17 + $0x1fb0] sm:$0xff]
    %v2474 = vld [vmem:[%s17 + $0x1fb8] sm:$0xff]
    %v2475 = vld [vmem:[%s17 + $0x1fc0] sm:$0xff]
    %v2476 = vld [vmem:[%s17 + $0x1fc8] sm:$0xff]
    %v2477 = vld [vmem:[%s17 + $0x1fd0] sm:$0xff]
    %v2478 = vld [vmem:[%s17 + $0x1fd8] sm:$0xff]
    %v2479 = vld [vmem:[%s17 + $0x1fe0] sm:$0xff]
    %v2480 = vld [vmem:[%s17 + $0x1fe8] sm:$0xff]
    %v2481 = vld [vmem:[%s17 + $0x1ff0] sm:$0xff]
    %v2482 = vld [vmem:[%s17 + $0x1ff8] sm:$0xff]
    %v2483 = vld [vmem:[%s17 + $0x2000] sm:$0xff]
    %v2484 = vld [vmem:[%s17 + $0x2008] sm:$0xff]
    %v2485 = vld [vmem:[%s17 + $0x2010] sm:$0xff]
    %v2486 = vld [vmem:[%s17 + $0x2018] sm:$0xff]
    %v2487 = vld [vmem:[%s17 + $0x2020] sm:$0xff]
    %v2488 = vld [vmem:[%s17 + $0x2028] sm:$0xff]
    %v2489 = vld [vmem:[%s17 + $0x2030] sm:$0xff]
    %v2490 = vld [vmem:[%s17 + $0x2038] sm:$0xff]
    %v2491 = vld [vmem:[%s17 + $0x2040] sm:$0xff]
    %v2492 = vld [vmem:[%s17 + $0x2048] sm:$0xff]
    %v2493 = vld [vmem:[%s17 + $0x2050] sm:$0xff]
    %v2494 = vld [vmem:[%s17 + $0x2058] sm:$0xff]
    %v2495 = vld [vmem:[%s17 + $0x2060] sm:$0xff]
    %v2496 = vld [vmem:[%s17 + $0x2068] sm:$0xff]
    %v2497 = vld [vmem:[%s17 + $0x2070] sm:$0xff]
    %v2498 = vld [vmem:[%s17 + $0x2078] sm:$0xff]
    %v2499 = vld [vmem:[%s17 + $0x2080] sm:$0xff]
    %v2500 = vld [vmem:[%s17 + $0x2088] sm:$0xff]
    %v2501 = vld [vmem:[%s17 + $0x2090] sm:$0xff]
    %v2502 = vld [vmem:[%s17 + $0x2098] sm:$0xff]
    %v2503 = vld [vmem:[%s17 + $0x20a0] sm:$0xff]
    %v2504 = vld [vmem:[%s17 + $0x20a8] sm:$0xff]
    %v2505 = vld [vmem:[%s17 + $0x20b0] sm:$0xff]
    %v2506 = vld [vmem:[%s17 + $0x20b8] sm:$0xff]
    %v2507 = vld [vmem:[%s17 + $0x20c0] sm:$0xff]
    %v2508 = vld [vmem:[%s17 + $0x20c8] sm:$0xff]
    %v2509 = vld [vmem:[%s17 + $0x20d0] sm:$0xff]
    %v2510 = vld [vmem:[%s17 + $0x20d8] sm:$0xff]
    %v2511 = vld [vmem:[%s17 + $0x20e0] sm:$0xff]
    %v2512 = vld [vmem:[%s17 + $0x20e8] sm:$0xff]
    %v2513 = vld [vmem:[%s17 + $0x20f0] sm:$0xff]
    %v2514 = vld [vmem:[%s17 + $0x20f8] sm:$0xff]
    %v2515 = vld [vmem:[%s17 + $0x2100] sm:$0xff]
    %v2516 = vld [vmem:[%s17 + $0x2108] sm:$0xff]
    %v2517 = vld [vmem:[%s17 + $0x2110] sm:$0xff]
    %v2518 = vld [vmem:[%s17 + $0x2118] sm:$0xff]
    %v2519 = vld [vmem:[%s17 + $0x2120] sm:$0xff]
    %v2520 = vld [vmem:[%s17 + $0x2128] sm:$0xff]
    %v2521 = vld [vmem:[%s17 + $0x2130] sm:$0xff]
    %v2522 = vld [vmem:[%s17 + $0x2138] sm:$0xff]
    %v2523 = vld [vmem:[%s17 + $0x2140] sm:$0xff]
    %v2524 = vld [vmem:[%s17 + $0x2148] sm:$0xff]
    %v2525 = vld [vmem:[%s17 + $0x2150] sm:$0xff]
    %v2526 = vld [vmem:[%s17 + $0x2158] sm:$0xff]
    %v2527 = vld [vmem:[%s17 + $0x2160] sm:$0xff]
    %v2528 = vld [vmem:[%s17 + $0x2168] sm:$0xff]
    %v2529 = vld [vmem:[%s17 + $0x2170] sm:$0xff]
    %v2530 = vld [vmem:[%s17 + $0x2178] sm:$0xff]
    %v2531 = vld [vmem:[%s17 + $0x2180] sm:$0xff]
    %v2532 = vld [vmem:[%s17 + $0x2188] sm:$0xff]
    %v2533 = vld [vmem:[%s17 + $0x2190] sm:$0xff]
    %v2534 = vld [vmem:[%s17 + $0x2198] sm:$0xff]
    %v2535 = vld [vmem:[%s17 + $0x21a0] sm:$0xff]
    %v2536 = vld [vmem:[%s17 + $0x21a8] sm:$0xff]
    %v2537 = vld [vmem:[%s17 + $0x21b0] sm:$0xff]
    %v2538 = vld [vmem:[%s17 + $0x21b8] sm:$0xff]
    %v2539 = vld [vmem:[%s17 + $0x21c0] sm:$0xff]
    %v2540 = vld [vmem:[%s17 + $0x21c8] sm:$0xff]
    %v2541 = vld [vmem:[%s17 + $0x21d0] sm:$0xff]
    %v2542 = vld [vmem:[%s17 + $0x21d8] sm:$0xff]
    %v2543 = vld [vmem:[%s17 + $0x21e0] sm:$0xff]
    %v2544 = vld [vmem:[%s17 + $0x21e8] sm:$0xff]
    %v2545 = vld [vmem:[%s17 + $0x21f0] sm:$0xff]
    %v2546 = vld [vmem:[%s17 + $0x21f8] sm:$0xff]
    %v2547 = vld [vmem:[%s17 + $0x2200] sm:$0xff]
    %v2548 = vld [vmem:[%s17 + $0x2208] sm:$0xff]
    %v2549 = vld [vmem:[%s17 + $0x2210] sm:$0xff]
    %v2550 = vld [vmem:[%s17 + $0x2218] sm:$0xff]
    %v2551 = vld [vmem:[%s17 + $0x2220] sm:$0xff]
    %v2552 = vld [vmem:[%s17 + $0x2228] sm:$0xff]
    %v2553 = vld [vmem:[%s17 + $0x2230] sm:$0xff]
    %v2554 = vld [vmem:[%s17 + $0x2238] sm:$0xff]
    %v2555 = vld [vmem:[%s17 + $0x2240] sm:$0xff]
    %v2556 = vld [vmem:[%s17 + $0x2248] sm:$0xff]
    %v2557 = vld [vmem:[%s17 + $0x2250] sm:$0xff]
    %v2558 = vld [vmem:[%s17 + $0x2258] sm:$0xff]
    %v2559 = vld [vmem:[%s17 + $0x2260] sm:$0xff]
    %v2560 = vld [vmem:[%s17 + $0x2268] sm:$0xff]
    %v2561 = vld [vmem:[%s17 + $0x2270] sm:$0xff]
    %v2562 = vld [vmem:[%s17 + $0x2278] sm:$0xff]
    %v2563 = vld [vmem:[%s17 + $0x2280] sm:$0xff]
    %v2564 = vld [vmem:[%s17 + $0x2288] sm:$0xff]
    %v2565 = vld [vmem:[%s17 + $0x2290] sm:$0xff]
    %v2566 = vld [vmem:[%s17 + $0x2298] sm:$0xff]
    %v2567 = vld [vmem:[%s17 + $0x22a0] sm:$0xff]
    %v2568 = vld [vmem:[%s17 + $0x22a8] sm:$0xff]
    %v2569 = vld [vmem:[%s17 + $0x22b0] sm:$0xff]
    %v2570 = vld [vmem:[%s17 + $0x22b8] sm:$0xff]
    %v2571 = vld [vmem:[%s17 + $0x22c0] sm:$0xff]
    %v2572 = vld [vmem:[%s17 + $0x22c8] sm:$0xff]
    %v2573 = vld [vmem:[%s17 + $0x22d0] sm:$0xff]
    %v2574 = vld [vmem:[%s17 + $0x22d8] sm:$0xff]
    %v2575 = vld [vmem:[%s17 + $0x22e0] sm:$0xff]
    %v2576 = vld [vmem:[%s17 + $0x22e8] sm:$0xff]
    %v2577 = vld [vmem:[%s17 + $0x22f0] sm:$0xff]
    %v2578 = vld [vmem:[%s17 + $0x22f8] sm:$0xff]
    %v2579 = vld [vmem:[%s17 + $0x2300] sm:$0xff]
    %v2580 = vld [vmem:[%s17 + $0x2308] sm:$0xff]
    %v2581 = vld [vmem:[%s17 + $0x2310] sm:$0xff]
    %v2582 = vld [vmem:[%s17 + $0x2318] sm:$0xff]
    %v2583 = vld [vmem:[%s17 + $0x2320] sm:$0xff]
    %v2584 = vld [vmem:[%s17 + $0x2328] sm:$0xff]
    %v2585 = vld [vmem:[%s17 + $0x2330] sm:$0xff]
    %v2586 = vld [vmem:[%s17 + $0x2338] sm:$0xff]
    %v2587 = vld [vmem:[%s17 + $0x2340] sm:$0xff]
    %v2588 = vld [vmem:[%s17 + $0x2348] sm:$0xff]
    %v2589 = vld [vmem:[%s17 + $0x2350] sm:$0xff]
    %v2590 = vld [vmem:[%s17 + $0x2358] sm:$0xff]
    %v2591 = vld [vmem:[%s17 + $0x2360] sm:$0xff]
    %v2592 = vld [vmem:[%s17 + $0x2368] sm:$0xff]
    %v2593 = vld [vmem:[%s17 + $0x2370] sm:$0xff]
    %v2594 = vld [vmem:[%s17 + $0x2378] sm:$0xff]
    %v2595 = vld [vmem:[%s17 + $0x2380] sm:$0xff]
    %v2596 = vld [vmem:[%s17 + $0x2388] sm:$0xff]
    %v2597 = vld [vmem:[%s17 + $0x2390] sm:$0xff]
    %v2598 = vld [vmem:[%s17 + $0x2398] sm:$0xff]
    %v2599 = vld [vmem:[%s17 + $0x23a0] sm:$0xff]
    %v2600 = vld [vmem:[%s17 + $0x23a8] sm:$0xff]
    %v2601 = vld [vmem:[%s17 + $0x23b0] sm:$0xff]
    %v2602 = vld [vmem:[%s17 + $0x23b8] sm:$0xff]
    %v2603 = vld [vmem:[%s17 + $0x23c0] sm:$0xff]
    %v2604 = vld [vmem:[%s17 + $0x23c8] sm:$0xff]
    %v2605 = vld [vmem:[%s17 + $0x23d0] sm:$0xff]
    %v2606 = vld [vmem:[%s17 + $0x23d8] sm:$0xff]
    %v2607 = vld [vmem:[%s17 + $0x23e0] sm:$0xff]
    %v2608 = vld [vmem:[%s17 + $0x23e8] sm:$0xff]
    %v2609 = vld [vmem:[%s17 + $0x23f0] sm:$0xff]
    %v2610 = vld [vmem:[%s17 + $0x23f8] sm:$0xff]
    %2611 = vmatpush.msra.mxu0 %v2050
    %2612 = vmatpush.msra.mxu0 %v2049
    %2613 = vmatpush.msra.mxu0 %v2048
    %2614 = vmatpush.msra.mxu0 %v2047
    %2615 = vmatpush.msra.mxu0 %v2046
    %2616 = vmatpush.msra.mxu0 %v2045
    %2617 = vmatpush.msra.mxu0 %v2044
    %2618 = vmatpush.msra.mxu0 %v2043
    %2619 = vmatpush.msra.mxu0 %v2042
    %2620 = vmatpush.msra.mxu0 %v2041
    %2621 = vmatpush.msra.mxu0 %v2040
    %2622 = vmatpush.msra.mxu0 %v2039
    %2623 = vmatpush.msra.mxu0 %v2038
    %2624 = vmatpush.msra.mxu0 %v2037
    %2625 = vmatpush.msra.mxu0 %v2036
    %2626 = vmatpush.msra.mxu0 %v2035
    %2627 = vmatmul.f32.gmra.mxu0 %v1423
    %v2628 = vpop.f32.mrf.mxu0
    %v2629 = vadd.f32 0.0, %v2628
    %2630 = vdwg.mxu0
    %2631 = vmatpush.msra.mxu0 %v2066
    %2632 = vmatpush.msra.mxu0 %v2065
    %2633 = vmatpush.msra.mxu0 %v2064
    %2634 = vmatpush.msra.mxu0 %v2063
    %2635 = vmatpush.msra.mxu0 %v2062
    %2636 = vmatpush.msra.mxu0 %v2061
    %2637 = vmatpush.msra.mxu0 %v2060
    %2638 = vmatpush.msra.mxu0 %v2059
    %2639 = vmatpush.msra.mxu0 %v2058
    %2640 = vmatpush.msra.mxu0 %v2057
    %2641 = vmatpush.msra.mxu0 %v2056
    %2642 = vmatpush.msra.mxu0 %v2055
    %2643 = vmatpush.msra.mxu0 %v2054
    %2644 = vmatpush.msra.mxu0 %v2053
    %2645 = vmatpush.msra.mxu0 %v2052
    %2646 = vmatpush.msra.mxu0 %v2051
    %2647 = vmatmul.f32.gmra.mxu0 %v1424
    %v2648 = vpop.f32.mrf.mxu0
    %v2649 = vadd.f32 %v2629, %v2648
    %2650 = vdwg.mxu0
    %2651 = vmatpush.msra.mxu0 %v2082
    %2652 = vmatpush.msra.mxu0 %v2081
    %2653 = vmatpush.msra.mxu0 %v2080
    %2654 = vmatpush.msra.mxu0 %v2079
    %2655 = vmatpush.msra.mxu0 %v2078
    %2656 = vmatpush.msra.mxu0 %v2077
    %2657 = vmatpush.msra.mxu0 %v2076
    %2658 = vmatpush.msra.mxu0 %v2075
    %2659 = vmatpush.msra.mxu0 %v2074
    %2660 = vmatpush.msra.mxu0 %v2073
    %2661 = vmatpush.msra.mxu0 %v2072
    %2662 = vmatpush.msra.mxu0 %v2071
    %2663 = vmatpush.msra.mxu0 %v2070
    %2664 = vmatpush.msra.mxu0 %v2069
    %2665 = vmatpush.msra.mxu0 %v2068
    %2666 = vmatpush.msra.mxu0 %v2067
    %2667 = vmatmul.f32.gmra.mxu0 %v1425
    %v2668 = vpop.f32.mrf.mxu0
    %v2669 = vadd.f32 %v2649, %v2668
    %2670 = vdwg.mxu0
    %2671 = vmatpush.msra.mxu0 %v2098
    %2672 = vmatpush.msra.mxu0 %v2097
    %2673 = vmatpush.msra.mxu0 %v2096
    %2674 = vmatpush.msra.mxu0 %v2095
    %2675 = vmatpush.msra.mxu0 %v2094
    %2676 = vmatpush.msra.mxu0 %v2093
    %2677 = vmatpush.msra.mxu0 %v2092
    %2678 = vmatpush.msra.mxu0 %v2091
    %2679 = vmatpush.msra.mxu0 %v2090
    %2680 = vmatpush.msra.mxu0 %v2089
    %2681 = vmatpush.msra.mxu0 %v2088
    %2682 = vmatpush.msra.mxu0 %v2087
    %2683 = vmatpush.msra.mxu0 %v2086
    %2684 = vmatpush.msra.mxu0 %v2085
    %2685 = vmatpush.msra.mxu0 %v2084
    %2686 = vmatpush.msra.mxu0 %v2083
    %2687 = vmatmul.f32.gmra.mxu0 %v1426
    %v2688 = vpop.f32.mrf.mxu0
    %v2689 = vadd.f32 %v2669, %v2688
    %2690 = vdwg.mxu0
    %2691 = vmatpush.msra.mxu0 %v2114
    %2692 = vmatpush.msra.mxu0 %v2113
    %2693 = vmatpush.msra.mxu0 %v2112
    %2694 = vmatpush.msra.mxu0 %v2111
    %2695 = vmatpush.msra.mxu0 %v2110
    %2696 = vmatpush.msra.mxu0 %v2109
    %2697 = vmatpush.msra.mxu0 %v2108
    %2698 = vmatpush.msra.mxu0 %v2107
    %2699 = vmatpush.msra.mxu0 %v2106
    %2700 = vmatpush.msra.mxu0 %v2105
    %2701 = vmatpush.msra.mxu0 %v2104
    %2702 = vmatpush.msra.mxu0 %v2103
    %2703 = vmatpush.msra.mxu0 %v2102
    %2704 = vmatpush.msra.mxu0 %v2101
    %2705 = vmatpush.msra.mxu0 %v2100
    %2706 = vmatpush.msra.mxu0 %v2099
    %2707 = vmatmul.f32.gmra.mxu0 %v1427
    %v2708 = vpop.f32.mrf.mxu0
    %v2709 = vadd.f32 %v2689, %v2708
    %2710 = vdwg.mxu0
    %2711 = vmatpush.msra.mxu0 %v2130
    %2712 = vmatpush.msra.mxu0 %v2129
    %2713 = vmatpush.msra.mxu0 %v2128
    %2714 = vmatpush.msra.mxu0 %v2127
    %2715 = vmatpush.msra.mxu0 %v2126
    %2716 = vmatpush.msra.mxu0 %v2125
    %2717 = vmatpush.msra.mxu0 %v2124
    %2718 = vmatpush.msra.mxu0 %v2123
    %2719 = vmatpush.msra.mxu0 %v2122
    %2720 = vmatpush.msra.mxu0 %v2121
    %2721 = vmatpush.msra.mxu0 %v2120
    %2722 = vmatpush.msra.mxu0 %v2119
    %2723 = vmatpush.msra.mxu0 %v2118
    %2724 = vmatpush.msra.mxu0 %v2117
    %2725 = vmatpush.msra.mxu0 %v2116
    %2726 = vmatpush.msra.mxu0 %v2115
    %2727 = vmatmul.f32.gmra.mxu0 %v1428
    %v2728 = vpop.f32.mrf.mxu0
    %v2729 = vadd.f32 %v2709, %v2728
    %2730 = vdwg.mxu0
    %2731 = vmatpush.msra.mxu0 %v2146
    %2732 = vmatpush.msra.mxu0 %v2145
    %2733 = vmatpush.msra.mxu0 %v2144
    %2734 = vmatpush.msra.mxu0 %v2143
    %2735 = vmatpush.msra.mxu0 %v2142
    %2736 = vmatpush.msra.mxu0 %v2141
    %2737 = vmatpush.msra.mxu0 %v2140
    %2738 = vmatpush.msra.mxu0 %v2139
    %2739 = vmatpush.msra.mxu0 %v2138
    %2740 = vmatpush.msra.mxu0 %v2137
    %2741 = vmatpush.msra.mxu0 %v2136
    %2742 = vmatpush.msra.mxu0 %v2135
    %2743 = vmatpush.msra.mxu0 %v2134
    %2744 = vmatpush.msra.mxu0 %v2133
    %2745 = vmatpush.msra.mxu0 %v2132
    %2746 = vmatpush.msra.mxu0 %v2131
    %2747 = vmatmul.f32.gmra.mxu0 %v1429
    %v2748 = vpop.f32.mrf.mxu0
    %v2749 = vadd.f32 %v2729, %v2748
    %2750 = vdwg.mxu0
    %2751 = vmatpush.msra.mxu0 %v2162
    %2752 = vmatpush.msra.mxu0 %v2161
    %2753 = vmatpush.msra.mxu0 %v2160
    %2754 = vmatpush.msra.mxu0 %v2159
    %2755 = vmatpush.msra.mxu0 %v2158
    %2756 = vmatpush.msra.mxu0 %v2157
    %2757 = vmatpush.msra.mxu0 %v2156
    %2758 = vmatpush.msra.mxu0 %v2155
    %2759 = vmatpush.msra.mxu0 %v2154
    %2760 = vmatpush.msra.mxu0 %v2153
    %2761 = vmatpush.msra.mxu0 %v2152
    %2762 = vmatpush.msra.mxu0 %v2151
    %2763 = vmatpush.msra.mxu0 %v2150
    %2764 = vmatpush.msra.mxu0 %v2149
    %2765 = vmatpush.msra.mxu0 %v2148
    %2766 = vmatpush.msra.mxu0 %v2147
    %2767 = vmatmul.f32.gmra.mxu0 %v1430
    %v2768 = vpop.f32.mrf.mxu0
    %v2769 = vadd.f32 %v2749, %v2768
    %2770 = vdwg.mxu0
    %2771 = vmatpush.msra.mxu0 %v2178
    %2772 = vmatpush.msra.mxu0 %v2177
    %2773 = vmatpush.msra.mxu0 %v2176
    %2774 = vmatpush.msra.mxu0 %v2175
    %2775 = vmatpush.msra.mxu0 %v2174
    %2776 = vmatpush.msra.mxu0 %v2173
    %2777 = vmatpush.msra.mxu0 %v2172
    %2778 = vmatpush.msra.mxu0 %v2171
    %2779 = vmatpush.msra.mxu0 %v2170
    %2780 = vmatpush.msra.mxu0 %v2169
    %2781 = vmatpush.msra.mxu0 %v2168
    %2782 = vmatpush.msra.mxu0 %v2167
    %2783 = vmatpush.msra.mxu0 %v2166
    %2784 = vmatpush.msra.mxu0 %v2165
    %2785 = vmatpush.msra.mxu0 %v2164
    %2786 = vmatpush.msra.mxu0 %v2163
    %2787 = vmatmul.f32.gmra.mxu0 %v1431
    %v2788 = vpop.f32.mrf.mxu0
    %v2789 = vadd.f32 %v2769, %v2788
    %2790 = vdwg.mxu0
    %2791 = vmatpush.msra.mxu0 %v2194
    %2792 = vmatpush.msra.mxu0 %v2193
    %2793 = vmatpush.msra.mxu0 %v2192
    %2794 = vmatpush.msra.mxu0 %v2191
    %2795 = vmatpush.msra.mxu0 %v2190
    %2796 = vmatpush.msra.mxu0 %v2189
    %2797 = vmatpush.msra.mxu0 %v2188
    %2798 = vmatpush.msra.mxu0 %v2187
    %2799 = vmatpush.msra.mxu0 %v2186
    %2800 = vmatpush.msra.mxu0 %v2185
    %2801 = vmatpush.msra.mxu0 %v2184
    %2802 = vmatpush.msra.mxu0 %v2183
    %2803 = vmatpush.msra.mxu0 %v2182
    %2804 = vmatpush.msra.mxu0 %v2181
    %2805 = vmatpush.msra.mxu0 %v2180
    %2806 = vmatpush.msra.mxu0 %v2179
    %2807 = vmatmul.f32.gmra.mxu0 %v1432
    %v2808 = vpop.f32.mrf.mxu0
    %v2809 = vadd.f32 %v2789, %v2808
    %2810 = vdwg.mxu0
    %2811 = vmatpush.msra.mxu0 %v2210
    %2812 = vmatpush.msra.mxu0 %v2209
    %2813 = vmatpush.msra.mxu0 %v2208
    %2814 = vmatpush.msra.mxu0 %v2207
    %2815 = vmatpush.msra.mxu0 %v2206
    %2816 = vmatpush.msra.mxu0 %v2205
    %2817 = vmatpush.msra.mxu0 %v2204
    %2818 = vmatpush.msra.mxu0 %v2203
    %2819 = vmatpush.msra.mxu0 %v2202
    %2820 = vmatpush.msra.mxu0 %v2201
    %2821 = vmatpush.msra.mxu0 %v2200
    %2822 = vmatpush.msra.mxu0 %v2199
    %2823 = vmatpush.msra.mxu0 %v2198
    %2824 = vmatpush.msra.mxu0 %v2197
    %2825 = vmatpush.msra.mxu0 %v2196
    %2826 = vmatpush.msra.mxu0 %v2195
    %2827 = vmatmul.f32.gmra.mxu0 %v1433
    %v2828 = vpop.f32.mrf.mxu0
    %v2829 = vadd.f32 %v2809, %v2828
    %2830 = vdwg.mxu0
    %2831 = vmatpush.msra.mxu0 %v2226
    %2832 = vmatpush.msra.mxu0 %v2225
    %2833 = vmatpush.msra.mxu0 %v2224
    %2834 = vmatpush.msra.mxu0 %v2223
    %2835 = vmatpush.msra.mxu0 %v2222
    %2836 = vmatpush.msra.mxu0 %v2221
    %2837 = vmatpush.msra.mxu0 %v2220
    %2838 = vmatpush.msra.mxu0 %v2219
    %2839 = vmatpush.msra.mxu0 %v2218
    %2840 = vmatpush.msra.mxu0 %v2217
    %2841 = vmatpush.msra.mxu0 %v2216
    %2842 = vmatpush.msra.mxu0 %v2215
    %2843 = vmatpush.msra.mxu0 %v2214
    %2844 = vmatpush.msra.mxu0 %v2213
    %2845 = vmatpush.msra.mxu0 %v2212
    %2846 = vmatpush.msra.mxu0 %v2211
    %2847 = vmatmul.f32.gmra.mxu0 %v1434
    %v2848 = vpop.f32.mrf.mxu0
    %v2849 = vadd.f32 %v2829, %v2848
    %2850 = vdwg.mxu0
    %2851 = vmatpush.msra.mxu0 %v2242
    %2852 = vmatpush.msra.mxu0 %v2241
    %2853 = vmatpush.msra.mxu0 %v2240
    %2854 = vmatpush.msra.mxu0 %v2239
    %2855 = vmatpush.msra.mxu0 %v2238
    %2856 = vmatpush.msra.mxu0 %v2237
    %2857 = vmatpush.msra.mxu0 %v2236
    %2858 = vmatpush.msra.mxu0 %v2235
    %2859 = vmatpush.msra.mxu0 %v2234
    %2860 = vmatpush.msra.mxu0 %v2233
    %2861 = vmatpush.msra.mxu0 %v2232
    %2862 = vmatpush.msra.mxu0 %v2231
    %2863 = vmatpush.msra.mxu0 %v2230
    %2864 = vmatpush.msra.mxu0 %v2229
    %2865 = vmatpush.msra.mxu0 %v2228
    %2866 = vmatpush.msra.mxu0 %v2227
    %2867 = vmatmul.f32.gmra.mxu0 %v1435
    %v2868 = vpop.f32.mrf.mxu0
    %v2869 = vadd.f32 %v2849, %v2868
    %2870 = vdwg.mxu0
    %2871 = vmatpush.msra.mxu0 %v2258
    %2872 = vmatpush.msra.mxu0 %v2257
    %2873 = vmatpush.msra.mxu0 %v2256
    %2874 = vmatpush.msra.mxu0 %v2255
    %2875 = vmatpush.msra.mxu0 %v2254
    %2876 = vmatpush.msra.mxu0 %v2253
    %2877 = vmatpush.msra.mxu0 %v2252
    %2878 = vmatpush.msra.mxu0 %v2251
    %2879 = vmatpush.msra.mxu0 %v2250
    %2880 = vmatpush.msra.mxu0 %v2249
    %2881 = vmatpush.msra.mxu0 %v2248
    %2882 = vmatpush.msra.mxu0 %v2247
    %2883 = vmatpush.msra.mxu0 %v2246
    %2884 = vmatpush.msra.mxu0 %v2245
    %2885 = vmatpush.msra.mxu0 %v2244
    %2886 = vmatpush.msra.mxu0 %v2243
    %2887 = vmatmul.f32.gmra.mxu0 %v1436
    %v2888 = vpop.f32.mrf.mxu0
    %v2889 = vadd.f32 %v2869, %v2888
    %2890 = vdwg.mxu0
    %2891 = vmatpush.msra.mxu0 %v2274
    %2892 = vmatpush.msra.mxu0 %v2273
    %2893 = vmatpush.msra.mxu0 %v2272
    %2894 = vmatpush.msra.mxu0 %v2271
    %2895 = vmatpush.msra.mxu0 %v2270
    %2896 = vmatpush.msra.mxu0 %v2269
    %2897 = vmatpush.msra.mxu0 %v2268
    %2898 = vmatpush.msra.mxu0 %v2267
    %2899 = vmatpush.msra.mxu0 %v2266
    %2900 = vmatpush.msra.mxu0 %v2265
    %2901 = vmatpush.msra.mxu0 %v2264
    %2902 = vmatpush.msra.mxu0 %v2263
    %2903 = vmatpush.msra.mxu0 %v2262
    %2904 = vmatpush.msra.mxu0 %v2261
    %2905 = vmatpush.msra.mxu0 %v2260
    %2906 = vmatpush.msra.mxu0 %v2259
    %2907 = vmatmul.f32.gmra.mxu0 %v1437
    %v2908 = vpop.f32.mrf.mxu0
    %v2909 = vadd.f32 %v2889, %v2908
    %2910 = vdwg.mxu0
    %2911 = vmatpush.msra.mxu0 %v2290
    %2912 = vmatpush.msra.mxu0 %v2289
    %2913 = vmatpush.msra.mxu0 %v2288
    %2914 = vmatpush.msra.mxu0 %v2287
    %2915 = vmatpush.msra.mxu0 %v2286
    %2916 = vmatpush.msra.mxu0 %v2285
    %2917 = vmatpush.msra.mxu0 %v2284
    %2918 = vmatpush.msra.mxu0 %v2283
    %2919 = vmatpush.msra.mxu0 %v2282
    %2920 = vmatpush.msra.mxu0 %v2281
    %2921 = vmatpush.msra.mxu0 %v2280
    %2922 = vmatpush.msra.mxu0 %v2279
    %2923 = vmatpush.msra.mxu0 %v2278
    %2924 = vmatpush.msra.mxu0 %v2277
    %2925 = vmatpush.msra.mxu0 %v2276
    %2926 = vmatpush.msra.mxu0 %v2275
    %2927 = vmatmul.f32.gmra.mxu0 %v1438
    %v2928 = vpop.f32.mrf.mxu0
    %v2929 = vadd.f32 %v2909, %v2928
    %2930 = vdwg.mxu0
    %2931 = vmatpush.msra.mxu0 %v2306
    %2932 = vmatpush.msra.mxu0 %v2305
    %2933 = vmatpush.msra.mxu0 %v2304
    %2934 = vmatpush.msra.mxu0 %v2303
    %2935 = vmatpush.msra.mxu0 %v2302
    %2936 = vmatpush.msra.mxu0 %v2301
    %2937 = vmatpush.msra.mxu0 %v2300
    %2938 = vmatpush.msra.mxu0 %v2299
    %2939 = vmatpush.msra.mxu0 %v2298
    %2940 = vmatpush.msra.mxu0 %v2297
    %2941 = vmatpush.msra.mxu0 %v2296
    %2942 = vmatpush.msra.mxu0 %v2295
    %2943 = vmatpush.msra.mxu0 %v2294
    %2944 = vmatpush.msra.mxu0 %v2293
    %2945 = vmatpush.msra.mxu0 %v2292
    %2946 = vmatpush.msra.mxu0 %v2291
    %2947 = vmatmul.f32.gmra.mxu0 %v1439
    %v2948 = vpop.f32.mrf.mxu0
    %v2949 = vadd.f32 %v2929, %v2948
    %2950 = vdwg.mxu0
    %2951 = vmatpush.msra.mxu0 %v2322
    %2952 = vmatpush.msra.mxu0 %v2321
    %2953 = vmatpush.msra.mxu0 %v2320
    %2954 = vmatpush.msra.mxu0 %v2319
    %2955 = vmatpush.msra.mxu0 %v2318
    %2956 = vmatpush.msra.mxu0 %v2317
    %2957 = vmatpush.msra.mxu0 %v2316
    %2958 = vmatpush.msra.mxu0 %v2315
    %2959 = vmatpush.msra.mxu0 %v2314
    %2960 = vmatpush.msra.mxu0 %v2313
    %2961 = vmatpush.msra.mxu0 %v2312
    %2962 = vmatpush.msra.mxu0 %v2311
    %2963 = vmatpush.msra.mxu0 %v2310
    %2964 = vmatpush.msra.mxu0 %v2309
    %2965 = vmatpush.msra.mxu0 %v2308
    %2966 = vmatpush.msra.mxu0 %v2307
    %2967 = vmatmul.f32.gmra.mxu0 %v1440
    %v2968 = vpop.f32.mrf.mxu0
    %v2969 = vadd.f32 %v2949, %v2968
    %2970 = vdwg.mxu0
    %2971 = vmatpush.msra.mxu0 %v2338
    %2972 = vmatpush.msra.mxu0 %v2337
    %2973 = vmatpush.msra.mxu0 %v2336
    %2974 = vmatpush.msra.mxu0 %v2335
    %2975 = vmatpush.msra.mxu0 %v2334
    %2976 = vmatpush.msra.mxu0 %v2333
    %2977 = vmatpush.msra.mxu0 %v2332
    %2978 = vmatpush.msra.mxu0 %v2331
    %2979 = vmatpush.msra.mxu0 %v2330
    %2980 = vmatpush.msra.mxu0 %v2329
    %2981 = vmatpush.msra.mxu0 %v2328
    %2982 = vmatpush.msra.mxu0 %v2327
    %2983 = vmatpush.msra.mxu0 %v2326
    %2984 = vmatpush.msra.mxu0 %v2325
    %2985 = vmatpush.msra.mxu0 %v2324
    %2986 = vmatpush.msra.mxu0 %v2323
    %2987 = vmatmul.f32.gmra.mxu0 %v1441
    %v2988 = vpop.f32.mrf.mxu0
    %v2989 = vadd.f32 %v2969, %v2988
    %2990 = vdwg.mxu0
    %2991 = vmatpush.msra.mxu0 %v2354
    %2992 = vmatpush.msra.mxu0 %v2353
    %2993 = vmatpush.msra.mxu0 %v2352
    %2994 = vmatpush.msra.mxu0 %v2351
    %2995 = vmatpush.msra.mxu0 %v2350
    %2996 = vmatpush.msra.mxu0 %v2349
    %2997 = vmatpush.msra.mxu0 %v2348
    %2998 = vmatpush.msra.mxu0 %v2347
    %2999 = vmatpush.msra.mxu0 %v2346
    %3000 = vmatpush.msra.mxu0 %v2345
    %3001 = vmatpush.msra.mxu0 %v2344
    %3002 = vmatpush.msra.mxu0 %v2343
    %3003 = vmatpush.msra.mxu0 %v2342
    %3004 = vmatpush.msra.mxu0 %v2341
    %3005 = vmatpush.msra.mxu0 %v2340
    %3006 = vmatpush.msra.mxu0 %v2339
    %3007 = vmatmul.f32.gmra.mxu0 %v1442
    %v3008 = vpop.f32.mrf.mxu0
    %v3009 = vadd.f32 %v2989, %v3008
    %3010 = vdwg.mxu0
    %3011 = vmatpush.msra.mxu0 %v2370
    %3012 = vmatpush.msra.mxu0 %v2369
    %3013 = vmatpush.msra.mxu0 %v2368
    %3014 = vmatpush.msra.mxu0 %v2367
    %3015 = vmatpush.msra.mxu0 %v2366
    %3016 = vmatpush.msra.mxu0 %v2365
    %3017 = vmatpush.msra.mxu0 %v2364
    %3018 = vmatpush.msra.mxu0 %v2363
    %3019 = vmatpush.msra.mxu0 %v2362
    %3020 = vmatpush.msra.mxu0 %v2361
    %3021 = vmatpush.msra.mxu0 %v2360
    %3022 = vmatpush.msra.mxu0 %v2359
    %3023 = vmatpush.msra.mxu0 %v2358
    %3024 = vmatpush.msra.mxu0 %v2357
    %3025 = vmatpush.msra.mxu0 %v2356
    %3026 = vmatpush.msra.mxu0 %v2355
    %3027 = vmatmul.f32.gmra.mxu0 %v1443
    %v3028 = vpop.f32.mrf.mxu0
    %v3029 = vadd.f32 %v3009, %v3028
    %3030 = vdwg.mxu0
    %3031 = vmatpush.msra.mxu0 %v2386
    %3032 = vmatpush.msra.mxu0 %v2385
    %3033 = vmatpush.msra.mxu0 %v2384
    %3034 = vmatpush.msra.mxu0 %v2383
    %3035 = vmatpush.msra.mxu0 %v2382
    %3036 = vmatpush.msra.mxu0 %v2381
    %3037 = vmatpush.msra.mxu0 %v2380
    %3038 = vmatpush.msra.mxu0 %v2379
    %3039 = vmatpush.msra.mxu0 %v2378
    %3040 = vmatpush.msra.mxu0 %v2377
    %3041 = vmatpush.msra.mxu0 %v2376
    %3042 = vmatpush.msra.mxu0 %v2375
    %3043 = vmatpush.msra.mxu0 %v2374
    %3044 = vmatpush.msra.mxu0 %v2373
    %3045 = vmatpush.msra.mxu0 %v2372
    %3046 = vmatpush.msra.mxu0 %v2371
    %3047 = vmatmul.f32.gmra.mxu0 %v1444
    %v3048 = vpop.f32.mrf.mxu0
    %v3049 = vadd.f32 %v3029, %v3048
    %3050 = vdwg.mxu0
    %3051 = vmatpush.msra.mxu0 %v2402
    %3052 = vmatpush.msra.mxu0 %v2401
    %3053 = vmatpush.msra.mxu0 %v2400
    %3054 = vmatpush.msra.mxu0 %v2399
    %3055 = vmatpush.msra.mxu0 %v2398
    %3056 = vmatpush.msra.mxu0 %v2397
    %3057 = vmatpush.msra.mxu0 %v2396
    %3058 = vmatpush.msra.mxu0 %v2395
    %3059 = vmatpush.msra.mxu0 %v2394
    %3060 = vmatpush.msra.mxu0 %v2393
    %3061 = vmatpush.msra.mxu0 %v2392
    %3062 = vmatpush.msra.mxu0 %v2391
    %3063 = vmatpush.msra.mxu0 %v2390
    %3064 = vmatpush.msra.mxu0 %v2389
    %3065 = vmatpush.msra.mxu0 %v2388
    %3066 = vmatpush.msra.mxu0 %v2387
    %3067 = vmatmul.f32.gmra.mxu0 %v1445
    %v3068 = vpop.f32.mrf.mxu0
    %v3069 = vadd.f32 %v3049, %v3068
    %3070 = vdwg.mxu0
    %3071 = vmatpush.msra.mxu0 %v2418
    %3072 = vmatpush.msra.mxu0 %v2417
    %3073 = vmatpush.msra.mxu0 %v2416
    %3074 = vmatpush.msra.mxu0 %v2415
    %3075 = vmatpush.msra.mxu0 %v2414
    %3076 = vmatpush.msra.mxu0 %v2413
    %3077 = vmatpush.msra.mxu0 %v2412
    %3078 = vmatpush.msra.mxu0 %v2411
    %3079 = vmatpush.msra.mxu0 %v2410
    %3080 = vmatpush.msra.mxu0 %v2409
    %3081 = vmatpush.msra.mxu0 %v2408
    %3082 = vmatpush.msra.mxu0 %v2407
    %3083 = vmatpush.msra.mxu0 %v2406
    %3084 = vmatpush.msra.mxu0 %v2405
    %3085 = vmatpush.msra.mxu0 %v2404
    %3086 = vmatpush.msra.mxu0 %v2403
    %3087 = vmatmul.f32.gmra.mxu0 %v1446
    %v3088 = vpop.f32.mrf.mxu0
    %v3089 = vadd.f32 %v3069, %v3088
    %3090 = vdwg.mxu0
    %3091 = vmatpush.msra.mxu0 %v2434
    %3092 = vmatpush.msra.mxu0 %v2433
    %3093 = vmatpush.msra.mxu0 %v2432
    %3094 = vmatpush.msra.mxu0 %v2431
    %3095 = vmatpush.msra.mxu0 %v2430
    %3096 = vmatpush.msra.mxu0 %v2429
    %3097 = vmatpush.msra.mxu0 %v2428
    %3098 = vmatpush.msra.mxu0 %v2427
    %3099 = vmatpush.msra.mxu0 %v2426
    %3100 = vmatpush.msra.mxu0 %v2425
    %3101 = vmatpush.msra.mxu0 %v2424
    %3102 = vmatpush.msra.mxu0 %v2423
    %3103 = vmatpush.msra.mxu0 %v2422
    %3104 = vmatpush.msra.mxu0 %v2421
    %3105 = vmatpush.msra.mxu0 %v2420
    %3106 = vmatpush.msra.mxu0 %v2419
    %3107 = vmatmul.f32.gmra.mxu0 %v1447
    %v3108 = vpop.f32.mrf.mxu0
    %v3109 = vadd.f32 %v3089, %v3108
    %3110 = vdwg.mxu0
    %3111 = vmatpush.msra.mxu0 %v2450
    %3112 = vmatpush.msra.mxu0 %v2449
    %3113 = vmatpush.msra.mxu0 %v2448
    %3114 = vmatpush.msra.mxu0 %v2447
    %3115 = vmatpush.msra.mxu0 %v2446
    %3116 = vmatpush.msra.mxu0 %v2445
    %3117 = vmatpush.msra.mxu0 %v2444
    %3118 = vmatpush.msra.mxu0 %v2443
    %3119 = vmatpush.msra.mxu0 %v2442
    %3120 = vmatpush.msra.mxu0 %v2441
    %3121 = vmatpush.msra.mxu0 %v2440
    %3122 = vmatpush.msra.mxu0 %v2439
    %3123 = vmatpush.msra.mxu0 %v2438
    %3124 = vmatpush.msra.mxu0 %v2437
    %3125 = vmatpush.msra.mxu0 %v2436
    %3126 = vmatpush.msra.mxu0 %v2435
    %3127 = vmatmul.f32.gmra.mxu0 %v1448
    %v3128 = vpop.f32.mrf.mxu0
    %v3129 = vadd.f32 %v3109, %v3128
    %3130 = vdwg.mxu0
    %3131 = vmatpush.msra.mxu0 %v2466
    %3132 = vmatpush.msra.mxu0 %v2465
    %3133 = vmatpush.msra.mxu0 %v2464
    %3134 = vmatpush.msra.mxu0 %v2463
    %3135 = vmatpush.msra.mxu0 %v2462
    %3136 = vmatpush.msra.mxu0 %v2461
    %3137 = vmatpush.msra.mxu0 %v2460
    %3138 = vmatpush.msra.mxu0 %v2459
    %3139 = vmatpush.msra.mxu0 %v2458
    %3140 = vmatpush.msra.mxu0 %v2457
    %3141 = vmatpush.msra.mxu0 %v2456
    %3142 = vmatpush.msra.mxu0 %v2455
    %3143 = vmatpush.msra.mxu0 %v2454
    %3144 = vmatpush.msra.mxu0 %v2453
    %3145 = vmatpush.msra.mxu0 %v2452
    %3146 = vmatpush.msra.mxu0 %v2451
    %3147 = vmatmul.f32.gmra.mxu0 %v1449
    %v3148 = vpop.f32.mrf.mxu0
    %v3149 = vadd.f32 %v3129, %v3148
    %3150 = vdwg.mxu0
    %3151 = vmatpush.msra.mxu0 %v2482
    %3152 = vmatpush.msra.mxu0 %v2481
    %3153 = vmatpush.msra.mxu0 %v2480
    %3154 = vmatpush.msra.mxu0 %v2479
    %3155 = vmatpush.msra.mxu0 %v2478
    %3156 = vmatpush.msra.mxu0 %v2477
    %3157 = vmatpush.msra.mxu0 %v2476
    %3158 = vmatpush.msra.mxu0 %v2475
    %3159 = vmatpush.msra.mxu0 %v2474
    %3160 = vmatpush.msra.mxu0 %v2473
    %3161 = vmatpush.msra.mxu0 %v2472
    %3162 = vmatpush.msra.mxu0 %v2471
    %3163 = vmatpush.msra.mxu0 %v2470
    %3164 = vmatpush.msra.mxu0 %v2469
    %3165 = vmatpush.msra.mxu0 %v2468
    %3166 = vmatpush.msra.mxu0 %v2467
    %3167 = vmatmul.f32.gmra.mxu0 %v1450
    %v3168 = vpop.f32.mrf.mxu0
    %v3169 = vadd.f32 %v3149, %v3168
    %3170 = vdwg.mxu0
    %3171 = vmatpush.msra.mxu0 %v2498
    %3172 = vmatpush.msra.mxu0 %v2497
    %3173 = vmatpush.msra.mxu0 %v2496
    %3174 = vmatpush.msra.mxu0 %v2495
    %3175 = vmatpush.msra.mxu0 %v2494
    %3176 = vmatpush.msra.mxu0 %v2493
    %3177 = vmatpush.msra.mxu0 %v2492
    %3178 = vmatpush.msra.mxu0 %v2491
    %3179 = vmatpush.msra.mxu0 %v2490
    %3180 = vmatpush.msra.mxu0 %v2489
    %3181 = vmatpush.msra.mxu0 %v2488
    %3182 = vmatpush.msra.mxu0 %v2487
    %3183 = vmatpush.msra.mxu0 %v2486
    %3184 = vmatpush.msra.mxu0 %v2485
    %3185 = vmatpush.msra.mxu0 %v2484
    %3186 = vmatpush.msra.mxu0 %v2483
    %3187 = vmatmul.f32.gmra.mxu0 %v1451
    %v3188 = vpop.f32.mrf.mxu0
    %v3189 = vadd.f32 %v3169, %v3188
    %3190 = vdwg.mxu0
    %3191 = vmatpush.msra.mxu0 %v2514
    %3192 = vmatpush.msra.mxu0 %v2513
    %3193 = vmatpush.msra.mxu0 %v2512
    %3194 = vmatpush.msra.mxu0 %v2511
    %3195 = vmatpush.msra.mxu0 %v2510
    %3196 = vmatpush.msra.mxu0 %v2509
    %3197 = vmatpush.msra.mxu0 %v2508
    %3198 = vmatpush.msra.mxu0 %v2507
    %3199 = vmatpush.msra.mxu0 %v2506
    %3200 = vmatpush.msra.mxu0 %v2505
    %3201 = vmatpush.msra.mxu0 %v2504
    %3202 = vmatpush.msra.mxu0 %v2503
    %3203 = vmatpush.msra.mxu0 %v2502
    %3204 = vmatpush.msra.mxu0 %v2501
    %3205 = vmatpush.msra.mxu0 %v2500
    %3206 = vmatpush.msra.mxu0 %v2499
    %3207 = vmatmul.f32.gmra.mxu0 %v1452
    %v3208 = vpop.f32.mrf.mxu0
    %v3209 = vadd.f32 %v3189, %v3208
    %3210 = vdwg.mxu0
    %3211 = vmatpush.msra.mxu0 %v2530
    %3212 = vmatpush.msra.mxu0 %v2529
    %3213 = vmatpush.msra.mxu0 %v2528
    %3214 = vmatpush.msra.mxu0 %v2527
    %3215 = vmatpush.msra.mxu0 %v2526
    %3216 = vmatpush.msra.mxu0 %v2525
    %3217 = vmatpush.msra.mxu0 %v2524
    %3218 = vmatpush.msra.mxu0 %v2523
    %3219 = vmatpush.msra.mxu0 %v2522
    %3220 = vmatpush.msra.mxu0 %v2521
    %3221 = vmatpush.msra.mxu0 %v2520
    %3222 = vmatpush.msra.mxu0 %v2519
    %3223 = vmatpush.msra.mxu0 %v2518
    %3224 = vmatpush.msra.mxu0 %v2517
    %3225 = vmatpush.msra.mxu0 %v2516
    %3226 = vmatpush.msra.mxu0 %v2515
    %3227 = vmatmul.f32.gmra.mxu0 %v1453
    %v3228 = vpop.f32.mrf.mxu0
    %v3229 = vadd.f32 %v3209, %v3228
    %3230 = vdwg.mxu0
    %3231 = vmatpush.msra.mxu0 %v2546
    %3232 = vmatpush.msra.mxu0 %v2545
    %3233 = vmatpush.msra.mxu0 %v2544
    %3234 = vmatpush.msra.mxu0 %v2543
    %3235 = vmatpush.msra.mxu0 %v2542
    %3236 = vmatpush.msra.mxu0 %v2541
    %3237 = vmatpush.msra.mxu0 %v2540
    %3238 = vmatpush.msra.mxu0 %v2539
    %3239 = vmatpush.msra.mxu0 %v2538
    %3240 = vmatpush.msra.mxu0 %v2537
    %3241 = vmatpush.msra.mxu0 %v2536
    %3242 = vmatpush.msra.mxu0 %v2535
    %3243 = vmatpush.msra.mxu0 %v2534
    %3244 = vmatpush.msra.mxu0 %v2533
    %3245 = vmatpush.msra.mxu0 %v2532
    %3246 = vmatpush.msra.mxu0 %v2531
    %3247 = vmatmul.f32.gmra.mxu0 %v1454
    %v3248 = vpop.f32.mrf.mxu0
    %v3249 = vadd.f32 %v3229, %v3248
    %3250 = vdwg.mxu0
    %3251 = vmatpush.msra.mxu0 %v2562
    %3252 = vmatpush.msra.mxu0 %v2561
    %3253 = vmatpush.msra.mxu0 %v2560
    %3254 = vmatpush.msra.mxu0 %v2559
    %3255 = vmatpush.msra.mxu0 %v2558
    %3256 = vmatpush.msra.mxu0 %v2557
    %3257 = vmatpush.msra.mxu0 %v2556
    %3258 = vmatpush.msra.mxu0 %v2555
    %3259 = vmatpush.msra.mxu0 %v2554
    %3260 = vmatpush.msra.mxu0 %v2553
    %3261 = vmatpush.msra.mxu0 %v2552
    %3262 = vmatpush.msra.mxu0 %v2551
    %3263 = vmatpush.msra.mxu0 %v2550
    %3264 = vmatpush.msra.mxu0 %v2549
    %3265 = vmatpush.msra.mxu0 %v2548
    %3266 = vmatpush.msra.mxu0 %v2547
    %3267 = vmatmul.f32.gmra.mxu0 %v1455
    %v3268 = vpop.f32.mrf.mxu0
    %v3269 = vadd.f32 %v3249, %v3268
    %3270 = vdwg.mxu0
    %3271 = vmatpush.msra.mxu0 %v2578
    %3272 = vmatpush.msra.mxu0 %v2577
    %3273 = vmatpush.msra.mxu0 %v2576
    %3274 = vmatpush.msra.mxu0 %v2575
    %3275 = vmatpush.msra.mxu0 %v2574
    %3276 = vmatpush.msra.mxu0 %v2573
    %3277 = vmatpush.msra.mxu0 %v2572
    %3278 = vmatpush.msra.mxu0 %v2571
    %3279 = vmatpush.msra.mxu0 %v2570
    %3280 = vmatpush.msra.mxu0 %v2569
    %3281 = vmatpush.msra.mxu0 %v2568
    %3282 = vmatpush.msra.mxu0 %v2567
    %3283 = vmatpush.msra.mxu0 %v2566
    %3284 = vmatpush.msra.mxu0 %v2565
    %3285 = vmatpush.msra.mxu0 %v2564
    %3286 = vmatpush.msra.mxu0 %v2563
    %3287 = vmatmul.f32.gmra.mxu0 %v1456
    %v3288 = vpop.f32.mrf.mxu0
    %v3289 = vadd.f32 %v3269, %v3288
    %3290 = vdwg.mxu0
    %3291 = vmatpush.msra.mxu0 %v2594
    %3292 = vmatpush.msra.mxu0 %v2593
    %3293 = vmatpush.msra.mxu0 %v2592
    %3294 = vmatpush.msra.mxu0 %v2591
    %3295 = vmatpush.msra.mxu0 %v2590
    %3296 = vmatpush.msra.mxu0 %v2589
    %3297 = vmatpush.msra.mxu0 %v2588
    %3298 = vmatpush.msra.mxu0 %v2587
    %3299 = vmatpush.msra.mxu0 %v2586
    %3300 = vmatpush.msra.mxu0 %v2585
    %3301 = vmatpush.msra.mxu0 %v2584
    %3302 = vmatpush.msra.mxu0 %v2583
    %3303 = vmatpush.msra.mxu0 %v2582
    %3304 = vmatpush.msra.mxu0 %v2581
    %3305 = vmatpush.msra.mxu0 %v2580
    %3306 = vmatpush.msra.mxu0 %v2579
    %3307 = vmatmul.f32.gmra.mxu0 %v1457
    %v3308 = vpop.f32.mrf.mxu0
    %v3309 = vadd.f32 %v3289, %v3308
    %3310 = vdwg.mxu0
    %3311 = vmatpush.msra.mxu0 %v2610
    %3312 = vmatpush.msra.mxu0 %v2609
    %3313 = vmatpush.msra.mxu0 %v2608
    %3314 = vmatpush.msra.mxu0 %v2607
    %3315 = vmatpush.msra.mxu0 %v2606
    %3316 = vmatpush.msra.mxu0 %v2605
    %3317 = vmatpush.msra.mxu0 %v2604
    %3318 = vmatpush.msra.mxu0 %v2603
    %3319 = vmatpush.msra.mxu0 %v2602
    %3320 = vmatpush.msra.mxu0 %v2601
    %3321 = vmatpush.msra.mxu0 %v2600
    %3322 = vmatpush.msra.mxu0 %v2599
    %3323 = vmatpush.msra.mxu0 %v2598
    %3324 = vmatpush.msra.mxu0 %v2597
    %3325 = vmatpush.msra.mxu0 %v2596
    %3326 = vmatpush.msra.mxu0 %v2595
    %3327 = vmatmul.f32.gmra.mxu0 %v1458
    %v3328 = vpop.f32.mrf.mxu0
    %v3329 = vadd.f32 %v3309, %v3328
    %3330 = vdwg.mxu0
    %3340 = vst [vmem:[#allocation1] ss:$4 sm:$0xff] %v135
    %s3341 = scalar_lea.vmem [#allocation1], 32
    %3342 = vst [vmem:[%s3341] ss:$4 sm:$0xff] %v136
    %v3343 = vld.sshfl [vmem:[#allocation1] sm:$0xff pattern:$0x73625140]
    %v3344 = vld.sshfl [vmem:[#allocation1 + $0x8] sm:$0xff pattern:$0x73625140]
    %v3345 = vld.sshfl [vmem:[#allocation1 + $0x10] sm:$0xff pattern:$0x73625140]
    %v3346 = vld.sshfl [vmem:[#allocation1 + $0x18] sm:$0xff pattern:$0x73625140]
    %v3347 = vld.sshfl [vmem:[#allocation1 + $0x20] sm:$0xff pattern:$0x73625140]
    %v3348 = vld.sshfl [vmem:[#allocation1 + $0x28] sm:$0xff pattern:$0x73625140]
    %v3349 = vld.sshfl [vmem:[#allocation1 + $0x30] sm:$0xff pattern:$0x73625140]
    %v3350 = vld.sshfl [vmem:[#allocation1 + $0x38] sm:$0xff pattern:$0x73625140]
    %3351 = vst [vmem:[#allocation1] ss:$4 sm:$0xff] %v137
    %3352 = vst [vmem:[%s3341] ss:$4 sm:$0xff] %v138
    %v3353 = vld.sshfl [vmem:[#allocation1] sm:$0xff pattern:$0x73625140]
    %v3354 = vld.sshfl [vmem:[#allocation1 + $0x8] sm:$0xff pattern:$0x73625140]
    %v3355 = vld.sshfl [vmem:[#allocation1 + $0x10] sm:$0xff pattern:$0x73625140]
    %v3356 = vld.sshfl [vmem:[#allocation1 + $0x18] sm:$0xff pattern:$0x73625140]
    %v3357 = vld.sshfl [vmem:[#allocation1 + $0x20] sm:$0xff pattern:$0x73625140]
    %v3358 = vld.sshfl [vmem:[#allocation1 + $0x28] sm:$0xff pattern:$0x73625140]
    %v3359 = vld.sshfl [vmem:[#allocation1 + $0x30] sm:$0xff pattern:$0x73625140]
    %v3360 = vld.sshfl [vmem:[#allocation1 + $0x38] sm:$0xff pattern:$0x73625140]
    %3361 = vst [vmem:[#allocation1] ss:$4 sm:$0xff] %v139
    %3362 = vst [vmem:[%s3341] ss:$4 sm:$0xff] %v140
    %v3363 = vld.sshfl [vmem:[#allocation1] sm:$0xff pattern:$0x73625140]
    %v3364 = vld.sshfl [vmem:[#allocation1 + $0x8] sm:$0xff pattern:$0x73625140]
    %v3365 = vld.sshfl [vmem:[#allocation1 + $0x10] sm:$0xff pattern:$0x73625140]
    %v3366 = vld.sshfl [vmem:[#allocation1 + $0x18] sm:$0xff pattern:$0x73625140]
    %v3367 = vld.sshfl [vmem:[#allocation1 + $0x20] sm:$0xff pattern:$0x73625140]
    %v3368 = vld.sshfl [vmem:[#allocation1 + $0x28] sm:$0xff pattern:$0x73625140]
    %v3369 = vld.sshfl [vmem:[#allocation1 + $0x30] sm:$0xff pattern:$0x73625140]
    %v3370 = vld.sshfl [vmem:[#allocation1 + $0x38] sm:$0xff pattern:$0x73625140]
    %3371 = vst [vmem:[#allocation1] ss:$4 sm:$0xff] %v141
    %3372 = vst [vmem:[%s3341] ss:$4 sm:$0xff] %v142
    %v3373 = vld.sshfl [vmem:[#allocation1] sm:$0xff pattern:$0x73625140]
    %v3374 = vld.sshfl [vmem:[#allocation1 + $0x8] sm:$0xff pattern:$0x73625140]
    %v3375 = vld.sshfl [vmem:[#allocation1 + $0x10] sm:$0xff pattern:$0x73625140]
    %v3376 = vld.sshfl [vmem:[#allocation1 + $0x18] sm:$0xff pattern:$0x73625140]
    %v3377 = vld.sshfl [vmem:[#allocation1 + $0x20] sm:$0xff pattern:$0x73625140]
    %v3378 = vld.sshfl [vmem:[#allocation1 + $0x28] sm:$0xff pattern:$0x73625140]
    %v3379 = vld.sshfl [vmem:[#allocation1 + $0x30] sm:$0xff pattern:$0x73625140]
    %v3380 = vld.sshfl [vmem:[#allocation1 + $0x38] sm:$0xff pattern:$0x73625140]
    %3381 = vst [vmem:[#allocation1] ss:$4 sm:$0xff] %v143
    %v3382 = vld.sshfl [vmem:[#allocation1] sm:$0xff pattern:$0x73625140]
    %v3383 = vld.sshfl [vmem:[#allocation1 + $0x8] sm:$0xff pattern:$0x73625140]
    %v3384 = vld.sshfl [vmem:[#allocation1 + $0x10] sm:$0xff pattern:$0x73625140]
    %v3385 = vld.sshfl [vmem:[#allocation1 + $0x18] sm:$0xff pattern:$0x73625140]
    %3422 = vmatpush.msra.mxu0 %v1474
    %3423 = vmatpush.msra.mxu0 %v1473
    %3424 = vmatpush.msra.mxu0 %v1472
    %3425 = vmatpush.msra.mxu0 %v1471
    %3426 = vmatpush.msra.mxu0 %v1470
    %3427 = vmatpush.msra.mxu0 %v1469
    %3428 = vmatpush.msra.mxu0 %v1468
    %3429 = vmatpush.msra.mxu0 %v1467
    %3430 = vmatpush.msra.mxu0 %v1466
    %3431 = vmatpush.msra.mxu0 %v1465
    %3432 = vmatpush.msra.mxu0 %v1464
    %3433 = vmatpush.msra.mxu0 %v1463
    %3434 = vmatpush.msra.mxu0 %v1462
    %3435 = vmatpush.msra.mxu0 %v1461
    %3436 = vmatpush.msra.mxu0 %v1460
    %3437 = vmatpush.msra.mxu0 %v1459
    %3438 = vmatmul.f32.gmra.mxu0 %v3343
    %v3439 = vpop.f32.mrf.mxu0
    %v3440 = vadd.f32 %v3329, %v3439
    %3441 = vdwg.mxu0
    %3442 = vmatpush.msra.mxu0 %v1490
    %3443 = vmatpush.msra.mxu0 %v1489
    %3444 = vmatpush.msra.mxu0 %v1488
    %3445 = vmatpush.msra.mxu0 %v1487
    %3446 = vmatpush.msra.mxu0 %v1486
    %3447 = vmatpush.msra.mxu0 %v1485
    %3448 = vmatpush.msra.mxu0 %v1484
    %3449 = vmatpush.msra.mxu0 %v1483
    %3450 = vmatpush.msra.mxu0 %v1482
    %3451 = vmatpush.msra.mxu0 %v1481
    %3452 = vmatpush.msra.mxu0 %v1480
    %3453 = vmatpush.msra.mxu0 %v1479
    %3454 = vmatpush.msra.mxu0 %v1478
    %3455 = vmatpush.msra.mxu0 %v1477
    %3456 = vmatpush.msra.mxu0 %v1476
    %3457 = vmatpush.msra.mxu0 %v1475
    %3458 = vmatmul.f32.gmra.mxu0 %v3344
    %v3459 = vpop.f32.mrf.mxu0
    %v3460 = vadd.f32 %v3440, %v3459
    %3461 = vdwg.mxu0
    %3462 = vmatpush.msra.mxu0 %v1506
    %3463 = vmatpush.msra.mxu0 %v1505
    %3464 = vmatpush.msra.mxu0 %v1504
    %3465 = vmatpush.msra.mxu0 %v1503
    %3466 = vmatpush.msra.mxu0 %v1502
    %3467 = vmatpush.msra.mxu0 %v1501
    %3468 = vmatpush.msra.mxu0 %v1500
    %3469 = vmatpush.msra.mxu0 %v1499
    %3470 = vmatpush.msra.mxu0 %v1498
    %3471 = vmatpush.msra.mxu0 %v1497
    %3472 = vmatpush.msra.mxu0 %v1496
    %3473 = vmatpush.msra.mxu0 %v1495
    %3474 = vmatpush.msra.mxu0 %v1494
    %3475 = vmatpush.msra.mxu0 %v1493
    %3476 = vmatpush.msra.mxu0 %v1492
    %3477 = vmatpush.msra.mxu0 %v1491
    %3478 = vmatmul.f32.gmra.mxu0 %v3345
    %v3479 = vpop.f32.mrf.mxu0
    %v3480 = vadd.f32 %v3460, %v3479
    %3481 = vdwg.mxu0
    %3482 = vmatpush.msra.mxu0 %v1522
    %3483 = vmatpush.msra.mxu0 %v1521
    %3484 = vmatpush.msra.mxu0 %v1520
    %3485 = vmatpush.msra.mxu0 %v1519
    %3486 = vmatpush.msra.mxu0 %v1518
    %3487 = vmatpush.msra.mxu0 %v1517
    %3488 = vmatpush.msra.mxu0 %v1516
    %3489 = vmatpush.msra.mxu0 %v1515
    %3490 = vmatpush.msra.mxu0 %v1514
    %3491 = vmatpush.msra.mxu0 %v1513
    %3492 = vmatpush.msra.mxu0 %v1512
    %3493 = vmatpush.msra.mxu0 %v1511
    %3494 = vmatpush.msra.mxu0 %v1510
    %3495 = vmatpush.msra.mxu0 %v1509
    %3496 = vmatpush.msra.mxu0 %v1508
    %3497 = vmatpush.msra.mxu0 %v1507
    %3498 = vmatmul.f32.gmra.mxu0 %v3346
    %v3499 = vpop.f32.mrf.mxu0
    %v3500 = vadd.f32 %v3480, %v3499
    %3501 = vdwg.mxu0
    %3502 = vmatpush.msra.mxu0 %v1538
    %3503 = vmatpush.msra.mxu0 %v1537
    %3504 = vmatpush.msra.mxu0 %v1536
    %3505 = vmatpush.msra.mxu0 %v1535
    %3506 = vmatpush.msra.mxu0 %v1534
    %3507 = vmatpush.msra.mxu0 %v1533
    %3508 = vmatpush.msra.mxu0 %v1532
    %3509 = vmatpush.msra.mxu0 %v1531
    %3510 = vmatpush.msra.mxu0 %v1530
    %3511 = vmatpush.msra.mxu0 %v1529
    %3512 = vmatpush.msra.mxu0 %v1528
    %3513 = vmatpush.msra.mxu0 %v1527
    %3514 = vmatpush.msra.mxu0 %v1526
    %3515 = vmatpush.msra.mxu0 %v1525
    %3516 = vmatpush.msra.mxu0 %v1524
    %3517 = vmatpush.msra.mxu0 %v1523
    %3518 = vmatmul.f32.gmra.mxu0 %v3347
    %v3519 = vpop.f32.mrf.mxu0
    %v3520 = vadd.f32 %v3500, %v3519
    %3521 = vdwg.mxu0
    %3522 = vmatpush.msra.mxu0 %v1554
    %3523 = vmatpush.msra.mxu0 %v1553
    %3524 = vmatpush.msra.mxu0 %v1552
    %3525 = vmatpush.msra.mxu0 %v1551
    %3526 = vmatpush.msra.mxu0 %v1550
    %3527 = vmatpush.msra.mxu0 %v1549
    %3528 = vmatpush.msra.mxu0 %v1548
    %3529 = vmatpush.msra.mxu0 %v1547
    %3530 = vmatpush.msra.mxu0 %v1546
    %3531 = vmatpush.msra.mxu0 %v1545
    %3532 = vmatpush.msra.mxu0 %v1544
    %3533 = vmatpush.msra.mxu0 %v1543
    %3534 = vmatpush.msra.mxu0 %v1542
    %3535 = vmatpush.msra.mxu0 %v1541
    %3536 = vmatpush.msra.mxu0 %v1540
    %3537 = vmatpush.msra.mxu0 %v1539
    %3538 = vmatmul.f32.gmra.mxu0 %v3348
    %v3539 = vpop.f32.mrf.mxu0
    %v3540 = vadd.f32 %v3520, %v3539
    %3541 = vdwg.mxu0
    %3542 = vmatpush.msra.mxu0 %v1570
    %3543 = vmatpush.msra.mxu0 %v1569
    %3544 = vmatpush.msra.mxu0 %v1568
    %3545 = vmatpush.msra.mxu0 %v1567
    %3546 = vmatpush.msra.mxu0 %v1566
    %3547 = vmatpush.msra.mxu0 %v1565
    %3548 = vmatpush.msra.mxu0 %v1564
    %3549 = vmatpush.msra.mxu0 %v1563
    %3550 = vmatpush.msra.mxu0 %v1562
    %3551 = vmatpush.msra.mxu0 %v1561
    %3552 = vmatpush.msra.mxu0 %v1560
    %3553 = vmatpush.msra.mxu0 %v1559
    %3554 = vmatpush.msra.mxu0 %v1558
    %3555 = vmatpush.msra.mxu0 %v1557
    %3556 = vmatpush.msra.mxu0 %v1556
    %3557 = vmatpush.msra.mxu0 %v1555
    %3558 = vmatmul.f32.gmra.mxu0 %v3349
    %v3559 = vpop.f32.mrf.mxu0
    %v3560 = vadd.f32 %v3540, %v3559
    %3561 = vdwg.mxu0
    %3562 = vmatpush.msra.mxu0 %v1586
    %3563 = vmatpush.msra.mxu0 %v1585
    %3564 = vmatpush.msra.mxu0 %v1584
    %3565 = vmatpush.msra.mxu0 %v1583
    %3566 = vmatpush.msra.mxu0 %v1582
    %3567 = vmatpush.msra.mxu0 %v1581
    %3568 = vmatpush.msra.mxu0 %v1580
    %3569 = vmatpush.msra.mxu0 %v1579
    %3570 = vmatpush.msra.mxu0 %v1578
    %3571 = vmatpush.msra.mxu0 %v1577
    %3572 = vmatpush.msra.mxu0 %v1576
    %3573 = vmatpush.msra.mxu0 %v1575
    %3574 = vmatpush.msra.mxu0 %v1574
    %3575 = vmatpush.msra.mxu0 %v1573
    %3576 = vmatpush.msra.mxu0 %v1572
    %3577 = vmatpush.msra.mxu0 %v1571
    %3578 = vmatmul.f32.gmra.mxu0 %v3350
    %v3579 = vpop.f32.mrf.mxu0
    %v3580 = vadd.f32 %v3560, %v3579
    %3581 = vdwg.mxu0
    %3582 = vmatpush.msra.mxu0 %v1602
    %3583 = vmatpush.msra.mxu0 %v1601
    %3584 = vmatpush.msra.mxu0 %v1600
    %3585 = vmatpush.msra.mxu0 %v1599
    %3586 = vmatpush.msra.mxu0 %v1598
    %3587 = vmatpush.msra.mxu0 %v1597
    %3588 = vmatpush.msra.mxu0 %v1596
    %3589 = vmatpush.msra.mxu0 %v1595
    %3590 = vmatpush.msra.mxu0 %v1594
    %3591 = vmatpush.msra.mxu0 %v1593
    %3592 = vmatpush.msra.mxu0 %v1592
    %3593 = vmatpush.msra.mxu0 %v1591
    %3594 = vmatpush.msra.mxu0 %v1590
    %3595 = vmatpush.msra.mxu0 %v1589
    %3596 = vmatpush.msra.mxu0 %v1588
    %3597 = vmatpush.msra.mxu0 %v1587
    %3598 = vmatmul.f32.gmra.mxu0 %v3353
    %v3599 = vpop.f32.mrf.mxu0
    %v3600 = vadd.f32 %v3580, %v3599
    %3601 = vdwg.mxu0
    %3602 = vmatpush.msra.mxu0 %v1618
    %3603 = vmatpush.msra.mxu0 %v1617
    %3604 = vmatpush.msra.mxu0 %v1616
    %3605 = vmatpush.msra.mxu0 %v1615
    %3606 = vmatpush.msra.mxu0 %v1614
    %3607 = vmatpush.msra.mxu0 %v1613
    %3608 = vmatpush.msra.mxu0 %v1612
    %3609 = vmatpush.msra.mxu0 %v1611
    %3610 = vmatpush.msra.mxu0 %v1610
    %3611 = vmatpush.msra.mxu0 %v1609
    %3612 = vmatpush.msra.mxu0 %v1608
    %3613 = vmatpush.msra.mxu0 %v1607
    %3614 = vmatpush.msra.mxu0 %v1606
    %3615 = vmatpush.msra.mxu0 %v1605
    %3616 = vmatpush.msra.mxu0 %v1604
    %3617 = vmatpush.msra.mxu0 %v1603
    %3618 = vmatmul.f32.gmra.mxu0 %v3354
    %v3619 = vpop.f32.mrf.mxu0
    %v3620 = vadd.f32 %v3600, %v3619
    %3621 = vdwg.mxu0
    %3622 = vmatpush.msra.mxu0 %v1634
    %3623 = vmatpush.msra.mxu0 %v1633
    %3624 = vmatpush.msra.mxu0 %v1632
    %3625 = vmatpush.msra.mxu0 %v1631
    %3626 = vmatpush.msra.mxu0 %v1630
    %3627 = vmatpush.msra.mxu0 %v1629
    %3628 = vmatpush.msra.mxu0 %v1628
    %3629 = vmatpush.msra.mxu0 %v1627
    %3630 = vmatpush.msra.mxu0 %v1626
    %3631 = vmatpush.msra.mxu0 %v1625
    %3632 = vmatpush.msra.mxu0 %v1624
    %3633 = vmatpush.msra.mxu0 %v1623
    %3634 = vmatpush.msra.mxu0 %v1622
    %3635 = vmatpush.msra.mxu0 %v1621
    %3636 = vmatpush.msra.mxu0 %v1620
    %3637 = vmatpush.msra.mxu0 %v1619
    %3638 = vmatmul.f32.gmra.mxu0 %v3355
    %v3639 = vpop.f32.mrf.mxu0
    %v3640 = vadd.f32 %v3620, %v3639
    %3641 = vdwg.mxu0
    %3642 = vmatpush.msra.mxu0 %v1650
    %3643 = vmatpush.msra.mxu0 %v1649
    %3644 = vmatpush.msra.mxu0 %v1648
    %3645 = vmatpush.msra.mxu0 %v1647
    %3646 = vmatpush.msra.mxu0 %v1646
    %3647 = vmatpush.msra.mxu0 %v1645
    %3648 = vmatpush.msra.mxu0 %v1644
    %3649 = vmatpush.msra.mxu0 %v1643
    %3650 = vmatpush.msra.mxu0 %v1642
    %3651 = vmatpush.msra.mxu0 %v1641
    %3652 = vmatpush.msra.mxu0 %v1640
    %3653 = vmatpush.msra.mxu0 %v1639
    %3654 = vmatpush.msra.mxu0 %v1638
    %3655 = vmatpush.msra.mxu0 %v1637
    %3656 = vmatpush.msra.mxu0 %v1636
    %3657 = vmatpush.msra.mxu0 %v1635
    %3658 = vmatmul.f32.gmra.mxu0 %v3356
    %v3659 = vpop.f32.mrf.mxu0
    %v3660 = vadd.f32 %v3640, %v3659
    %3661 = vdwg.mxu0
    %3662 = vmatpush.msra.mxu0 %v1666
    %3663 = vmatpush.msra.mxu0 %v1665
    %3664 = vmatpush.msra.mxu0 %v1664
    %3665 = vmatpush.msra.mxu0 %v1663
    %3666 = vmatpush.msra.mxu0 %v1662
    %3667 = vmatpush.msra.mxu0 %v1661
    %3668 = vmatpush.msra.mxu0 %v1660
    %3669 = vmatpush.msra.mxu0 %v1659
    %3670 = vmatpush.msra.mxu0 %v1658
    %3671 = vmatpush.msra.mxu0 %v1657
    %3672 = vmatpush.msra.mxu0 %v1656
    %3673 = vmatpush.msra.mxu0 %v1655
    %3674 = vmatpush.msra.mxu0 %v1654
    %3675 = vmatpush.msra.mxu0 %v1653
    %3676 = vmatpush.msra.mxu0 %v1652
    %3677 = vmatpush.msra.mxu0 %v1651
    %3678 = vmatmul.f32.gmra.mxu0 %v3357
    %v3679 = vpop.f32.mrf.mxu0
    %v3680 = vadd.f32 %v3660, %v3679
    %3681 = vdwg.mxu0
    %3682 = vmatpush.msra.mxu0 %v1682
    %3683 = vmatpush.msra.mxu0 %v1681
    %3684 = vmatpush.msra.mxu0 %v1680
    %3685 = vmatpush.msra.mxu0 %v1679
    %3686 = vmatpush.msra.mxu0 %v1678
    %3687 = vmatpush.msra.mxu0 %v1677
    %3688 = vmatpush.msra.mxu0 %v1676
    %3689 = vmatpush.msra.mxu0 %v1675
    %3690 = vmatpush.msra.mxu0 %v1674
    %3691 = vmatpush.msra.mxu0 %v1673
    %3692 = vmatpush.msra.mxu0 %v1672
    %3693 = vmatpush.msra.mxu0 %v1671
    %3694 = vmatpush.msra.mxu0 %v1670
    %3695 = vmatpush.msra.mxu0 %v1669
    %3696 = vmatpush.msra.mxu0 %v1668
    %3697 = vmatpush.msra.mxu0 %v1667
    %3698 = vmatmul.f32.gmra.mxu0 %v3358
    %v3699 = vpop.f32.mrf.mxu0
    %v3700 = vadd.f32 %v3680, %v3699
    %3701 = vdwg.mxu0
    %3702 = vmatpush.msra.mxu0 %v1698
    %3703 = vmatpush.msra.mxu0 %v1697
    %3704 = vmatpush.msra.mxu0 %v1696
    %3705 = vmatpush.msra.mxu0 %v1695
    %3706 = vmatpush.msra.mxu0 %v1694
    %3707 = vmatpush.msra.mxu0 %v1693
    %3708 = vmatpush.msra.mxu0 %v1692
    %3709 = vmatpush.msra.mxu0 %v1691
    %3710 = vmatpush.msra.mxu0 %v1690
    %3711 = vmatpush.msra.mxu0 %v1689
    %3712 = vmatpush.msra.mxu0 %v1688
    %3713 = vmatpush.msra.mxu0 %v1687
    %3714 = vmatpush.msra.mxu0 %v1686
    %3715 = vmatpush.msra.mxu0 %v1685
    %3716 = vmatpush.msra.mxu0 %v1684
    %3717 = vmatpush.msra.mxu0 %v1683
    %3718 = vmatmul.f32.gmra.mxu0 %v3359
    %v3719 = vpop.f32.mrf.mxu0
    %v3720 = vadd.f32 %v3700, %v3719
    %3721 = vdwg.mxu0
    %3722 = vmatpush.msra.mxu0 %v1714
    %3723 = vmatpush.msra.mxu0 %v1713
    %3724 = vmatpush.msra.mxu0 %v1712
    %3725 = vmatpush.msra.mxu0 %v1711
    %3726 = vmatpush.msra.mxu0 %v1710
    %3727 = vmatpush.msra.mxu0 %v1709
    %3728 = vmatpush.msra.mxu0 %v1708
    %3729 = vmatpush.msra.mxu0 %v1707
    %3730 = vmatpush.msra.mxu0 %v1706
    %3731 = vmatpush.msra.mxu0 %v1705
    %3732 = vmatpush.msra.mxu0 %v1704
    %3733 = vmatpush.msra.mxu0 %v1703
    %3734 = vmatpush.msra.mxu0 %v1702
    %3735 = vmatpush.msra.mxu0 %v1701
    %3736 = vmatpush.msra.mxu0 %v1700
    %3737 = vmatpush.msra.mxu0 %v1699
    %3738 = vmatmul.f32.gmra.mxu0 %v3360
    %v3739 = vpop.f32.mrf.mxu0
    %v3740 = vadd.f32 %v3720, %v3739
    %3741 = vdwg.mxu0
    %3742 = vmatpush.msra.mxu0 %v1730
    %3743 = vmatpush.msra.mxu0 %v1729
    %3744 = vmatpush.msra.mxu0 %v1728
    %3745 = vmatpush.msra.mxu0 %v1727
    %3746 = vmatpush.msra.mxu0 %v1726
    %3747 = vmatpush.msra.mxu0 %v1725
    %3748 = vmatpush.msra.mxu0 %v1724
    %3749 = vmatpush.msra.mxu0 %v1723
    %3750 = vmatpush.msra.mxu0 %v1722
    %3751 = vmatpush.msra.mxu0 %v1721
    %3752 = vmatpush.msra.mxu0 %v1720
    %3753 = vmatpush.msra.mxu0 %v1719
    %3754 = vmatpush.msra.mxu0 %v1718
    %3755 = vmatpush.msra.mxu0 %v1717
    %3756 = vmatpush.msra.mxu0 %v1716
    %3757 = vmatpush.msra.mxu0 %v1715
    %3758 = vmatmul.f32.gmra.mxu0 %v3363
    %v3759 = vpop.f32.mrf.mxu0
    %v3760 = vadd.f32 %v3740, %v3759
    %3761 = vdwg.mxu0
    %3762 = vmatpush.msra.mxu0 %v1746
    %3763 = vmatpush.msra.mxu0 %v1745
    %3764 = vmatpush.msra.mxu0 %v1744
    %3765 = vmatpush.msra.mxu0 %v1743
    %3766 = vmatpush.msra.mxu0 %v1742
    %3767 = vmatpush.msra.mxu0 %v1741
    %3768 = vmatpush.msra.mxu0 %v1740
    %3769 = vmatpush.msra.mxu0 %v1739
    %3770 = vmatpush.msra.mxu0 %v1738
    %3771 = vmatpush.msra.mxu0 %v1737
    %3772 = vmatpush.msra.mxu0 %v1736
    %3773 = vmatpush.msra.mxu0 %v1735
    %3774 = vmatpush.msra.mxu0 %v1734
    %3775 = vmatpush.msra.mxu0 %v1733
    %3776 = vmatpush.msra.mxu0 %v1732
    %3777 = vmatpush.msra.mxu0 %v1731
    %3778 = vmatmul.f32.gmra.mxu0 %v3364
    %v3779 = vpop.f32.mrf.mxu0
    %v3780 = vadd.f32 %v3760, %v3779
    %3781 = vdwg.mxu0
    %3782 = vmatpush.msra.mxu0 %v1762
    %3783 = vmatpush.msra.mxu0 %v1761
    %3784 = vmatpush.msra.mxu0 %v1760
    %3785 = vmatpush.msra.mxu0 %v1759
    %3786 = vmatpush.msra.mxu0 %v1758
    %3787 = vmatpush.msra.mxu0 %v1757
    %3788 = vmatpush.msra.mxu0 %v1756
    %3789 = vmatpush.msra.mxu0 %v1755
    %3790 = vmatpush.msra.mxu0 %v1754
    %3791 = vmatpush.msra.mxu0 %v1753
    %3792 = vmatpush.msra.mxu0 %v1752
    %3793 = vmatpush.msra.mxu0 %v1751
    %3794 = vmatpush.msra.mxu0 %v1750
    %3795 = vmatpush.msra.mxu0 %v1749
    %3796 = vmatpush.msra.mxu0 %v1748
    %3797 = vmatpush.msra.mxu0 %v1747
    %3798 = vmatmul.f32.gmra.mxu0 %v3365
    %v3799 = vpop.f32.mrf.mxu0
    %v3800 = vadd.f32 %v3780, %v3799
    %3801 = vdwg.mxu0
    %3802 = vmatpush.msra.mxu0 %v1778
    %3803 = vmatpush.msra.mxu0 %v1777
    %3804 = vmatpush.msra.mxu0 %v1776
    %3805 = vmatpush.msra.mxu0 %v1775
    %3806 = vmatpush.msra.mxu0 %v1774
    %3807 = vmatpush.msra.mxu0 %v1773
    %3808 = vmatpush.msra.mxu0 %v1772
    %3809 = vmatpush.msra.mxu0 %v1771
    %3810 = vmatpush.msra.mxu0 %v1770
    %3811 = vmatpush.msra.mxu0 %v1769
    %3812 = vmatpush.msra.mxu0 %v1768
    %3813 = vmatpush.msra.mxu0 %v1767
    %3814 = vmatpush.msra.mxu0 %v1766
    %3815 = vmatpush.msra.mxu0 %v1765
    %3816 = vmatpush.msra.mxu0 %v1764
    %3817 = vmatpush.msra.mxu0 %v1763
    %3818 = vmatmul.f32.gmra.mxu0 %v3366
    %v3819 = vpop.f32.mrf.mxu0
    %v3820 = vadd.f32 %v3800, %v3819
    %3821 = vdwg.mxu0
    %3822 = vmatpush.msra.mxu0 %v1794
    %3823 = vmatpush.msra.mxu0 %v1793
    %3824 = vmatpush.msra.mxu0 %v1792
    %3825 = vmatpush.msra.mxu0 %v1791
    %3826 = vmatpush.msra.mxu0 %v1790
    %3827 = vmatpush.msra.mxu0 %v1789
    %3828 = vmatpush.msra.mxu0 %v1788
    %3829 = vmatpush.msra.mxu0 %v1787
    %3830 = vmatpush.msra.mxu0 %v1786
    %3831 = vmatpush.msra.mxu0 %v1785
    %3832 = vmatpush.msra.mxu0 %v1784
    %3833 = vmatpush.msra.mxu0 %v1783
    %3834 = vmatpush.msra.mxu0 %v1782
    %3835 = vmatpush.msra.mxu0 %v1781
    %3836 = vmatpush.msra.mxu0 %v1780
    %3837 = vmatpush.msra.mxu0 %v1779
    %3838 = vmatmul.f32.gmra.mxu0 %v3367
    %v3839 = vpop.f32.mrf.mxu0
    %v3840 = vadd.f32 %v3820, %v3839
    %3841 = vdwg.mxu0
    %3842 = vmatpush.msra.mxu0 %v1810
    %3843 = vmatpush.msra.mxu0 %v1809
    %3844 = vmatpush.msra.mxu0 %v1808
    %3845 = vmatpush.msra.mxu0 %v1807
    %3846 = vmatpush.msra.mxu0 %v1806
    %3847 = vmatpush.msra.mxu0 %v1805
    %3848 = vmatpush.msra.mxu0 %v1804
    %3849 = vmatpush.msra.mxu0 %v1803
    %3850 = vmatpush.msra.mxu0 %v1802
    %3851 = vmatpush.msra.mxu0 %v1801
    %3852 = vmatpush.msra.mxu0 %v1800
    %3853 = vmatpush.msra.mxu0 %v1799
    %3854 = vmatpush.msra.mxu0 %v1798
    %3855 = vmatpush.msra.mxu0 %v1797
    %3856 = vmatpush.msra.mxu0 %v1796
    %3857 = vmatpush.msra.mxu0 %v1795
    %3858 = vmatmul.f32.gmra.mxu0 %v3368
    %v3859 = vpop.f32.mrf.mxu0
    %v3860 = vadd.f32 %v3840, %v3859
    %3861 = vdwg.mxu0
    %3862 = vmatpush.msra.mxu0 %v1826
    %3863 = vmatpush.msra.mxu0 %v1825
    %3864 = vmatpush.msra.mxu0 %v1824
    %3865 = vmatpush.msra.mxu0 %v1823
    %3866 = vmatpush.msra.mxu0 %v1822
    %3867 = vmatpush.msra.mxu0 %v1821
    %3868 = vmatpush.msra.mxu0 %v1820
    %3869 = vmatpush.msra.mxu0 %v1819
    %3870 = vmatpush.msra.mxu0 %v1818
    %3871 = vmatpush.msra.mxu0 %v1817
    %3872 = vmatpush.msra.mxu0 %v1816
    %3873 = vmatpush.msra.mxu0 %v1815
    %3874 = vmatpush.msra.mxu0 %v1814
    %3875 = vmatpush.msra.mxu0 %v1813
    %3876 = vmatpush.msra.mxu0 %v1812
    %3877 = vmatpush.msra.mxu0 %v1811
    %3878 = vmatmul.f32.gmra.mxu0 %v3369
    %v3879 = vpop.f32.mrf.mxu0
    %v3880 = vadd.f32 %v3860, %v3879
    %3881 = vdwg.mxu0
    %3882 = vmatpush.msra.mxu0 %v1842
    %3883 = vmatpush.msra.mxu0 %v1841
    %3884 = vmatpush.msra.mxu0 %v1840
    %3885 = vmatpush.msra.mxu0 %v1839
    %3886 = vmatpush.msra.mxu0 %v1838
    %3887 = vmatpush.msra.mxu0 %v1837
    %3888 = vmatpush.msra.mxu0 %v1836
    %3889 = vmatpush.msra.mxu0 %v1835
    %3890 = vmatpush.msra.mxu0 %v1834
    %3891 = vmatpush.msra.mxu0 %v1833
    %3892 = vmatpush.msra.mxu0 %v1832
    %3893 = vmatpush.msra.mxu0 %v1831
    %3894 = vmatpush.msra.mxu0 %v1830
    %3895 = vmatpush.msra.mxu0 %v1829
    %3896 = vmatpush.msra.mxu0 %v1828
    %3897 = vmatpush.msra.mxu0 %v1827
    %3898 = vmatmul.f32.gmra.mxu0 %v3370
    %v3899 = vpop.f32.mrf.mxu0
    %v3900 = vadd.f32 %v3880, %v3899
    %3901 = vdwg.mxu0
    %3902 = vmatpush.msra.mxu0 %v1858
    %3903 = vmatpush.msra.mxu0 %v1857
    %3904 = vmatpush.msra.mxu0 %v1856
    %3905 = vmatpush.msra.mxu0 %v1855
    %3906 = vmatpush.msra.mxu0 %v1854
    %3907 = vmatpush.msra.mxu0 %v1853
    %3908 = vmatpush.msra.mxu0 %v1852
    %3909 = vmatpush.msra.mxu0 %v1851
    %3910 = vmatpush.msra.mxu0 %v1850
    %3911 = vmatpush.msra.mxu0 %v1849
    %3912 = vmatpush.msra.mxu0 %v1848
    %3913 = vmatpush.msra.mxu0 %v1847
    %3914 = vmatpush.msra.mxu0 %v1846
    %3915 = vmatpush.msra.mxu0 %v1845
    %3916 = vmatpush.msra.mxu0 %v1844
    %3917 = vmatpush.msra.mxu0 %v1843
    %3918 = vmatmul.f32.gmra.mxu0 %v3373
    %v3919 = vpop.f32.mrf.mxu0
    %v3920 = vadd.f32 %v3900, %v3919
    %3921 = vdwg.mxu0
    %3922 = vmatpush.msra.mxu0 %v1874
    %3923 = vmatpush.msra.mxu0 %v1873
    %3924 = vmatpush.msra.mxu0 %v1872
    %3925 = vmatpush.msra.mxu0 %v1871
    %3926 = vmatpush.msra.mxu0 %v1870
    %3927 = vmatpush.msra.mxu0 %v1869
    %3928 = vmatpush.msra.mxu0 %v1868
    %3929 = vmatpush.msra.mxu0 %v1867
    %3930 = vmatpush.msra.mxu0 %v1866
    %3931 = vmatpush.msra.mxu0 %v1865
    %3932 = vmatpush.msra.mxu0 %v1864
    %3933 = vmatpush.msra.mxu0 %v1863
    %3934 = vmatpush.msra.mxu0 %v1862
    %3935 = vmatpush.msra.mxu0 %v1861
    %3936 = vmatpush.msra.mxu0 %v1860
    %3937 = vmatpush.msra.mxu0 %v1859
    %3938 = vmatmul.f32.gmra.mxu0 %v3374
    %v3939 = vpop.f32.mrf.mxu0
    %v3940 = vadd.f32 %v3920, %v3939
    %3941 = vdwg.mxu0
    %3942 = vmatpush.msra.mxu0 %v1890
    %3943 = vmatpush.msra.mxu0 %v1889
    %3944 = vmatpush.msra.mxu0 %v1888
    %3945 = vmatpush.msra.mxu0 %v1887
    %3946 = vmatpush.msra.mxu0 %v1886
    %3947 = vmatpush.msra.mxu0 %v1885
    %3948 = vmatpush.msra.mxu0 %v1884
    %3949 = vmatpush.msra.mxu0 %v1883
    %3950 = vmatpush.msra.mxu0 %v1882
    %3951 = vmatpush.msra.mxu0 %v1881
    %3952 = vmatpush.msra.mxu0 %v1880
    %3953 = vmatpush.msra.mxu0 %v1879
    %3954 = vmatpush.msra.mxu0 %v1878
    %3955 = vmatpush.msra.mxu0 %v1877
    %3956 = vmatpush.msra.mxu0 %v1876
    %3957 = vmatpush.msra.mxu0 %v1875
    %3958 = vmatmul.f32.gmra.mxu0 %v3375
    %v3959 = vpop.f32.mrf.mxu0
    %v3960 = vadd.f32 %v3940, %v3959
    %3961 = vdwg.mxu0
    %3962 = vmatpush.msra.mxu0 %v1906
    %3963 = vmatpush.msra.mxu0 %v1905
    %3964 = vmatpush.msra.mxu0 %v1904
    %3965 = vmatpush.msra.mxu0 %v1903
    %3966 = vmatpush.msra.mxu0 %v1902
    %3967 = vmatpush.msra.mxu0 %v1901
    %3968 = vmatpush.msra.mxu0 %v1900
    %3969 = vmatpush.msra.mxu0 %v1899
    %3970 = vmatpush.msra.mxu0 %v1898
    %3971 = vmatpush.msra.mxu0 %v1897
    %3972 = vmatpush.msra.mxu0 %v1896
    %3973 = vmatpush.msra.mxu0 %v1895
    %3974 = vmatpush.msra.mxu0 %v1894
    %3975 = vmatpush.msra.mxu0 %v1893
    %3976 = vmatpush.msra.mxu0 %v1892
    %3977 = vmatpush.msra.mxu0 %v1891
    %3978 = vmatmul.f32.gmra.mxu0 %v3376
    %v3979 = vpop.f32.mrf.mxu0
    %v3980 = vadd.f32 %v3960, %v3979
    %3981 = vdwg.mxu0
    %3982 = vmatpush.msra.mxu0 %v1922
    %3983 = vmatpush.msra.mxu0 %v1921
    %3984 = vmatpush.msra.mxu0 %v1920
    %3985 = vmatpush.msra.mxu0 %v1919
    %3986 = vmatpush.msra.mxu0 %v1918
    %3987 = vmatpush.msra.mxu0 %v1917
    %3988 = vmatpush.msra.mxu0 %v1916
    %3989 = vmatpush.msra.mxu0 %v1915
    %3990 = vmatpush.msra.mxu0 %v1914
    %3991 = vmatpush.msra.mxu0 %v1913
    %3992 = vmatpush.msra.mxu0 %v1912
    %3993 = vmatpush.msra.mxu0 %v1911
    %3994 = vmatpush.msra.mxu0 %v1910
    %3995 = vmatpush.msra.mxu0 %v1909
    %3996 = vmatpush.msra.mxu0 %v1908
    %3997 = vmatpush.msra.mxu0 %v1907
    %3998 = vmatmul.f32.gmra.mxu0 %v3377
    %v3999 = vpop.f32.mrf.mxu0
    %v4000 = vadd.f32 %v3980, %v3999
    %4001 = vdwg.mxu0
    %4002 = vmatpush.msra.mxu0 %v1938
    %4003 = vmatpush.msra.mxu0 %v1937
    %4004 = vmatpush.msra.mxu0 %v1936
    %4005 = vmatpush.msra.mxu0 %v1935
    %4006 = vmatpush.msra.mxu0 %v1934
    %4007 = vmatpush.msra.mxu0 %v1933
    %4008 = vmatpush.msra.mxu0 %v1932
    %4009 = vmatpush.msra.mxu0 %v1931
    %4010 = vmatpush.msra.mxu0 %v1930
    %4011 = vmatpush.msra.mxu0 %v1929
    %4012 = vmatpush.msra.mxu0 %v1928
    %4013 = vmatpush.msra.mxu0 %v1927
    %4014 = vmatpush.msra.mxu0 %v1926
    %4015 = vmatpush.msra.mxu0 %v1925
    %4016 = vmatpush.msra.mxu0 %v1924
    %4017 = vmatpush.msra.mxu0 %v1923
    %4018 = vmatmul.f32.gmra.mxu0 %v3378
    %v4019 = vpop.f32.mrf.mxu0
    %v4020 = vadd.f32 %v4000, %v4019
    %4021 = vdwg.mxu0
    %4022 = vmatpush.msra.mxu0 %v1954
    %4023 = vmatpush.msra.mxu0 %v1953
    %4024 = vmatpush.msra.mxu0 %v1952
    %4025 = vmatpush.msra.mxu0 %v1951
    %4026 = vmatpush.msra.mxu0 %v1950
    %4027 = vmatpush.msra.mxu0 %v1949
    %4028 = vmatpush.msra.mxu0 %v1948
    %4029 = vmatpush.msra.mxu0 %v1947
    %4030 = vmatpush.msra.mxu0 %v1946
    %4031 = vmatpush.msra.mxu0 %v1945
    %4032 = vmatpush.msra.mxu0 %v1944
    %4033 = vmatpush.msra.mxu0 %v1943
    %4034 = vmatpush.msra.mxu0 %v1942
    %4035 = vmatpush.msra.mxu0 %v1941
    %4036 = vmatpush.msra.mxu0 %v1940
    %4037 = vmatpush.msra.mxu0 %v1939
    %4038 = vmatmul.f32.gmra.mxu0 %v3379
    %v4039 = vpop.f32.mrf.mxu0
    %v4040 = vadd.f32 %v4020, %v4039
    %4041 = vdwg.mxu0
    %4042 = vmatpush.msra.mxu0 %v1970
    %4043 = vmatpush.msra.mxu0 %v1969
    %4044 = vmatpush.msra.mxu0 %v1968
    %4045 = vmatpush.msra.mxu0 %v1967
    %4046 = vmatpush.msra.mxu0 %v1966
    %4047 = vmatpush.msra.mxu0 %v1965
    %4048 = vmatpush.msra.mxu0 %v1964
    %4049 = vmatpush.msra.mxu0 %v1963
    %4050 = vmatpush.msra.mxu0 %v1962
    %4051 = vmatpush.msra.mxu0 %v1961
    %4052 = vmatpush.msra.mxu0 %v1960
    %4053 = vmatpush.msra.mxu0 %v1959
    %4054 = vmatpush.msra.mxu0 %v1958
    %4055 = vmatpush.msra.mxu0 %v1957
    %4056 = vmatpush.msra.mxu0 %v1956
    %4057 = vmatpush.msra.mxu0 %v1955
    %4058 = vmatmul.f32.gmra.mxu0 %v3380
    %v4059 = vpop.f32.mrf.mxu0
    %v4060 = vadd.f32 %v4040, %v4059
    %4061 = vdwg.mxu0
    %4062 = vmatpush.msra.mxu0 %v1986
    %4063 = vmatpush.msra.mxu0 %v1985
    %4064 = vmatpush.msra.mxu0 %v1984
    %4065 = vmatpush.msra.mxu0 %v1983
    %4066 = vmatpush.msra.mxu0 %v1982
    %4067 = vmatpush.msra.mxu0 %v1981
    %4068 = vmatpush.msra.mxu0 %v1980
    %4069 = vmatpush.msra.mxu0 %v1979
    %4070 = vmatpush.msra.mxu0 %v1978
    %4071 = vmatpush.msra.mxu0 %v1977
    %4072 = vmatpush.msra.mxu0 %v1976
    %4073 = vmatpush.msra.mxu0 %v1975
    %4074 = vmatpush.msra.mxu0 %v1974
    %4075 = vmatpush.msra.mxu0 %v1973
    %4076 = vmatpush.msra.mxu0 %v1972
    %4077 = vmatpush.msra.mxu0 %v1971
    %4078 = vmatmul.f32.gmra.mxu0 %v3382
    %v4079 = vpop.f32.mrf.mxu0
    %v4080 = vadd.f32 %v4060, %v4079
    %4081 = vdwg.mxu0
    %4082 = vmatpush.msra.mxu0 %v2002
    %4083 = vmatpush.msra.mxu0 %v2001
    %4084 = vmatpush.msra.mxu0 %v2000
    %4085 = vmatpush.msra.mxu0 %v1999
    %4086 = vmatpush.msra.mxu0 %v1998
    %4087 = vmatpush.msra.mxu0 %v1997
    %4088 = vmatpush.msra.mxu0 %v1996
    %4089 = vmatpush.msra.mxu0 %v1995
    %4090 = vmatpush.msra.mxu0 %v1994
    %4091 = vmatpush.msra.mxu0 %v1993
    %4092 = vmatpush.msra.mxu0 %v1992
    %4093 = vmatpush.msra.mxu0 %v1991
    %4094 = vmatpush.msra.mxu0 %v1990
    %4095 = vmatpush.msra.mxu0 %v1989
    %4096 = vmatpush.msra.mxu0 %v1988
    %4097 = vmatpush.msra.mxu0 %v1987
    %4098 = vmatmul.f32.gmra.mxu0 %v3383
    %v4099 = vpop.f32.mrf.mxu0
    %v4100 = vadd.f32 %v4080, %v4099
    %4101 = vdwg.mxu0
    %4102 = vmatpush.msra.mxu0 %v2018
    %4103 = vmatpush.msra.mxu0 %v2017
    %4104 = vmatpush.msra.mxu0 %v2016
    %4105 = vmatpush.msra.mxu0 %v2015
    %4106 = vmatpush.msra.mxu0 %v2014
    %4107 = vmatpush.msra.mxu0 %v2013
    %4108 = vmatpush.msra.mxu0 %v2012
    %4109 = vmatpush.msra.mxu0 %v2011
    %4110 = vmatpush.msra.mxu0 %v2010
    %4111 = vmatpush.msra.mxu0 %v2009
    %4112 = vmatpush.msra.mxu0 %v2008
    %4113 = vmatpush.msra.mxu0 %v2007
    %4114 = vmatpush.msra.mxu0 %v2006
    %4115 = vmatpush.msra.mxu0 %v2005
    %4116 = vmatpush.msra.mxu0 %v2004
    %4117 = vmatpush.msra.mxu0 %v2003
    %4118 = vmatmul.f32.gmra.mxu0 %v3384
    %v4119 = vpop.f32.mrf.mxu0
    %v4120 = vadd.f32 %v4100, %v4119
    %4121 = vdwg.mxu0
    %4122 = vmatpush.msra.mxu0 %v2034
    %4123 = vmatpush.msra.mxu0 %v2033
    %4124 = vmatpush.msra.mxu0 %v2032
    %4125 = vmatpush.msra.mxu0 %v2031
    %4126 = vmatpush.msra.mxu0 %v2030
    %4127 = vmatpush.msra.mxu0 %v2029
    %4128 = vmatpush.msra.mxu0 %v2028
    %4129 = vmatpush.msra.mxu0 %v2027
    %4130 = vmatpush.msra.mxu0 %v2026
    %4131 = vmatpush.msra.mxu0 %v2025
    %4132 = vmatpush.msra.mxu0 %v2024
    %4133 = vmatpush.msra.mxu0 %v2023
    %4134 = vmatpush.msra.mxu0 %v2022
    %4135 = vmatpush.msra.mxu0 %v2021
    %4136 = vmatpush.msra.mxu0 %v2020
    %4137 = vmatpush.msra.mxu0 %v2019
    %4138 = vmatmul.f32.gmra.mxu0 %v3385
    %v4139 = vpop.f32.mrf.mxu0
    %v4140 = vadd.f32 %v4120, %v4139
    %4141 = vdwg.mxu0
    %v4142 = vld [vmem:[%s19] sm:$0x1]
    %v4144 = vperm.slane %v4142, 0
    %v4146 = vadd.f32 %v4140, %v4144
    %vm4147 = vcmask 517120
    %v4148 = vsel %vm4147, %v4146, 0.0
    %4149 = vadd.xlane.f32.xlu0 %v4148
    %v4150 = vpop.xlane.xlu0 %4149
    %v4151 = vrcp.pop 64.0
    %v4152 = vmul.f32 64.0, %v4151
    %v4153 = vsub.f32 1.0, %v4152
    %v4154 = vmul.f32 %v4151, %v4153
    %v4155 = vadd.f32 %v4151, %v4154
    %vm4156 = vweird.f32 %v4151
    %v4157 = vsel %vm4156, %v4151, %v4155
    %v4158 = vmul.f32 %v4150, %v4157
    %v4159 = vsub.f32 %v4146, %v4158
    %v4160 = vmul.f32 %v4159, %v4159
    %v4161 = vsel %vm4147, %v4160, 0.0
    %4162 = vadd.xlane.f32.xlu0 %v4161
    %v4163 = vpop.xlane.xlu0 %4162
    %v4164 = vmul.f32 %v4163, %v4157
    %v4165 = vadd.f32 %v4164, 1e-05
    %v4166 = vrsqrt.pop %v4165
    %v4167 = vmul.f32 %v4166, %v4165
    %v4168 = vmul.f32 %v4167, %v4166
    %v4169 = vmul.f32 0.5, %v4168
    %v4170 = vsub.f32 1.5, %v4169
    %v4171 = vmul.f32 %v4166, %v4170
    %vm4172 = vweird.f32 %v4165
    %vm4173 = vweird.f32 %v4166
    %vm4174 = vmor %vm4172, %vm4173
    %v4175 = vsel %vm4174, %v4166, %v4171
    %v4176 = vmul.f32 %v4159, %v4175
    %v4177 = vld [vmem:[%s21] sm:$0x1]
    %v4179 = vperm.slane %v4177, 0
    %v4181 = vmul.f32 %v4176, %v4179
    %v4182 = vld [vmem:[%s23] sm:$0x1]
    %v4184 = vperm.slane %v4182, 0
    %v4186 = vadd.f32 %v4181, %v4184
    %v4187 = vtanh.pop %v4186
    %v4188 = vld [vmem:[%s25] sm:$0xff]
    %v4189 = vld [vmem:[%s25 + $0x8] sm:$0xff]
    %v4190 = vld [vmem:[%s25 + $0x10] sm:$0xff]
    %v4191 = vld [vmem:[%s25 + $0x18] sm:$0xff]
    %v4192 = vld [vmem:[%s25 + $0x20] sm:$0xff]
    %v4193 = vld [vmem:[%s25 + $0x28] sm:$0xff]
    %v4194 = vld [vmem:[%s25 + $0x30] sm:$0xff]
    %v4195 = vld [vmem:[%s25 + $0x38] sm:$0xff]
    %v4196 = vld [vmem:[%s27] sm:$0x1]
    %v4198 = vperm.slane %v4196, 0
    %v4201 = vsel %vm555, %v4187, 0
    %4203 = vmatpush.msra.mxu0 0.0
    %4204 = vmatpush.msra.mxu0 0.0
    %4205 = vmatpush.msra.mxu0 0.0
    %4206 = vmatpush.msra.mxu0 0.0
    %4207 = vmatpush.msra.mxu0 0.0
    %4208 = vmatpush.msra.mxu0 0.0
    %4209 = vmatpush.msra.mxu0 0.0
    %4210 = vmatpush.msra.mxu0 0.0
    %4211 = vmatpush.msra.mxu0 %v4195
    %4212 = vmatpush.msra.mxu0 %v4194
    %4213 = vmatpush.msra.mxu0 %v4193
    %4214 = vmatpush.msra.mxu0 %v4192
    %4215 = vmatpush.msra.mxu0 %v4191
    %4216 = vmatpush.msra.mxu0 %v4190
    %4217 = vmatpush.msra.mxu0 %v4189
    %4218 = vmatpush.msra.mxu0 %v4188
    %4219 = vmatmul.f32.gmra.mxu0 %v4201
    %v4220 = vpop.f32.mrf.mxu0
    %v4221 = vadd.f32 %v4198, %v4220
    %4222 = vdwg.mxu0
    %vm4223 = vcmask 189440
    %v4224 = vsel %vm4223, %v4221, 0.0
    %4225 = vadd.xlane.f32.xlu0 %v4224
    %v4226 = vpop.xlane.xlu0 %4225
    %v4227 = vrcp.pop 24.0
    %v4228 = vmul.f32 24.0, %v4227
    %v4229 = vsub.f32 1.0, %v4228
    %v4230 = vmul.f32 %v4227, %v4229
    %v4231 = vadd.f32 %v4227, %v4230
    %vm4232 = vweird.f32 %v4227
    %v4233 = vsel %vm4232, %v4227, %v4231
    %v4234 = vmul.f32 %v4226, %v4233
    %v4235 = vsub.f32 %v4221, %v4234
    %v4236 = vmul.f32 %v4235, %v4235
    %v4237 = vsel %vm4223, %v4236, 0.0
    %4238 = vadd.xlane.f32.xlu0 %v4237
    %v4239 = vpop.xlane.xlu0 %4238
    %v4240 = vmul.f32 %v4239, %v4233
    %v4241 = vadd.f32 %v4240, 1e-05
    %v4242 = vrsqrt.pop %v4241
    %v4243 = vmul.f32 %v4242, %v4241
    %v4244 = vmul.f32 %v4243, %v4242
    %v4245 = vmul.f32 0.5, %v4244
    %v4246 = vsub.f32 1.5, %v4245
    %v4247 = vmul.f32 %v4242, %v4246
    %vm4248 = vweird.f32 %v4241
    %vm4249 = vweird.f32 %v4242
    %vm4250 = vmor %vm4248, %vm4249
    %v4251 = vsel %vm4250, %v4242, %v4247
    %v4252 = vmul.f32 %v4235, %v4251
    %v4253 = vld [vmem:[%s29] sm:$0x1]
    %v4255 = vperm.slane %v4253, 0
    %v4257 = vmul.f32 %v4252, %v4255
    %v4258 = vld [vmem:[%s31] sm:$0x1]
    %v4260 = vperm.slane %v4258, 0
    %v4262 = vadd.f32 %v4257, %v4260
    %v4263 = vtanh.pop %v4262
    %v4264 = vld [vmem:[%s33] sm:$0x3f]
    %v4265 = vld [vmem:[%s35] sm:$0x1]
    %v4267 = vperm.slane %v4265, 0
    %vm4269 = vcmask 48128
    %v4271 = vsel %vm4269, %v145, 0
    %vm4273 = vcmask 1045504
    %v4275 = vsel %vm4273, %v4264, 0
    %4277 = vmatpush.msra.mxu0 0.0
    %4278 = vmatpush.msra.mxu0 0.0
    %4279 = vmatpush.msra.mxu0 0.0
    %4280 = vmatpush.msra.mxu0 0.0
    %4281 = vmatpush.msra.mxu0 0.0
    %4282 = vmatpush.msra.mxu0 0.0
    %4283 = vmatpush.msra.mxu0 0.0
    %4284 = vmatpush.msra.mxu0 0.0
    %4285 = vmatpush.msra.mxu0 0.0
    %4286 = vmatpush.msra.mxu0 0.0
    %4287 = vmatpush.msra.mxu0 0.0
    %4288 = vmatpush.msra.mxu0 0.0
    %4289 = vmatpush.msra.mxu0 0.0
    %4290 = vmatpush.msra.mxu0 0.0
    %4291 = vmatpush.msra.mxu0 0.0
    %4292 = vmatpush.msra.mxu0 %v4275
    %4293 = vmatmul.f32.gmra.mxu0 %v4271
    %v4294 = vpop.f32.mrf.mxu0
    %v4295 = vadd.f32 %v4267, %v4294
    %4296 = vdwg.mxu0
    %vm4297 = vcmask 58368
    %v4298 = vsel %vm4297, %v4295, 0.0
    %4299 = vadd.xlane.f32.xlu0 %v4298
    %v4300 = vpop.xlane.xlu0 %4299
    %v4301 = vrcp.pop 8.0
    %v4302 = vmul.f32 8.0, %v4301
    %v4303 = vsub.f32 1.0, %v4302
    %v4304 = vmul.f32 %v4301, %v4303
    %v4305 = vadd.f32 %v4301, %v4304
    %vm4306 = vweird.f32 %v4301
    %v4307 = vsel %vm4306, %v4301, %v4305
    %v4308 = vmul.f32 %v4300, %v4307
    %v4309 = vsub.f32 %v4295, %v4308
    %v4310 = vmul.f32 %v4309, %v4309
    %v4311 = vsel %vm4297, %v4310, 0.0
    %4312 = vadd.xlane.f32.xlu0 %v4311
    %v4313 = vpop.xlane.xlu0 %4312
    %v4314 = vmul.f32 %v4313, %v4307
    %v4315 = vadd.f32 %v4314, 1e-05
    %v4316 = vrsqrt.pop %v4315
    %v4317 = vmul.f32 %v4316, %v4315
    %v4318 = vmul.f32 %v4317, %v4316
    %v4319 = vmul.f32 0.5, %v4318
    %v4320 = vsub.f32 1.5, %v4319
    %v4321 = vmul.f32 %v4316, %v4320
    %vm4322 = vweird.f32 %v4315
    %vm4323 = vweird.f32 %v4316
    %vm4324 = vmor %vm4322, %vm4323
    %v4325 = vsel %vm4324, %v4316, %v4321
    %v4326 = vmul.f32 %v4309, %v4325
    %v4327 = vld [vmem:[%s37] sm:$0x1]
    %v4329 = vperm.slane %v4327, 0
    %v4331 = vmul.f32 %v4326, %v4329
    %v4332 = vld [vmem:[%s39] sm:$0x1]
    %v4334 = vperm.slane %v4332, 0
    %v4336 = vadd.f32 %v4331, %v4334
    %vm4337 = vcmp.gt.f32.partialorder %v4336, 0.0
    %v4338 = vmul.f32 %v4336, 0.1
    %v4339 = vsel %vm4337, %v4336, %v4338
    %v4340 = vld [vmem:[%s41] sm:$0xff]
    %v4341 = vld [vmem:[%s43] sm:$0x1]
    %v4343 = vperm.slane %v4341, 0
    %vm4345 = vcmask 64512
    %v4347 = vsel %vm4345, %v4339, 0
    %4349 = vmatpush.msra.mxu0 0.0
    %4350 = vmatpush.msra.mxu0 0.0
    %4351 = vmatpush.msra.mxu0 0.0
    %4352 = vmatpush.msra.mxu0 0.0
    %4353 = vmatpush.msra.mxu0 0.0
    %4354 = vmatpush.msra.mxu0 0.0
    %4355 = vmatpush.msra.mxu0 0.0
    %4356 = vmatpush.msra.mxu0 0.0
    %4357 = vmatpush.msra.mxu0 0.0
    %4358 = vmatpush.msra.mxu0 0.0
    %4359 = vmatpush.msra.mxu0 0.0
    %4360 = vmatpush.msra.mxu0 0.0
    %4361 = vmatpush.msra.mxu0 0.0
    %4362 = vmatpush.msra.mxu0 0.0
    %4363 = vmatpush.msra.mxu0 0.0
    %4364 = vmatpush.msra.mxu0 %v4340
    %4365 = vmatmul.f32.gmra.mxu0 %v4347
    %v4366 = vpop.f32.mrf.mxu0
    %v4367 = vadd.f32 %v4343, %v4366
    %4368 = vdwg.mxu0
    %vm4369 = vcmp.gt.f32.partialorder %v4367, 0.0
    %v4370 = vmul.f32 %v4367, 0.1
    %v4371 = vsel %vm4369, %v4367, %v4370
    %v4372 = vld [vmem:[%s45] sm:$0x3]
    %v4373 = vld [vmem:[%s47] sm:$0x1]
    %v4375 = vperm.slane %v4373, 0
    %vm4377 = vcmask 15360
    %v4379 = vsel %vm4377, %v146, 0
    %vm4381 = vcmask 1041408
    %v4383 = vsel %vm4381, %v4372, 0
    %4385 = vmatpush.msra.mxu0 0.0
    %4386 = vmatpush.msra.mxu0 0.0
    %4387 = vmatpush.msra.mxu0 0.0
    %4388 = vmatpush.msra.mxu0 0.0
    %4389 = vmatpush.msra.mxu0 0.0
    %4390 = vmatpush.msra.mxu0 0.0
    %4391 = vmatpush.msra.mxu0 0.0
    %4392 = vmatpush.msra.mxu0 0.0
    %4393 = vmatpush.msra.mxu0 0.0
    %4394 = vmatpush.msra.mxu0 0.0
    %4395 = vmatpush.msra.mxu0 0.0
    %4396 = vmatpush.msra.mxu0 0.0
    %4397 = vmatpush.msra.mxu0 0.0
    %4398 = vmatpush.msra.mxu0 0.0
    %4399 = vmatpush.msra.mxu0 0.0
    %4400 = vmatpush.msra.mxu0 %v4383
    %4401 = vmatmul.f32.gmra.mxu0 %v4379
    %v4402 = vpop.f32.mrf.mxu0
    %v4403 = vadd.f32 %v4375, %v4402
    %4404 = vdwg.mxu0
    %v4405 = vsel %vm4297, %v4403, 0.0
    %4406 = vadd.xlane.f32.xlu0 %v4405
    %v4407 = vpop.xlane.xlu0 %4406
    %v4408 = vmul.f32 %v4407, %v4307
    %v4409 = vsub.f32 %v4403, %v4408
    %v4410 = vmul.f32 %v4409, %v4409
    %v4411 = vsel %vm4297, %v4410, 0.0
    %4412 = vadd.xlane.f32.xlu0 %v4411
    %v4413 = vpop.xlane.xlu0 %4412
    %v4414 = vmul.f32 %v4413, %v4307
    %v4415 = vadd.f32 %v4414, 1e-05
    %v4416 = vrsqrt.pop %v4415
    %v4417 = vmul.f32 %v4416, %v4415
    %v4418 = vmul.f32 %v4417, %v4416
    %v4419 = vmul.f32 0.5, %v4418
    %v4420 = vsub.f32 1.5, %v4419
    %v4421 = vmul.f32 %v4416, %v4420
    %vm4422 = vweird.f32 %v4415
    %vm4423 = vweird.f32 %v4416
    %vm4424 = vmor %vm4422, %vm4423
    %v4425 = vsel %vm4424, %v4416, %v4421
    %v4426 = vmul.f32 %v4409, %v4425
    %v4427 = vld [vmem:[%s49] sm:$0x1]
    %v4429 = vperm.slane %v4427, 0
    %v4431 = vmul.f32 %v4426, %v4429
    %v4432 = vld [vmem:[%s51] sm:$0x1]
    %v4434 = vperm.slane %v4432, 0
    %v4436 = vadd.f32 %v4431, %v4434
    %vm4437 = vcmp.gt.f32.partialorder %v4436, 0.0
    %v4438 = vmul.f32 %v4436, 0.1
    %v4439 = vsel %vm4437, %v4436, %v4438
    %v4440 = vld [vmem:[%s53] sm:$0xff]
    %v4441 = vld [vmem:[%s55] sm:$0x1]
    %v4443 = vperm.slane %v4441, 0
    %v4446 = vsel %vm4345, %v4439, 0
    %4448 = vmatpush.msra.mxu0 0.0
    %4449 = vmatpush.msra.mxu0 0.0
    %4450 = vmatpush.msra.mxu0 0.0
    %4451 = vmatpush.msra.mxu0 0.0
    %4452 = vmatpush.msra.mxu0 0.0
    %4453 = vmatpush.msra.mxu0 0.0
    %4454 = vmatpush.msra.mxu0 0.0
    %4455 = vmatpush.msra.mxu0 0.0
    %4456 = vmatpush.msra.mxu0 0.0
    %4457 = vmatpush.msra.mxu0 0.0
    %4458 = vmatpush.msra.mxu0 0.0
    %4459 = vmatpush.msra.mxu0 0.0
    %4460 = vmatpush.msra.mxu0 0.0
    %4461 = vmatpush.msra.mxu0 0.0
    %4462 = vmatpush.msra.mxu0 0.0
    %4463 = vmatpush.msra.mxu0 %v4440
    %4464 = vmatmul.f32.gmra.mxu0 %v4446
    %v4465 = vpop.f32.mrf.mxu0
    %v4466 = vadd.f32 %v4443, %v4465
    %4467 = vdwg.mxu0
    %vm4468 = vcmp.gt.f32.partialorder %v4466, 0.0
    %v4469 = vmul.f32 %v4466, 0.1
    %v4470 = vsel %vm4468, %v4466, %v4469
    %v4471 = vld [vmem:[%s57] sm:$0xff]
    %v4472 = vld [vmem:[%s57 + $0x8] sm:$0xff]
    %v4473 = vld [vmem:[%s57 + $0x10] sm:$0xff]
    %v4474 = vld [vmem:[%s57 + $0x18] sm:$0xff]
    %v4475 = vld [vmem:[%s57 + $0x20] sm:$0xff]
    %v4476 = vld [vmem:[%s57 + $0x28] sm:$0xff]
    %vm4477 = vcmask 195584
    %v4479 = vsel %vm4477, %v4470, 0
    %4481 = vmatpush.msra.mxu0 0.0
    %4482 = vmatpush.msra.mxu0 0.0
    %4483 = vmatpush.msra.mxu0 0.0
    %4484 = vmatpush.msra.mxu0 0.0
    %4485 = vmatpush.msra.mxu0 0.0
    %4486 = vmatpush.msra.mxu0 0.0
    %4487 = vmatpush.msra.mxu0 0.0
    %4488 = vmatpush.msra.mxu0 0.0
    %4489 = vmatpush.msra.mxu0 0.0
    %4490 = vmatpush.msra.mxu0 0.0
    %4491 = vmatpush.msra.mxu0 0.0
    %4492 = vmatpush.msra.mxu0 0.0
    %4493 = vmatpush.msra.mxu0 0.0
    %4494 = vmatpush.msra.mxu0 %v4476
    %4495 = vmatpush.msra.mxu0 %v4475
    %4496 = vmatpush.msra.mxu0 %v4474
    %4497 = vmatmul.f32.gmra.mxu0 %v4479
    %v4498 = vpop.f32.mrf.mxu0
    %v4499 = vadd.f32 0.0, %v4498
    %4500 = vdwg.mxu0
    %v4502 = vsel %vm4477, %v4371, 0
    %4504 = vmatpush.msra.mxu0 0.0
    %4505 = vmatpush.msra.mxu0 0.0
    %4506 = vmatpush.msra.mxu0 0.0
    %4507 = vmatpush.msra.mxu0 0.0
    %4508 = vmatpush.msra.mxu0 0.0
    %4509 = vmatpush.msra.mxu0 0.0
    %4510 = vmatpush.msra.mxu0 0.0
    %4511 = vmatpush.msra.mxu0 0.0
    %4512 = vmatpush.msra.mxu0 0.0
    %4513 = vmatpush.msra.mxu0 0.0
    %4514 = vmatpush.msra.mxu0 0.0
    %4515 = vmatpush.msra.mxu0 0.0
    %4516 = vmatpush.msra.mxu0 0.0
    %4517 = vmatpush.msra.mxu0 %v4473
    %4518 = vmatpush.msra.mxu0 %v4472
    %4519 = vmatpush.msra.mxu0 %v4471
    %4520 = vmatmul.f32.gmra.mxu0 %v4502
    %v4521 = vpop.f32.mrf.mxu0
    %v4522 = vadd.f32 %v4499, %v4521
    %4523 = vdwg.mxu0
    %v4524 = vld [vmem:[%s57 + $0x30] sm:$0xff]
    %v4525 = vld [vmem:[%s57 + $0x38] sm:$0xff]
    %v4526 = vld [vmem:[%s57 + $0x40] sm:$0xff]
    %v4528 = vsel %vm4477, %v4263, 0
    %4530 = vmatpush.msra.mxu0 0.0
    %4531 = vmatpush.msra.mxu0 0.0
    %4532 = vmatpush.msra.mxu0 0.0
    %4533 = vmatpush.msra.mxu0 0.0
    %4534 = vmatpush.msra.mxu0 0.0
    %4535 = vmatpush.msra.mxu0 0.0
    %4536 = vmatpush.msra.mxu0 0.0
    %4537 = vmatpush.msra.mxu0 0.0
    %4538 = vmatpush.msra.mxu0 0.0
    %4539 = vmatpush.msra.mxu0 0.0
    %4540 = vmatpush.msra.mxu0 0.0
    %4541 = vmatpush.msra.mxu0 0.0
    %4542 = vmatpush.msra.mxu0 0.0
    %4543 = vmatpush.msra.mxu0 %v4526
    %4544 = vmatpush.msra.mxu0 %v4525
    %4545 = vmatpush.msra.mxu0 %v4524
    %4546 = vmatmul.f32.gmra.mxu0 %v4528
    %v4547 = vpop.f32.mrf.mxu0
    %v4548 = vadd.f32 0.0, %v4547
    %4549 = vdwg.mxu0
    %v4550 = vadd.f32 %v4522, %v4548
    %v4551 = vld [vmem:[%s59] sm:$0x1]
    %v4553 = vperm.slane %v4551, 0
    %v4555 = vadd.f32 %v4550, %v4553
    %vm4556 = vcmp.gt.f32.partialorder %v4555, 0.0
    %v4557 = vmul.f32 %v4555, 0.1
    %v4558 = vsel %vm4556, %v4555, %v4557
    %v4559 = vld [vmem:[%s61] sm:$0xff]
    %v4560 = vld [vmem:[%s61 + $0x8] sm:$0xf]
    %v4561 = vld [vmem:[%s63] sm:$0x1]
    %v4563 = vperm.slane %v4561, 0
    %vm4565 = vcmask 97280
    %v4567 = vsel %vm4565, %v4558, 0
    %v4570 = vsel %vm156, %v4560, 0
    %4572 = vmatpush.msra.mxu0 0.0
    %4573 = vmatpush.msra.mxu0 0.0
    %4574 = vmatpush.msra.mxu0 0.0
    %4575 = vmatpush.msra.mxu0 0.0
    %4576 = vmatpush.msra.mxu0 0.0
    %4577 = vmatpush.msra.mxu0 0.0
    %4578 = vmatpush.msra.mxu0 0.0
    %4579 = vmatpush.msra.mxu0 0.0
    %4580 = vmatpush.msra.mxu0 0.0
    %4581 = vmatpush.msra.mxu0 0.0
    %4582 = vmatpush.msra.mxu0 0.0
    %4583 = vmatpush.msra.mxu0 0.0
    %4584 = vmatpush.msra.mxu0 0.0
    %4585 = vmatpush.msra.mxu0 0.0
    %4586 = vmatpush.msra.mxu0 %v4570
    %4587 = vmatpush.msra.mxu0 %v4559
    %4588 = vmatmul.f32.gmra.mxu0 %v4567
    %v4589 = vpop.f32.mrf.mxu0
    %v4590 = vadd.f32 %v4563, %v4589
    %4591 = vdwg.mxu0
    %vm4592 = vcmask 41984
    %4593 = vst.msk [vmem:[#allocation2] sm:$0x3] %vm4592, %v4590
    // Predicated region
    $region130: #{_lambda_.1} parent=1 // pred_check
      _
    $region131: #{_lambda_.1} parent=1 // pred_check_branch
      %4595 = sbr.rel (0) target = $region133
    $region132: #{_lambda_.1} parent=1 // pred_region
      %4597 = vsyncadd [#allocation3], 0
      %s4599 = sshll.u32 [#allocation2], 4
      %s4600 = int_to_ptr.vmem [resolvable:$true] %s4599
      %s4601 = sshll.u32 %s65, 4
      %s4602 = int_to_ptr.hbm [resolvable:$true] %s4601
      %4604 = dma.vmem_to_hbm [thread:$0]  %s4600, 32, %s4602, [#allocation3]
    $region133: #{_lambda_.1} parent=1 // pred_fallthru
      _
    // Predicated region
    $region134: #{_lambda_.1} parent=1 // pred_check
      _
    $region135: #{_lambda_.1} parent=1 // pred_check_branch
      %4606 = sbr.rel (0) target = $region137
    $region136: #{_lambda_.1} parent=1 // pred_region
      %4608 = dma.done [#allocation3], 32
    $region137: #{_lambda_.1} parent=1 // pred_fallthru
      _
    %4609 = vsyncpa [#allocation3], 1

</llo_original>
